<compile_context>
chip_gen: v6e
topology: v6e:2x2x1
jax: 0.10.0
libtpu: 0.0.40
codegen_flags: <defaults>
</compile_context>

<pallas_src>
import functools
import math

import jax
import jax.numpy as jnp
from jax.experimental import pallas as pl
from jax.experimental.pallas import tpu as pltpu

# ---------------- mini-BERT config (small shapes, lane-aligned) ----------------
B = 2            # batch
S = 8            # sequence length
H = 128          # hidden size   (stands in for 768)
NH = 4           # attention heads
DH = H // NH     # head dim
I = 512          # FFN intermediate size
L = 2            # encoder layers
VOCAB = 256
NUM_LABELS = 6
CLS_PAD = 128    # lane-dense classifier output width (sliced to NUM_LABELS outside)
LN_EPS = 1e-12


# ------------------------------ in-kernel helpers -------------------------------
def _layernorm(x, g, b):
    mu = jnp.mean(x, axis=-1, keepdims=True)
    xc = x - mu
    var = jnp.mean(xc * xc, axis=-1, keepdims=True)
    return xc * jax.lax.rsqrt(var + LN_EPS) * g + b


def _gelu(y):
    # TODO(synk): HF BERT uses exact erf-GELU; tanh approximation used here.
    return 0.5 * y * (1.0 + jnp.tanh(0.7978845608028654 * (y + 0.044715 * y * y * y)))


# ------------------------------- Pallas kernels --------------------------------
def _embed_ln_kernel(w_ref, p_ref, t_ref, g_ref, b_ref, o_ref):
    """Fused embedding sum + LayerNorm for one batch tile: LN(word + pos + type)."""
    x = (w_ref[...].astype(jnp.float32)
         + p_ref[...].astype(jnp.float32)
         + t_ref[...].astype(jnp.float32))
    o_ref[...] = _layernorm(x, g_ref[...].astype(jnp.float32),
                            b_ref[...].astype(jnp.float32)).astype(o_ref.dtype)


def _encoder_layer_kernel(x_ref, mask_ref,
                          wqkv_ref, bqkv_ref, wo_ref, bo_ref, ln1g_ref, ln1b_ref,
                          w1_ref, b1_ref, w2_ref, b2_ref, ln2g_ref, ln2b_ref,
                          o_ref, ctx_ref):
    """One full BERT encoder layer for one batch tile (S, H), fully VMEM-resident."""
    x = x_ref[...].astype(jnp.float32)                           # (S, H)

    # Fused QKV projection: one (S,H) @ (H,3H) matmul.
    qkv = jnp.dot(x, wqkv_ref[...].astype(jnp.float32),
                  preferred_element_type=jnp.float32) + bqkv_ref[...]
    q = qkv[:, 0:H]
    k = qkv[:, H:2 * H]
    v = qkv[:, 2 * H:3 * H]

    bias = mask_ref[0].astype(jnp.float32)                       # (1, S) additive mask
    scale = 1.0 / math.sqrt(DH)

    # Per-head attention, statically unrolled; head splits are static lane slices.
    for h in range(NH):
        lo, hi = h * DH, (h + 1) * DH
        qh = q[:, lo:hi]                                         # (S, DH)
        kh = k[:, lo:hi]
        vh = v[:, lo:hi]
        # Contract trailing axes (no explicit transpose): (S,DH)x(S,DH) -> (S,S)
        s = jax.lax.dot_general(qh, kh, (((1,), (1,)), ((), ())),
                                preferred_element_type=jnp.float32)
        s = s * scale + bias                                     # broadcast over rows
        s = s - jnp.max(s, axis=-1, keepdims=True)
        p = jnp.exp(s)
        p = p / jnp.sum(p, axis=-1, keepdims=True)
        ctx_ref[:, lo:hi] = jnp.dot(p, vh, preferred_element_type=jnp.float32)

    ctx = ctx_ref[...]                                           # (S, H)

    # Output projection + residual + LayerNorm.
    attn_out = jnp.dot(ctx, wo_ref[...].astype(jnp.float32),
                       preferred_element_type=jnp.float32) + bo_ref[...]
    x1 = _layernorm(attn_out + x, ln1g_ref[...], ln1b_ref[...])

    # Feed-forward: GELU(x1 @ W1 + b1) @ W2 + b2, residual + LayerNorm.
    hdn = jnp.dot(x1, w1_ref[...].astype(jnp.float32),
                  preferred_element_type=jnp.float32) + b1_ref[...]
    hdn = _gelu(hdn)
    h2 = jnp.dot(hdn, w2_ref[...].astype(jnp.float32),
                 preferred_element_type=jnp.float32) + b2_ref[...]
    o_ref[...] = _layernorm(h2 + x1, ln2g_ref[...], ln2b_ref[...]).astype(o_ref.dtype)


def _head_kernel(cls_ref, pw_ref, pb_ref, cw_ref, cb_ref, o_ref):
    """Fused BERT pooler (tanh) + classifier; output is lane-dense (B, CLS_PAD)."""
    x = cls_ref[...].astype(jnp.float32)                         # (B, H)
    pooled = jnp.tanh(jnp.dot(x, pw_ref[...].astype(jnp.float32),
                              preferred_element_type=jnp.float32) + pb_ref[...])
    # Dropout(0.1): identity in eval/inference mode.
    logits = jnp.dot(pooled, cw_ref[...].astype(jnp.float32),
                     preferred_element_type=jnp.float32) + cb_ref[...]
    o_ref[...] = logits.astype(o_ref.dtype)


# ------------------------------- kernel wrappers --------------------------------
def embed_layernorm(word, pos, typ, gamma, beta):
    """word: (B*S, H) gathered embeddings; pos: (S, H); typ/gamma/beta: (1, H)."""
    return pl.pallas_call(
        _embed_ln_kernel,
        out_shape=jax.ShapeDtypeStruct((B * S, H), jnp.float32),
        grid=(B,),
        in_specs=[
            pl.BlockSpec((S, H), lambda b: (b, 0)),
            pl.BlockSpec((S, H), lambda b: (0, 0)),
            pl.BlockSpec((1, H), lambda b: (0, 0)),
            pl.BlockSpec((1, H), lambda b: (0, 0)),
            pl.BlockSpec((1, H), lambda b: (0, 0)),
        ],
        out_specs=pl.BlockSpec((S, H), lambda b: (b, 0)),
        compiler_params=pltpu.CompilerParams(dimension_semantics=("parallel",)),
    )(word, pos, typ, gamma, beta)


def encoder_layer(x, mask_bias, wqkv, bqkv, wo, bo, ln1g, ln1b,
                  w1, b1, w2, b2, ln2g, ln2b):
    """x: (B*S, H); mask_bias: (B, 1, S) additive (0 / -10000)."""
    return pl.pallas_call(
        _encoder_layer_kernel,
        out_shape=jax.ShapeDtypeStruct((B * S, H), jnp.float32),
        grid=(B,),
        in_specs=[
            pl.BlockSpec((S, H), lambda b: (b, 0)),          # x
            pl.BlockSpec((1, 1, S), lambda b: (b, 0, 0)),    # additive attention mask
            pl.BlockSpec((H, 3 * H), lambda b: (0, 0)),      # fused QKV weight
            pl.BlockSpec((1, 3 * H), lambda b: (0, 0)),      # fused QKV bias
            pl.BlockSpec((H, H), lambda b: (0, 0)),          # out-proj weight
            pl.BlockSpec((1, H), lambda b: (0, 0)),          # out-proj bias
            pl.BlockSpec((1, H), lambda b: (0, 0)),          # attn LN gamma
            pl.BlockSpec((1, H), lambda b: (0, 0)),          # attn LN beta
            pl.BlockSpec((H, I), lambda b: (0, 0)),          # FFN1 weight
            pl.BlockSpec((1, I), lambda b: (0, 0)),          # FFN1 bias
            pl.BlockSpec((I, H), lambda b: (0, 0)),          # FFN2 weight
            pl.BlockSpec((1, H), lambda b: (0, 0)),          # FFN2 bias
            pl.BlockSpec((1, H), lambda b: (0, 0)),          # FFN LN gamma
            pl.BlockSpec((1, H), lambda b: (0, 0)),          # FFN LN beta
        ],
        out_specs=pl.BlockSpec((S, H), lambda b: (b, 0)),
        scratch_shapes=[pltpu.VMEM((S, H), jnp.float32)],    # per-batch context buffer
        compiler_params=pltpu.CompilerParams(dimension_semantics=("parallel",)),
    )(x, mask_bias, wqkv, bqkv, wo, bo, ln1g, ln1b, w1, b1, w2, b2, ln2g, ln2b)


def pooler_classifier(cls, pool_w, pool_b, cls_w_pad, cls_b_pad):
    """cls: (B, H). Returns lane-dense (B, CLS_PAD); slice to NUM_LABELS outside."""
    return pl.pallas_call(
        _head_kernel,
        out_shape=jax.ShapeDtypeStruct((B, CLS_PAD), jnp.float32),
        grid=(1,),
        in_specs=[
            pl.BlockSpec((B, H), lambda i: (0, 0)),
            pl.BlockSpec((H, H), lambda i: (0, 0)),
            pl.BlockSpec((1, H), lambda i: (0, 0)),
            pl.BlockSpec((H, CLS_PAD), lambda i: (0, 0)),
            pl.BlockSpec((1, CLS_PAD), lambda i: (0, 0)),
        ],
        out_specs=pl.BlockSpec((B, CLS_PAD), lambda i: (0, 0)),
    )(cls, pool_w, pool_b, cls_w_pad, cls_b_pad)


# ------------------------------ parameter setup --------------------------------
def init_params(key):
    ks = iter(jax.random.split(key, 256))

    def w(shape):
        return 0.02 * jax.random.normal(next(ks), shape, dtype=jnp.float32)

    params = {
        "word_emb": w((VOCAB, H)),
        "pos_emb": w((S, H)),
        "type_emb": w((2, H)),
        "emb_ln_g": jnp.ones((H,), jnp.float32),
        "emb_ln_b": jnp.zeros((H,), jnp.float32),
        "layers": [],
        "pool_w": w((H, H)),
        "pool_b": jnp.zeros((H,), jnp.float32),
        "cls_w": w((H, NUM_LABELS)),
        "cls_b": jnp.zeros((NUM_LABELS,), jnp.float32),
    }
    for _ in range(L):
        params["layers"].append({
            "q_w": w((H, H)), "q_b": jnp.zeros((H,), jnp.float32),
            "k_w": w((H, H)), "k_b": jnp.zeros((H,), jnp.float32),
            "v_w": w((H, H)), "v_b": jnp.zeros((H,), jnp.float32),
            "o_w": w((H, H)), "o_b": jnp.zeros((H,), jnp.float32),
            "attn_ln_g": jnp.ones((H,), jnp.float32),
            "attn_ln_b": jnp.zeros((H,), jnp.float32),
            "ffn1_w": w((H, I)), "ffn1_b": jnp.zeros((I,), jnp.float32),
            "ffn2_w": w((I, H)), "ffn2_b": jnp.zeros((H,), jnp.float32),
            "ffn_ln_g": jnp.ones((H,), jnp.float32),
            "ffn_ln_b": jnp.zeros((H,), jnp.float32),
        })
    return params


# --------------------------------- forward -------------------------------------
def duygu_analizi_forward(params, input_ids, attention_mask):
    # Embeddings: gather is plain-JAX glue; sum + LN fused in one kernel.
    word = jnp.take(params["word_emb"], input_ids.reshape(-1), axis=0)   # (B*S, H)
    x = embed_layernorm(
        word,
        params["pos_emb"],
        params["type_emb"][0].reshape(1, H),
        params["emb_ln_g"].reshape(1, H),
        params["emb_ln_b"].reshape(1, H),
    )

    # Additive attention mask (HF-style): 0 for keep, -10000 for pad.
    mask_bias = ((1.0 - attention_mask.astype(jnp.float32)) * -10000.0).reshape(B, 1, S)

    for lp in params["layers"]:
        wqkv = jnp.concatenate([lp["q_w"], lp["k_w"], lp["v_w"]], axis=1)       # (H, 3H)
        bqkv = jnp.concatenate([lp["q_b"], lp["k_b"], lp["v_b"]], axis=0)
        x = encoder_layer(
            x, mask_bias,
            wqkv, bqkv.reshape(1, 3 * H),
            lp["o_w"], lp["o_b"].reshape(1, H),
            lp["attn_ln_g"].reshape(1, H), lp["attn_ln_b"].reshape(1, H),
            lp["ffn1_w"], lp["ffn1_b"].reshape(1, I),
            lp["ffn2_w"], lp["ffn2_b"].reshape(1, H),
            lp["ffn_ln_g"].reshape(1, H), lp["ffn_ln_b"].reshape(1, H),
        )

    # BERT pooler (tanh of [CLS]) + classifier, fused; lane-dense padded output.
    cls = x.reshape(B, S, H)[:, 0, :]                                        # (B, H)
    cls_w_pad = jnp.zeros((H, CLS_PAD), jnp.float32).at[:, :NUM_LABELS].set(params["cls_w"])
    cls_b_pad = jnp.zeros((1, CLS_PAD), jnp.float32).at[0, :NUM_LABELS].set(params["cls_b"])
    logits_pad = pooler_classifier(cls, params["pool_w"],
                                   params["pool_b"].reshape(1, H),
                                   cls_w_pad, cls_b_pad)
    return logits_pad[:, :NUM_LABELS]                                        # (B, NUM_LABELS)


# ----------------------------------- main ---------------------------------------
if __name__ == "__main__":
    key = jax.random.PRNGKey(0)
    k_param, k_ids, k_mask = jax.random.split(key, 3)

    params = init_params(k_param)
    input_ids = jax.random.randint(k_ids, (B, S), 0, VOCAB, dtype=jnp.int32)
    # last two tokens of sample 1 padded, to exercise the mask path
    attention_mask = jnp.array([[1] * S, [1] * (S - 2) + [0, 0]], dtype=jnp.int32)

    forward = jax.jit(duygu_analizi_forward)
    logits = forward(params, input_ids, attention_mask)
    logits = jax.block_until_ready(logits)
    assert logits.shape == (B, NUM_LABELS)
    assert bool(jnp.all(jnp.isfinite(logits)))
    print("KERNEL_OK")
</pallas_src>

<mosaic_0001>
module attributes {stable_mosaic.version = 11 : i64} {
  func.func @_embed_ln_kernel(%arg0: i32, %arg1: memref<8x128xf32, #tpu.memory_space<vmem>>, %arg2: memref<8x128xf32, #tpu.memory_space<vmem>>, %arg3: memref<1x128xf32, #tpu.memory_space<vmem>>, %arg4: memref<1x128xf32, #tpu.memory_space<vmem>>, %arg5: memref<1x128xf32, #tpu.memory_space<vmem>>, %arg6: memref<8x128xf32, #tpu.memory_space<vmem>>) attributes {dimension_semantics = [#tpu.dimension_semantics<parallel>], iteration_bounds = array<i64: 2>, scalar_prefetch = 0 : i64, scratch_operands = 0 : i64, tpu.core_type = #tpu.core_type<tc>, window_params = [{transform_indices = @transform_0, window_bounds = array<i64: 8, 128>}, {pipeline_mode = #tpu.pipeline_mode<synchronous>, transform_indices = @transform_1, window_bounds = array<i64: 8, 128>}, {pipeline_mode = #tpu.pipeline_mode<synchronous>, transform_indices = @transform_2, window_bounds = array<i64: 1, 128>}, {pipeline_mode = #tpu.pipeline_mode<synchronous>, transform_indices = @transform_3, window_bounds = array<i64: 1, 128>}, {pipeline_mode = #tpu.pipeline_mode<synchronous>, transform_indices = @transform_4, window_bounds = array<i64: 1, 128>}, {transform_indices = @transform_5, window_bounds = array<i64: 8, 128>}]} {
    %c0 = arith.constant 0 : index
    %c0_0 = arith.constant 0 : index
    %0 = vector.load %arg1[%c0, %c0_0] : memref<8x128xf32, #tpu.memory_space<vmem>>, vector<8x128xf32>
    %c0_1 = arith.constant 0 : index
    %c0_2 = arith.constant 0 : index
    %1 = vector.load %arg2[%c0_1, %c0_2] : memref<8x128xf32, #tpu.memory_space<vmem>>, vector<8x128xf32>
    %2 = arith.addf %0, %1 : vector<8x128xf32>
    %c0_3 = arith.constant 0 : index
    %c0_4 = arith.constant 0 : index
    %3 = vector.load %arg3[%c0_3, %c0_4] : memref<1x128xf32, #tpu.memory_space<vmem>>, vector<1x128xf32>
    %4 = vector.broadcast %3 : vector<1x128xf32> to vector<8x128xf32>
    %5 = arith.addf %2, %4 : vector<8x128xf32>
    %c0_5 = arith.constant 0 : index
    %c0_6 = arith.constant 0 : index
    %6 = vector.load %arg4[%c0_5, %c0_6] : memref<1x128xf32, #tpu.memory_space<vmem>>, vector<1x128xf32>
    %c0_7 = arith.constant 0 : index
    %c0_8 = arith.constant 0 : index
    %7 = vector.load %arg5[%c0_7, %c0_8] : memref<1x128xf32, #tpu.memory_space<vmem>>, vector<1x128xf32>
    %cst = arith.constant dense<0.000000e+00> : vector<8xf32>
    %8 = vector.multi_reduction <add>, %5, %cst [1] : vector<8x128xf32> to vector<8xf32>
    %9 = vector.shape_cast %8 : vector<8xf32> to vector<8x1xf32>
    %cst_9 = arith.constant 1.280000e+02 : f32
    %10 = vector.broadcast %cst_9 : f32 to vector<8x1xf32>
    %11 = arith.divf %9, %10 : vector<8x1xf32>
    %12 = vector.broadcast %11 : vector<8x1xf32> to vector<8x128xf32>
    %13 = arith.subf %5, %12 : vector<8x128xf32>
    %14 = arith.mulf %13, %13 : vector<8x128xf32>
    %cst_10 = arith.constant dense<0.000000e+00> : vector<8xf32>
    %15 = vector.multi_reduction <add>, %14, %cst_10 [1] : vector<8x128xf32> to vector<8xf32>
    %16 = vector.shape_cast %15 : vector<8xf32> to vector<8x1xf32>
    %cst_11 = arith.constant 1.280000e+02 : f32
    %17 = vector.broadcast %cst_11 : f32 to vector<8x1xf32>
    %18 = arith.divf %16, %17 : vector<8x1xf32>
    %cst_12 = arith.constant 9.99999996E-13 : f32
    %19 = vector.broadcast %cst_12 : f32 to vector<8x1xf32>
    %20 = arith.addf %18, %19 : vector<8x1xf32>
    %21 = math.rsqrt %20 : vector<8x1xf32>
    %22 = vector.broadcast %21 : vector<8x1xf32> to vector<8x128xf32>
    %23 = arith.mulf %13, %22 : vector<8x128xf32>
    %24 = vector.broadcast %6 : vector<1x128xf32> to vector<8x128xf32>
    %25 = arith.mulf %23, %24 : vector<8x128xf32>
    %26 = vector.broadcast %7 : vector<1x128xf32> to vector<8x128xf32>
    %27 = arith.addf %25, %26 : vector<8x128xf32>
    %c0_13 = arith.constant 0 : index
    %c0_14 = arith.constant 0 : index
    %28 = vector.load %arg6[%c0_13, %c0_14] : memref<8x128xf32, #tpu.memory_space<vmem>>, vector<8x128xf32>
    tpu.vector_store %arg6[%c0_13, %c0_14], %27 {strides = array<i32>} : memref<8x128xf32, #tpu.memory_space<vmem>>, vector<8x128xf32>,
    return
  }
  func.func @transform_0(%arg0: i32) -> (i32, i32) {
    %c0_i32 = arith.constant 0 : i32
    %c0_i32_0 = arith.constant 0 : i32
    return %arg0, %c0_i32 : i32, i32
  }
  func.func @transform_1(%arg0: i32) -> (i32, i32) {
    %c0_i32 = arith.constant 0 : i32
    %c0_i32_0 = arith.constant 0 : i32
    %c0_i32_1 = arith.constant 0 : i32
    return %c0_i32, %c0_i32_0 : i32, i32
  }
  func.func @transform_2(%arg0: i32) -> (i32, i32) {
    %c0_i32 = arith.constant 0 : i32
    %c0_i32_0 = arith.constant 0 : i32
    %c0_i32_1 = arith.constant 0 : i32
    return %c0_i32, %c0_i32_0 : i32, i32
  }
  func.func @transform_3(%arg0: i32) -> (i32, i32) {
    %c0_i32 = arith.constant 0 : i32
    %c0_i32_0 = arith.constant 0 : i32
    %c0_i32_1 = arith.constant 0 : i32
    return %c0_i32, %c0_i32_0 : i32, i32
  }
  func.func @transform_4(%arg0: i32) -> (i32, i32) {
    %c0_i32 = arith.constant 0 : i32
    %c0_i32_0 = arith.constant 0 : i32
    %c0_i32_1 = arith.constant 0 : i32
    return %c0_i32, %c0_i32_0 : i32, i32
  }
  func.func @transform_5(%arg0: i32) -> (i32, i32) {
    %c0_i32 = arith.constant 0 : i32
    %c0_i32_0 = arith.constant 0 : i32
    return %arg0, %c0_i32 : i32, i32
  }
}

module attributes {stable_mosaic.version = 11 : i64} {
  func.func @_encoder_layer_kernel(%arg0: i32, %arg1: memref<8x128xf32, #tpu.memory_space<vmem>>, %arg2: memref<1x1x8xf32, #tpu.memory_space<vmem>>, %arg3: memref<128x384xf32, #tpu.memory_space<vmem>>, %arg4: memref<1x384xf32, #tpu.memory_space<vmem>>, %arg5: memref<128x128xf32, #tpu.memory_space<vmem>>, %arg6: memref<1x128xf32, #tpu.memory_space<vmem>>, %arg7: memref<1x128xf32, #tpu.memory_space<vmem>>, %arg8: memref<1x128xf32, #tpu.memory_space<vmem>>, %arg9: memref<128x512xf32, #tpu.memory_space<vmem>>, %arg10: memref<1x512xf32, #tpu.memory_space<vmem>>, %arg11: memref<512x128xf32, #tpu.memory_space<vmem>>, %arg12: memref<1x128xf32, #tpu.memory_space<vmem>>, %arg13: memref<1x128xf32, #tpu.memory_space<vmem>>, %arg14: memref<1x128xf32, #tpu.memory_space<vmem>>, %arg15: memref<8x128xf32, #tpu.memory_space<vmem>>, %arg16: memref<8x128xf32, #tpu.memory_space<vmem>>) attributes {dimension_semantics = [#tpu.dimension_semantics<parallel>], iteration_bounds = array<i64: 2>, scalar_prefetch = 0 : i64, scratch_operands = 1 : i64, tpu.core_type = #tpu.core_type<tc>, window_params = [{transform_indices = @transform_0, window_bounds = array<i64: 8, 128>}, {transform_indices = @transform_1, window_bounds = array<i64: 1, 1, 8>}, {pipeline_mode = #tpu.pipeline_mode<synchronous>, transform_indices = @transform_2, window_bounds = array<i64: 128, 384>}, {pipeline_mode = #tpu.pipeline_mode<synchronous>, transform_indices = @transform_3, window_bounds = array<i64: 1, 384>}, {pipeline_mode = #tpu.pipeline_mode<synchronous>, transform_indices = @transform_4, window_bounds = array<i64: 128, 128>}, {pipeline_mode = #tpu.pipeline_mode<synchronous>, transform_indices = @transform_5, window_bounds = array<i64: 1, 128>}, {pipeline_mode = #tpu.pipeline_mode<synchronous>, transform_indices = @transform_6, window_bounds = array<i64: 1, 128>}, {pipeline_mode = #tpu.pipeline_mode<synchronous>, transform_indices = @transform_7, window_bounds = array<i64: 1, 128>}, {pipeline_mode = #tpu.pipeline_mode<synchronous>, transform_indices = @transform_8, window_bounds = array<i64: 128, 512>}, {pipeline_mode = #tpu.pipeline_mode<synchronous>, transform_indices = @transform_9, window_bounds = array<i64: 1, 512>}, {pipeline_mode = #tpu.pipeline_mode<synchronous>, transform_indices = @transform_10, window_bounds = array<i64: 512, 128>}, {pipeline_mode = #tpu.pipeline_mode<synchronous>, transform_indices = @transform_11, window_bounds = array<i64: 1, 128>}, {pipeline_mode = #tpu.pipeline_mode<synchronous>, transform_indices = @transform_12, window_bounds = array<i64: 1, 128>}, {pipeline_mode = #tpu.pipeline_mode<synchronous>, transform_indices = @transform_13, window_bounds = array<i64: 1, 128>}, {transform_indices = @transform_14, window_bounds = array<i64: 8, 128>}]} {
    %c0 = arith.constant 0 : index
    %c0_0 = arith.constant 0 : index
    %0 = vector.load %arg1[%c0, %c0_0] : memref<8x128xf32, #tpu.memory_space<vmem>>, vector<8x128xf32>
    %c0_1 = arith.constant 0 : index
    %c0_2 = arith.constant 0 : index
    %1 = vector.load %arg3[%c0_1, %c0_2] : memref<128x384xf32, #tpu.memory_space<vmem>>, vector<128x384xf32>
    %cst = arith.constant dense<0.000000e+00> : vector<8x384xf32>
    %2 = tpu.matmul %0, %1, %cst {dimension_numbers = #tpu.dot_dimension_numbers<[1], [0], [0], [1], [0, 0, 1, 1], [], []>} : vector<8x128xf32>, vector<128x384xf32>, vector<8x384xf32> -> vector<8x384xf32>
    %c0_3 = arith.constant 0 : index
    %c0_4 = arith.constant 0 : index
    %3 = vector.load %arg4[%c0_3, %c0_4] : memref<1x384xf32, #tpu.memory_space<vmem>>, vector<1x384xf32>
    %4 = vector.broadcast %3 : vector<1x384xf32> to vector<8x384xf32>
    %5 = arith.addf %2, %4 : vector<8x384xf32>
    %6 = vector.extract_strided_slice %5 {offsets = [0, 0], sizes = [8, 128], strides = [1, 1]} : vector<8x384xf32> to vector<8x128xf32>
    %7 = vector.extract_strided_slice %5 {offsets = [0, 128], sizes = [8, 128], strides = [1, 1]} : vector<8x384xf32> to vector<8x128xf32>
    %8 = vector.extract_strided_slice %5 {offsets = [0, 256], sizes = [8, 128], strides = [1, 1]} : vector<8x384xf32> to vector<8x128xf32>
    %c0_5 = arith.constant 0 : index
    %c0_6 = arith.constant 0 : index
    %c0_7 = arith.constant 0 : index
    %9 = vector.load %arg2[%c0_5, %c0_6, %c0_7] : memref<1x1x8xf32, #tpu.memory_space<vmem>>, vector<1x1x8xf32>
    %10 = vector.shape_cast %9 : vector<1x1x8xf32> to vector<1x8xf32>
    %11 = vector.extract_strided_slice %6 {offsets = [0, 0], sizes = [8, 32], strides = [1, 1]} : vector<8x128xf32> to vector<8x32xf32>
    %12 = vector.extract_strided_slice %7 {offsets = [0, 0], sizes = [8, 32], strides = [1, 1]} : vector<8x128xf32> to vector<8x32xf32>
    %13 = vector.extract_strided_slice %8 {offsets = [0, 0], sizes = [8, 32], strides = [1, 1]} : vector<8x128xf32> to vector<8x32xf32>
    %cst_8 = arith.constant dense<0.000000e+00> : vector<8x8xf32>
    %14 = tpu.matmul %11, %12, %cst_8 {dimension_numbers = #tpu.dot_dimension_numbers<[1], [1], [0], [0], [0, 0, 1, 0], [], []>} : vector<8x32xf32>, vector<8x32xf32>, vector<8x8xf32> -> vector<8x8xf32>
    %cst_9 = arith.constant 0.176776692 : f32
    %15 = vector.broadcast %cst_9 : f32 to vector<8x8xf32>
    %16 = arith.mulf %14, %15 : vector<8x8xf32>
    %17 = vector.broadcast %10 : vector<1x8xf32> to vector<8x8xf32>
    %18 = arith.addf %16, %17 : vector<8x8xf32>
    %cst_10 = arith.constant dense<0xFF800000> : vector<8xf32>
    %19 = vector.multi_reduction <maximumf>, %18, %cst_10 [1] : vector<8x8xf32> to vector<8xf32>
    %20 = vector.shape_cast %19 : vector<8xf32> to vector<8x1xf32>
    %21 = vector.broadcast %20 : vector<8x1xf32> to vector<8x8xf32>
    %22 = arith.subf %18, %21 : vector<8x8xf32>
    %23 = math.exp %22 : vector<8x8xf32>
    %cst_11 = arith.constant dense<0.000000e+00> : vector<8xf32>
    %24 = vector.multi_reduction <add>, %23, %cst_11 [1] : vector<8x8xf32> to vector<8xf32>
    %25 = vector.shape_cast %24 : vector<8xf32> to vector<8x1xf32>
    %26 = vector.broadcast %25 : vector<8x1xf32> to vector<8x8xf32>
    %27 = arith.divf %23, %26 : vector<8x8xf32>
    %cst_12 = arith.constant dense<0.000000e+00> : vector<8x32xf32>
    %28 = tpu.matmul %27, %13, %cst_12 {dimension_numbers = #tpu.dot_dimension_numbers<[1], [0], [0], [1], [0, 0, 1, 1], [], []>} : vector<8x8xf32>, vector<8x32xf32>, vector<8x32xf32> -> vector<8x32xf32>
    %c0_13 = arith.constant 0 : index
    %c0_14 = arith.constant 0 : index
    %29 = vector.load %arg16[%c0_13, %c0_14] : memref<8x128xf32, #tpu.memory_space<vmem>>, vector<8x32xf32>
    tpu.vector_store %arg16[%c0_13, %c0_14], %28 {strides = array<i32>} : memref<8x128xf32, #tpu.memory_space<vmem>>, vector<8x32xf32>,
    %30 = vector.extract_strided_slice %6 {offsets = [0, 32], sizes = [8, 32], strides = [1, 1]} : vector<8x128xf32> to vector<8x32xf32>
    %31 = vector.extract_strided_slice %7 {offsets = [0, 32], sizes = [8, 32], strides = [1, 1]} : vector<8x128xf32> to vector<8x32xf32>
    %32 = vector.extract_strided_slice %8 {offsets = [0, 32], sizes = [8, 32], strides = [1, 1]} : vector<8x128xf32> to vector<8x32xf32>
    %cst_15 = arith.constant dense<0.000000e+00> : vector<8x8xf32>
    %33 = tpu.matmul %30, %31, %cst_15 {dimension_numbers = #tpu.dot_dimension_numbers<[1], [1], [0], [0], [0, 0, 1, 0], [], []>} : vector<8x32xf32>, vector<8x32xf32>, vector<8x8xf32> -> vector<8x8xf32>
    %cst_16 = arith.constant 0.176776692 : f32
    %34 = vector.broadcast %cst_16 : f32 to vector<8x8xf32>
    %35 = arith.mulf %33, %34 : vector<8x8xf32>
    %36 = vector.broadcast %10 : vector<1x8xf32> to vector<8x8xf32>
    %37 = arith.addf %35, %36 : vector<8x8xf32>
    %cst_17 = arith.constant dense<0xFF800000> : vector<8xf32>
    %38 = vector.multi_reduction <maximumf>, %37, %cst_17 [1] : vector<8x8xf32> to vector<8xf32>
    %39 = vector.shape_cast %38 : vector<8xf32> to vector<8x1xf32>
    %40 = vector.broadcast %39 : vector<8x1xf32> to vector<8x8xf32>
    %41 = arith.subf %37, %40 : vector<8x8xf32>
    %42 = math.exp %41 : vector<8x8xf32>
    %cst_18 = arith.constant dense<0.000000e+00> : vector<8xf32>
    %43 = vector.multi_reduction <add>, %42, %cst_18 [1] : vector<8x8xf32> to vector<8xf32>
    %44 = vector.shape_cast %43 : vector<8xf32> to vector<8x1xf32>
    %45 = vector.broadcast %44 : vector<8x1xf32> to vector<8x8xf32>
    %46 = arith.divf %42, %45 : vector<8x8xf32>
    %cst_19 = arith.constant dense<0.000000e+00> : vector<8x32xf32>
    %47 = tpu.matmul %46, %32, %cst_19 {dimension_numbers = #tpu.dot_dimension_numbers<[1], [0], [0], [1], [0, 0, 1, 1], [], []>} : vector<8x8xf32>, vector<8x32xf32>, vector<8x32xf32> -> vector<8x32xf32>
    %c0_20 = arith.constant 0 : index
    %c32 = arith.constant 32 : index
    %48 = vector.load %arg16[%c0_20, %c32] : memref<8x128xf32, #tpu.memory_space<vmem>>, vector<8x32xf32>
    tpu.vector_store %arg16[%c0_20, %c32], %47 {strides = array<i32>} : memref<8x128xf32, #tpu.memory_space<vmem>>, vector<8x32xf32>,
    %49 = vector.extract_strided_slice %6 {offsets = [0, 64], sizes = [8, 32], strides = [1, 1]} : vector<8x128xf32> to vector<8x32xf32>
    %50 = vector.extract_strided_slice %7 {offsets = [0, 64], sizes = [8, 32], strides = [1, 1]} : vector<8x128xf32> to vector<8x32xf32>
    %51 = vector.extract_strided_slice %8 {offsets = [0, 64], sizes = [8, 32], strides = [1, 1]} : vector<8x128xf32> to vector<8x32xf32>
    %cst_21 = arith.constant dense<0.000000e+00> : vector<8x8xf32>
    %52 = tpu.matmul %49, %50, %cst_21 {dimension_numbers = #tpu.dot_dimension_numbers<[1], [1], [0], [0], [0, 0, 1, 0], [], []>} : vector<8x32xf32>, vector<8x32xf32>, vector<8x8xf32> -> vector<8x8xf32>
    %cst_22 = arith.constant 0.176776692 : f32
    %53 = vector.broadcast %cst_22 : f32 to vector<8x8xf32>
    %54 = arith.mulf %52, %53 : vector<8x8xf32>
    %55 = vector.broadcast %10 : vector<1x8xf32> to vector<8x8xf32>
    %56 = arith.addf %54, %55 : vector<8x8xf32>
    %cst_23 = arith.constant dense<0xFF800000> : vector<8xf32>
    %57 = vector.multi_reduction <maximumf>, %56, %cst_23 [1] : vector<8x8xf32> to vector<8xf32>
    %58 = vector.shape_cast %57 : vector<8xf32> to vector<8x1xf32>
    %59 = vector.broadcast %58 : vector<8x1xf32> to vector<8x8xf32>
    %60 = arith.subf %56, %59 : vector<8x8xf32>
    %61 = math.exp %60 : vector<8x8xf32>
    %cst_24 = arith.constant dense<0.000000e+00> : vector<8xf32>
    %62 = vector.multi_reduction <add>, %61, %cst_24 [1] : vector<8x8xf32> to vector<8xf32>
    %63 = vector.shape_cast %62 : vector<8xf32> to vector<8x1xf32>
    %64 = vector.broadcast %63 : vector<8x1xf32> to vector<8x8xf32>
    %65 = arith.divf %61, %64 : vector<8x8xf32>
    %cst_25 = arith.constant dense<0.000000e+00> : vector<8x32xf32>
    %66 = tpu.matmul %65, %51, %cst_25 {dimension_numbers = #tpu.dot_dimension_numbers<[1], [0], [0], [1], [0, 0, 1, 1], [], []>} : vector<8x8xf32>, vector<8x32xf32>, vector<8x32xf32> -> vector<8x32xf32>
    %c0_26 = arith.constant 0 : index
    %c64 = arith.constant 64 : index
    %67 = vector.load %arg16[%c0_26, %c64] : memref<8x128xf32, #tpu.memory_space<vmem>>, vector<8x32xf32>
    tpu.vector_store %arg16[%c0_26, %c64], %66 {strides = array<i32>} : memref<8x128xf32, #tpu.memory_space<vmem>>, vector<8x32xf32>,
    %68 = vector.extract_strided_slice %6 {offsets = [0, 96], sizes = [8, 32], strides = [1, 1]} : vector<8x128xf32> to vector<8x32xf32>
    %69 = vector.extract_strided_slice %7 {offsets = [0, 96], sizes = [8, 32], strides = [1, 1]} : vector<8x128xf32> to vector<8x32xf32>
    %70 = vector.extract_strided_slice %8 {offsets = [0, 96], sizes = [8, 32], strides = [1, 1]} : vector<8x128xf32> to vector<8x32xf32>
    %cst_27 = arith.constant dense<0.000000e+00> : vector<8x8xf32>
    %71 = tpu.matmul %68, %69, %cst_27 {dimension_numbers = #tpu.dot_dimension_numbers<[1], [1], [0], [0], [0, 0, 1, 0], [], []>} : vector<8x32xf32>, vector<8x32xf32>, vector<8x8xf32> -> vector<8x8xf32>
    %cst_28 = arith.constant 0.176776692 : f32
    %72 = vector.broadcast %cst_28 : f32 to vector<8x8xf32>
    %73 = arith.mulf %71, %72 : vector<8x8xf32>
    %74 = vector.broadcast %10 : vector<1x8xf32> to vector<8x8xf32>
    %75 = arith.addf %73, %74 : vector<8x8xf32>
    %cst_29 = arith.constant dense<0xFF800000> : vector<8xf32>
    %76 = vector.multi_reduction <maximumf>, %75, %cst_29 [1] : vector<8x8xf32> to vector<8xf32>
    %77 = vector.shape_cast %76 : vector<8xf32> to vector<8x1xf32>
    %78 = vector.broadcast %77 : vector<8x1xf32> to vector<8x8xf32>
    %79 = arith.subf %75, %78 : vector<8x8xf32>
    %80 = math.exp %79 : vector<8x8xf32>
    %cst_30 = arith.constant dense<0.000000e+00> : vector<8xf32>
    %81 = vector.multi_reduction <add>, %80, %cst_30 [1] : vector<8x8xf32> to vector<8xf32>
    %82 = vector.shape_cast %81 : vector<8xf32> to vector<8x1xf32>
    %83 = vector.broadcast %82 : vector<8x1xf32> to vector<8x8xf32>
    %84 = arith.divf %80, %83 : vector<8x8xf32>
    %cst_31 = arith.constant dense<0.000000e+00> : vector<8x32xf32>
    %85 = tpu.matmul %84, %70, %cst_31 {dimension_numbers = #tpu.dot_dimension_numbers<[1], [0], [0], [1], [0, 0, 1, 1], [], []>} : vector<8x8xf32>, vector<8x32xf32>, vector<8x32xf32> -> vector<8x32xf32>
    %c0_32 = arith.constant 0 : index
    %c96 = arith.constant 96 : index
    %86 = vector.load %arg16[%c0_32, %c96] : memref<8x128xf32, #tpu.memory_space<vmem>>, vector<8x32xf32>
    tpu.vector_store %arg16[%c0_32, %c96], %85 {strides = array<i32>} : memref<8x128xf32, #tpu.memory_space<vmem>>, vector<8x32xf32>,
    %c0_33 = arith.constant 0 : index
    %c0_34 = arith.constant 0 : index
    %87 = vector.load %arg16[%c0_33, %c0_34] : memref<8x128xf32, #tpu.memory_space<vmem>>, vector<8x128xf32>
    %c0_35 = arith.constant 0 : index
    %c0_36 = arith.constant 0 : index
    %88 = vector.load %arg5[%c0_35, %c0_36] : memref<128x128xf32, #tpu.memory_space<vmem>>, vector<128x128xf32>
    %cst_37 = arith.constant dense<0.000000e+00> : vector<8x128xf32>
    %89 = tpu.matmul %87, %88, %cst_37 {dimension_numbers = #tpu.dot_dimension_numbers<[1], [0], [0], [1], [0, 0, 1, 1], [], []>} : vector<8x128xf32>, vector<128x128xf32>, vector<8x128xf32> -> vector<8x128xf32>
    %c0_38 = arith.constant 0 : index
    %c0_39 = arith.constant 0 : index
    %90 = vector.load %arg6[%c0_38, %c0_39] : memref<1x128xf32, #tpu.memory_space<vmem>>, vector<1x128xf32>
    %91 = vector.broadcast %90 : vector<1x128xf32> to vector<8x128xf32>
    %92 = arith.addf %89, %91 : vector<8x128xf32>
    %93 = arith.addf %92, %0 : vector<8x128xf32>
    %c0_40 = arith.constant 0 : index
    %c0_41 = arith.constant 0 : index
    %94 = vector.load %arg7[%c0_40, %c0_41] : memref<1x128xf32, #tpu.memory_space<vmem>>, vector<1x128xf32>
    %c0_42 = arith.constant 0 : index
    %c0_43 = arith.constant 0 : index
    %95 = vector.load %arg8[%c0_42, %c0_43] : memref<1x128xf32, #tpu.memory_space<vmem>>, vector<1x128xf32>
    %cst_44 = arith.constant dense<0.000000e+00> : vector<8xf32>
    %96 = vector.multi_reduction <add>, %93, %cst_44 [1] : vector<8x128xf32> to vector<8xf32>
    %97 = vector.shape_cast %96 : vector<8xf32> to vector<8x1xf32>
    %cst_45 = arith.constant 1.280000e+02 : f32
    %98 = vector.broadcast %cst_45 : f32 to vector<8x1xf32>
    %99 = arith.divf %97, %98 : vector<8x1xf32>
    %100 = vector.broadcast %99 : vector<8x1xf32> to vector<8x128xf32>
    %101 = arith.subf %93, %100 : vector<8x128xf32>
    %102 = arith.mulf %101, %101 : vector<8x128xf32>
    %cst_46 = arith.constant dense<0.000000e+00> : vector<8xf32>
    %103 = vector.multi_reduction <add>, %102, %cst_46 [1] : vector<8x128xf32> to vector<8xf32>
    %104 = vector.shape_cast %103 : vector<8xf32> to vector<8x1xf32>
    %cst_47 = arith.constant 1.280000e+02 : f32
    %105 = vector.broadcast %cst_47 : f32 to vector<8x1xf32>
    %106 = arith.divf %104, %105 : vector<8x1xf32>
    %cst_48 = arith.constant 9.99999996E-13 : f32
    %107 = vector.broadcast %cst_48 : f32 to vector<8x1xf32>
    %108 = arith.addf %106, %107 : vector<8x1xf32>
    %109 = math.rsqrt %108 : vector<8x1xf32>
    %110 = vector.broadcast %109 : vector<8x1xf32> to vector<8x128xf32>
    %111 = arith.mulf %101, %110 : vector<8x128xf32>
    %112 = vector.broadcast %94 : vector<1x128xf32> to vector<8x128xf32>
    %113 = arith.mulf %111, %112 : vector<8x128xf32>
    %114 = vector.broadcast %95 : vector<1x128xf32> to vector<8x128xf32>
    %115 = arith.addf %113, %114 : vector<8x128xf32>
    %c0_49 = arith.constant 0 : index
    %c0_50 = arith.constant 0 : index
    %116 = vector.load %arg9[%c0_49, %c0_50] : memref<128x512xf32, #tpu.memory_space<vmem>>, vector<128x512xf32>
    %cst_51 = arith.constant dense<0.000000e+00> : vector<8x512xf32>
    %117 = tpu.matmul %115, %116, %cst_51 {dimension_numbers = #tpu.dot_dimension_numbers<[1], [0], [0], [1], [0, 0, 1, 1], [], []>} : vector<8x128xf32>, vector<128x512xf32>, vector<8x512xf32> -> vector<8x512xf32>
    %c0_52 = arith.constant 0 : index
    %c0_53 = arith.constant 0 : index
    %118 = vector.load %arg10[%c0_52, %c0_53] : memref<1x512xf32, #tpu.memory_space<vmem>>, vector<1x512xf32>
    %119 = vector.broadcast %118 : vector<1x512xf32> to vector<8x512xf32>
    %120 = arith.addf %117, %119 : vector<8x512xf32>
    %cst_54 = arith.constant 5.000000e-01 : f32
    %121 = vector.broadcast %cst_54 : f32 to vector<8x512xf32>
    %122 = arith.mulf %121, %120 : vector<8x512xf32>
    %cst_55 = arith.constant 4.471500e-02 : f32
    %123 = vector.broadcast %cst_55 : f32 to vector<8x512xf32>
    %124 = arith.mulf %123, %120 : vector<8x512xf32>
    %125 = arith.mulf %124, %120 : vector<8x512xf32>
    %126 = arith.mulf %125, %120 : vector<8x512xf32>
    %127 = arith.addf %120, %126 : vector<8x512xf32>
    %cst_56 = arith.constant 0.797884583 : f32
    %128 = vector.broadcast %cst_56 : f32 to vector<8x512xf32>
    %129 = arith.mulf %128, %127 : vector<8x512xf32>
    %130 = math.tanh %129 : vector<8x512xf32>
    %cst_57 = arith.constant 1.000000e+00 : f32
    %131 = vector.broadcast %cst_57 : f32 to vector<8x512xf32>
    %132 = arith.addf %131, %130 : vector<8x512xf32>
    %133 = arith.mulf %122, %132 : vector<8x512xf32>
    %c0_58 = arith.constant 0 : index
    %c0_59 = arith.constant 0 : index
    %134 = vector.load %arg11[%c0_58, %c0_59] : memref<512x128xf32, #tpu.memory_space<vmem>>, vector<512x128xf32>
    %cst_60 = arith.constant dense<0.000000e+00> : vector<8x128xf32>
    %135 = tpu.matmul %133, %134, %cst_60 {dimension_numbers = #tpu.dot_dimension_numbers<[1], [0], [0], [1], [0, 0, 1, 1], [], []>} : vector<8x512xf32>, vector<512x128xf32>, vector<8x128xf32> -> vector<8x128xf32>
    %c0_61 = arith.constant 0 : index
    %c0_62 = arith.constant 0 : index
    %136 = vector.load %arg12[%c0_61, %c0_62] : memref<1x128xf32, #tpu.memory_space<vmem>>, vector<1x128xf32>
    %137 = vector.broadcast %136 : vector<1x128xf32> to vector<8x128xf32>
    %138 = arith.addf %135, %137 : vector<8x128xf32>
    %139 = arith.addf %138, %115 : vector<8x128xf32>
    %c0_63 = arith.constant 0 : index
    %c0_64 = arith.constant 0 : index
    %140 = vector.load %arg13[%c0_63, %c0_64] : memref<1x128xf32, #tpu.memory_space<vmem>>, vector<1x128xf32>
    %c0_65 = arith.constant 0 : index
    %c0_66 = arith.constant 0 : index
    %141 = vector.load %arg14[%c0_65, %c0_66] : memref<1x128xf32, #tpu.memory_space<vmem>>, vector<1x128xf32>
    %cst_67 = arith.constant dense<0.000000e+00> : vector<8xf32>
    %142 = vector.multi_reduction <add>, %139, %cst_67 [1] : vector<8x128xf32> to vector<8xf32>
    %143 = vector.shape_cast %142 : vector<8xf32> to vector<8x1xf32>
    %cst_68 = arith.constant 1.280000e+02 : f32
    %144 = vector.broadcast %cst_68 : f32 to vector<8x1xf32>
    %145 = arith.divf %143, %144 : vector<8x1xf32>
    %146 = vector.broadcast %145 : vector<8x1xf32> to vector<8x128xf32>
    %147 = arith.subf %139, %146 : vector<8x128xf32>
    %148 = arith.mulf %147, %147 : vector<8x128xf32>
    %cst_69 = arith.constant dense<0.000000e+00> : vector<8xf32>
    %149 = vector.multi_reduction <add>, %148, %cst_69 [1] : vector<8x128xf32> to vector<8xf32>
    %150 = vector.shape_cast %149 : vector<8xf32> to vector<8x1xf32>
    %cst_70 = arith.constant 1.280000e+02 : f32
    %151 = vector.broadcast %cst_70 : f32 to vector<8x1xf32>
    %152 = arith.divf %150, %151 : vector<8x1xf32>
    %cst_71 = arith.constant 9.99999996E-13 : f32
    %153 = vector.broadcast %cst_71 : f32 to vector<8x1xf32>
    %154 = arith.addf %152, %153 : vector<8x1xf32>
    %155 = math.rsqrt %154 : vector<8x1xf32>
    %156 = vector.broadcast %155 : vector<8x1xf32> to vector<8x128xf32>
    %157 = arith.mulf %147, %156 : vector<8x128xf32>
    %158 = vector.broadcast %140 : vector<1x128xf32> to vector<8x128xf32>
    %159 = arith.mulf %157, %158 : vector<8x128xf32>
    %160 = vector.broadcast %141 : vector<1x128xf32> to vector<8x128xf32>
    %161 = arith.addf %159, %160 : vector<8x128xf32>
    %c0_72 = arith.constant 0 : index
    %c0_73 = arith.constant 0 : index
    %162 = vector.load %arg15[%c0_72, %c0_73] : memref<8x128xf32, #tpu.memory_space<vmem>>, vector<8x128xf32>
    tpu.vector_store %arg15[%c0_72, %c0_73], %161 {strides = array<i32>} : memref<8x128xf32, #tpu.memory_space<vmem>>, vector<8x128xf32>,
    return
  }
  func.func @transform_0(%arg0: i32) -> (i32, i32) {
    %c0_i32 = arith.constant 0 : i32
    %c0_i32_0 = arith.constant 0 : i32
    return %arg0, %c0_i32 : i32, i32
  }
  func.func @transform_1(%arg0: i32) -> (i32, i32, i32) {
    %c0_i32 = arith.constant 0 : i32
    %c0_i32_0 = arith.constant 0 : i32
    %c0_i32_1 = arith.constant 0 : i32
    return %arg0, %c0_i32, %c0_i32_0 : i32, i32, i32
  }
  func.func @transform_2(%arg0: i32) -> (i32, i32) {
    %c0_i32 = arith.constant 0 : i32
    %c0_i32_0 = arith.constant 0 : i32
    %c0_i32_1 = arith.constant 0 : i32
    return %c0_i32, %c0_i32_0 : i32, i32
  }
  func.func @transform_3(%arg0: i32) -> (i32, i32) {
    %c0_i32 = arith.constant 0 : i32
    %c0_i32_0 = arith.constant 0 : i32
    %c0_i32_1 = arith.constant 0 : i32
    return %c0_i32, %c0_i32_0 : i32, i32
  }
  func.func @transform_4(%arg0: i32) -> (i32, i32) {
    %c0_i32 = arith.constant 0 : i32
    %c0_i32_0 = arith.constant 0 : i32
    %c0_i32_1 = arith.constant 0 : i32
    return %c0_i32, %c0_i32_0 : i32, i32
  }
  func.func @transform_5(%arg0: i32) -> (i32, i32) {
    %c0_i32 = arith.constant 0 : i32
    %c0_i32_0 = arith.constant 0 : i32
    %c0_i32_1 = arith.constant 0 : i32
    return %c0_i32, %c0_i32_0 : i32, i32
  }
  func.func @transform_6(%arg0: i32) -> (i32, i32) {
    %c0_i32 = arith.constant 0 : i32
    %c0_i32_0 = arith.constant 0 : i32
    %c0_i32_1 = arith.constant 0 : i32
    return %c0_i32, %c0_i32_0 : i32, i32
  }
  func.func @transform_7(%arg0: i32) -> (i32, i32) {
    %c0_i32 = arith.constant 0 : i32
    %c0_i32_0 = arith.constant 0 : i32
    %c0_i32_1 = arith.constant 0 : i32
    return %c0_i32, %c0_i32_0 : i32, i32
  }
  func.func @transform_8(%arg0: i32) -> (i32, i32) {
    %c0_i32 = arith.constant 0 : i32
    %c0_i32_0 = arith.constant 0 : i32
    %c0_i32_1 = arith.constant 0 : i32
    return %c0_i32, %c0_i32_0 : i32, i32
  }
  func.func @transform_9(%arg0: i32) -> (i32, i32) {
    %c0_i32 = arith.constant 0 : i32
    %c0_i32_0 = arith.constant 0 : i32
    %c0_i32_1 = arith.constant 0 : i32
    return %c0_i32, %c0_i32_0 : i32, i32
  }
  func.func @transform_10(%arg0: i32) -> (i32, i32) {
    %c0_i32 = arith.constant 0 : i32
    %c0_i32_0 = arith.constant 0 : i32
    %c0_i32_1 = arith.constant 0 : i32
    return %c0_i32, %c0_i32_0 : i32, i32
  }
  func.func @transform_11(%arg0: i32) -> (i32, i32) {
    %c0_i32 = arith.constant 0 : i32
    %c0_i32_0 = arith.constant 0 : i32
    %c0_i32_1 = arith.constant 0 : i32
    return %c0_i32, %c0_i32_0 : i32, i32
  }
  func.func @transform_12(%arg0: i32) -> (i32, i32) {
    %c0_i32 = arith.constant 0 : i32
    %c0_i32_0 = arith.constant 0 : i32
    %c0_i32_1 = arith.constant 0 : i32
    return %c0_i32, %c0_i32_0 : i32, i32
  }
  func.func @transform_13(%arg0: i32) -> (i32, i32) {
    %c0_i32 = arith.constant 0 : i32
    %c0_i32_0 = arith.constant 0 : i32
    %c0_i32_1 = arith.constant 0 : i32
    return %c0_i32, %c0_i32_0 : i32, i32
  }
  func.func @transform_14(%arg0: i32) -> (i32, i32) {
    %c0_i32 = arith.constant 0 : i32
    %c0_i32_0 = arith.constant 0 : i32
    return %arg0, %c0_i32 : i32, i32
  }
}

module attributes {stable_mosaic.version = 11 : i64} {
  func.func @_encoder_layer_kernel(%arg0: i32, %arg1: memref<8x128xf32, #tpu.memory_space<vmem>>, %arg2: memref<1x1x8xf32, #tpu.memory_space<vmem>>, %arg3: memref<128x384xf32, #tpu.memory_space<vmem>>, %arg4: memref<1x384xf32, #tpu.memory_space<vmem>>, %arg5: memref<128x128xf32, #tpu.memory_space<vmem>>, %arg6: memref<1x128xf32, #tpu.memory_space<vmem>>, %arg7: memref<1x128xf32, #tpu.memory_space<vmem>>, %arg8: memref<1x128xf32, #tpu.memory_space<vmem>>, %arg9: memref<128x512xf32, #tpu.memory_space<vmem>>, %arg10: memref<1x512xf32, #tpu.memory_space<vmem>>, %arg11: memref<512x128xf32, #tpu.memory_space<vmem>>, %arg12: memref<1x128xf32, #tpu.memory_space<vmem>>, %arg13: memref<1x128xf32, #tpu.memory_space<vmem>>, %arg14: memref<1x128xf32, #tpu.memory_space<vmem>>, %arg15: memref<8x128xf32, #tpu.memory_space<vmem>>, %arg16: memref<8x128xf32, #tpu.memory_space<vmem>>) attributes {dimension_semantics = [#tpu.dimension_semantics<parallel>], iteration_bounds = array<i64: 2>, scalar_prefetch = 0 : i64, scratch_operands = 1 : i64, tpu.core_type = #tpu.core_type<tc>, window_params = [{transform_indices = @transform_0, window_bounds = array<i64: 8, 128>}, {transform_indices = @transform_1, window_bounds = array<i64: 1, 1, 8>}, {pipeline_mode = #tpu.pipeline_mode<synchronous>, transform_indices = @transform_2, window_bounds = array<i64: 128, 384>}, {pipeline_mode = #tpu.pipeline_mode<synchronous>, transform_indices = @transform_3, window_bounds = array<i64: 1, 384>}, {pipeline_mode = #tpu.pipeline_mode<synchronous>, transform_indices = @transform_4, window_bounds = array<i64: 128, 128>}, {pipeline_mode = #tpu.pipeline_mode<synchronous>, transform_indices = @transform_5, window_bounds = array<i64: 1, 128>}, {pipeline_mode = #tpu.pipeline_mode<synchronous>, transform_indices = @transform_6, window_bounds = array<i64: 1, 128>}, {pipeline_mode = #tpu.pipeline_mode<synchronous>, transform_indices = @transform_7, window_bounds = array<i64: 1, 128>}, {pipeline_mode = #tpu.pipeline_mode<synchronous>, transform_indices = @transform_8, window_bounds = array<i64: 128, 512>}, {pipeline_mode = #tpu.pipeline_mode<synchronous>, transform_indices = @transform_9, window_bounds = array<i64: 1, 512>}, {pipeline_mode = #tpu.pipeline_mode<synchronous>, transform_indices = @transform_10, window_bounds = array<i64: 512, 128>}, {pipeline_mode = #tpu.pipeline_mode<synchronous>, transform_indices = @transform_11, window_bounds = array<i64: 1, 128>}, {pipeline_mode = #tpu.pipeline_mode<synchronous>, transform_indices = @transform_12, window_bounds = array<i64: 1, 128>}, {pipeline_mode = #tpu.pipeline_mode<synchronous>, transform_indices = @transform_13, window_bounds = array<i64: 1, 128>}, {transform_indices = @transform_14, window_bounds = array<i64: 8, 128>}]} {
    %c0 = arith.constant 0 : index
    %c0_0 = arith.constant 0 : index
    %0 = vector.load %arg1[%c0, %c0_0] : memref<8x128xf32, #tpu.memory_space<vmem>>, vector<8x128xf32>
    %c0_1 = arith.constant 0 : index
    %c0_2 = arith.constant 0 : index
    %1 = vector.load %arg3[%c0_1, %c0_2] : memref<128x384xf32, #tpu.memory_space<vmem>>, vector<128x384xf32>
    %cst = arith.constant dense<0.000000e+00> : vector<8x384xf32>
    %2 = tpu.matmul %0, %1, %cst {dimension_numbers = #tpu.dot_dimension_numbers<[1], [0], [0], [1], [0, 0, 1, 1], [], []>} : vector<8x128xf32>, vector<128x384xf32>, vector<8x384xf32> -> vector<8x384xf32>
    %c0_3 = arith.constant 0 : index
    %c0_4 = arith.constant 0 : index
    %3 = vector.load %arg4[%c0_3, %c0_4] : memref<1x384xf32, #tpu.memory_space<vmem>>, vector<1x384xf32>
    %4 = vector.broadcast %3 : vector<1x384xf32> to vector<8x384xf32>
    %5 = arith.addf %2, %4 : vector<8x384xf32>
    %6 = vector.extract_strided_slice %5 {offsets = [0, 0], sizes = [8, 128], strides = [1, 1]} : vector<8x384xf32> to vector<8x128xf32>
    %7 = vector.extract_strided_slice %5 {offsets = [0, 128], sizes = [8, 128], strides = [1, 1]} : vector<8x384xf32> to vector<8x128xf32>
    %8 = vector.extract_strided_slice %5 {offsets = [0, 256], sizes = [8, 128], strides = [1, 1]} : vector<8x384xf32> to vector<8x128xf32>
    %c0_5 = arith.constant 0 : index
    %c0_6 = arith.constant 0 : index
    %c0_7 = arith.constant 0 : index
    %9 = vector.load %arg2[%c0_5, %c0_6, %c0_7] : memref<1x1x8xf32, #tpu.memory_space<vmem>>, vector<1x1x8xf32>
    %10 = vector.shape_cast %9 : vector<1x1x8xf32> to vector<1x8xf32>
    %11 = vector.extract_strided_slice %6 {offsets = [0, 0], sizes = [8, 32], strides = [1, 1]} : vector<8x128xf32> to vector<8x32xf32>
    %12 = vector.extract_strided_slice %7 {offsets = [0, 0], sizes = [8, 32], strides = [1, 1]} : vector<8x128xf32> to vector<8x32xf32>
    %13 = vector.extract_strided_slice %8 {offsets = [0, 0], sizes = [8, 32], strides = [1, 1]} : vector<8x128xf32> to vector<8x32xf32>
    %cst_8 = arith.constant dense<0.000000e+00> : vector<8x8xf32>
    %14 = tpu.matmul %11, %12, %cst_8 {dimension_numbers = #tpu.dot_dimension_numbers<[1], [1], [0], [0], [0, 0, 1, 0], [], []>} : vector<8x32xf32>, vector<8x32xf32>, vector<8x8xf32> -> vector<8x8xf32>
    %cst_9 = arith.constant 0.176776692 : f32
    %15 = vector.broadcast %cst_9 : f32 to vector<8x8xf32>
    %16 = arith.mulf %14, %15 : vector<8x8xf32>
    %17 = vector.broadcast %10 : vector<1x8xf32> to vector<8x8xf32>
    %18 = arith.addf %16, %17 : vector<8x8xf32>
    %cst_10 = arith.constant dense<0xFF800000> : vector<8xf32>
    %19 = vector.multi_reduction <maximumf>, %18, %cst_10 [1] : vector<8x8xf32> to vector<8xf32>
    %20 = vector.shape_cast %19 : vector<8xf32> to vector<8x1xf32>
    %21 = vector.broadcast %20 : vector<8x1xf32> to vector<8x8xf32>
    %22 = arith.subf %18, %21 : vector<8x8xf32>
    %23 = math.exp %22 : vector<8x8xf32>
    %cst_11 = arith.constant dense<0.000000e+00> : vector<8xf32>
    %24 = vector.multi_reduction <add>, %23, %cst_11 [1] : vector<8x8xf32> to vector<8xf32>
    %25 = vector.shape_cast %24 : vector<8xf32> to vector<8x1xf32>
    %26 = vector.broadcast %25 : vector<8x1xf32> to vector<8x8xf32>
    %27 = arith.divf %23, %26 : vector<8x8xf32>
    %cst_12 = arith.constant dense<0.000000e+00> : vector<8x32xf32>
    %28 = tpu.matmul %27, %13, %cst_12 {dimension_numbers = #tpu.dot_dimension_numbers<[1], [0], [0], [1], [0, 0, 1, 1], [], []>} : vector<8x8xf32>, vector<8x32xf32>, vector<8x32xf32> -> vector<8x32xf32>
    %c0_13 = arith.constant 0 : index
    %c0_14 = arith.constant 0 : index
    %29 = vector.load %arg16[%c0_13, %c0_14] : memref<8x128xf32, #tpu.memory_space<vmem>>, vector<8x32xf32>
    tpu.vector_store %arg16[%c0_13, %c0_14], %28 {strides = array<i32>} : memref<8x128xf32, #tpu.memory_space<vmem>>, vector<8x32xf32>,
    %30 = vector.extract_strided_slice %6 {offsets = [0, 32], sizes = [8, 32], strides = [1, 1]} : vector<8x128xf32> to vector<8x32xf32>
    %31 = vector.extract_strided_slice %7 {offsets = [0, 32], sizes = [8, 32], strides = [1, 1]} : vector<8x128xf32> to vector<8x32xf32>
    %32 = vector.extract_strided_slice %8 {offsets = [0, 32], sizes = [8, 32], strides = [1, 1]} : vector<8x128xf32> to vector<8x32xf32>
    %cst_15 = arith.constant dense<0.000000e+00> : vector<8x8xf32>
    %33 = tpu.matmul %30, %31, %cst_15 {dimension_numbers = #tpu.dot_dimension_numbers<[1], [1], [0], [0], [0, 0, 1, 0], [], []>} : vector<8x32xf32>, vector<8x32xf32>, vector<8x8xf32> -> vector<8x8xf32>
    %cst_16 = arith.constant 0.176776692 : f32
    %34 = vector.broadcast %cst_16 : f32 to vector<8x8xf32>
    %35 = arith.mulf %33, %34 : vector<8x8xf32>
    %36 = vector.broadcast %10 : vector<1x8xf32> to vector<8x8xf32>
    %37 = arith.addf %35, %36 : vector<8x8xf32>
    %cst_17 = arith.constant dense<0xFF800000> : vector<8xf32>
    %38 = vector.multi_reduction <maximumf>, %37, %cst_17 [1] : vector<8x8xf32> to vector<8xf32>
    %39 = vector.shape_cast %38 : vector<8xf32> to vector<8x1xf32>
    %40 = vector.broadcast %39 : vector<8x1xf32> to vector<8x8xf32>
    %41 = arith.subf %37, %40 : vector<8x8xf32>
    %42 = math.exp %41 : vector<8x8xf32>
    %cst_18 = arith.constant dense<0.000000e+00> : vector<8xf32>
    %43 = vector.multi_reduction <add>, %42, %cst_18 [1] : vector<8x8xf32> to vector<8xf32>
    %44 = vector.shape_cast %43 : vector<8xf32> to vector<8x1xf32>
    %45 = vector.broadcast %44 : vector<8x1xf32> to vector<8x8xf32>
    %46 = arith.divf %42, %45 : vector<8x8xf32>
    %cst_19 = arith.constant dense<0.000000e+00> : vector<8x32xf32>
    %47 = tpu.matmul %46, %32, %cst_19 {dimension_numbers = #tpu.dot_dimension_numbers<[1], [0], [0], [1], [0, 0, 1, 1], [], []>} : vector<8x8xf32>, vector<8x32xf32>, vector<8x32xf32> -> vector<8x32xf32>
    %c0_20 = arith.constant 0 : index
    %c32 = arith.constant 32 : index
    %48 = vector.load %arg16[%c0_20, %c32] : memref<8x128xf32, #tpu.memory_space<vmem>>, vector<8x32xf32>
    tpu.vector_store %arg16[%c0_20, %c32], %47 {strides = array<i32>} : memref<8x128xf32, #tpu.memory_space<vmem>>, vector<8x32xf32>,
    %49 = vector.extract_strided_slice %6 {offsets = [0, 64], sizes = [8, 32], strides = [1, 1]} : vector<8x128xf32> to vector<8x32xf32>
    %50 = vector.extract_strided_slice %7 {offsets = [0, 64], sizes = [8, 32], strides = [1, 1]} : vector<8x128xf32> to vector<8x32xf32>
    %51 = vector.extract_strided_slice %8 {offsets = [0, 64], sizes = [8, 32], strides = [1, 1]} : vector<8x128xf32> to vector<8x32xf32>
    %cst_21 = arith.constant dense<0.000000e+00> : vector<8x8xf32>
    %52 = tpu.matmul %49, %50, %cst_21 {dimension_numbers = #tpu.dot_dimension_numbers<[1], [1], [0], [0], [0, 0, 1, 0], [], []>} : vector<8x32xf32>, vector<8x32xf32>, vector<8x8xf32> -> vector<8x8xf32>
    %cst_22 = arith.constant 0.176776692 : f32
    %53 = vector.broadcast %cst_22 : f32 to vector<8x8xf32>
    %54 = arith.mulf %52, %53 : vector<8x8xf32>
    %55 = vector.broadcast %10 : vector<1x8xf32> to vector<8x8xf32>
    %56 = arith.addf %54, %55 : vector<8x8xf32>
    %cst_23 = arith.constant dense<0xFF800000> : vector<8xf32>
    %57 = vector.multi_reduction <maximumf>, %56, %cst_23 [1] : vector<8x8xf32> to vector<8xf32>
    %58 = vector.shape_cast %57 : vector<8xf32> to vector<8x1xf32>
    %59 = vector.broadcast %58 : vector<8x1xf32> to vector<8x8xf32>
    %60 = arith.subf %56, %59 : vector<8x8xf32>
    %61 = math.exp %60 : vector<8x8xf32>
    %cst_24 = arith.constant dense<0.000000e+00> : vector<8xf32>
    %62 = vector.multi_reduction <add>, %61, %cst_24 [1] : vector<8x8xf32> to vector<8xf32>
    %63 = vector.shape_cast %62 : vector<8xf32> to vector<8x1xf32>
    %64 = vector.broadcast %63 : vector<8x1xf32> to vector<8x8xf32>
    %65 = arith.divf %61, %64 : vector<8x8xf32>
    %cst_25 = arith.constant dense<0.000000e+00> : vector<8x32xf32>
    %66 = tpu.matmul %65, %51, %cst_25 {dimension_numbers = #tpu.dot_dimension_numbers<[1], [0], [0], [1], [0, 0, 1, 1], [], []>} : vector<8x8xf32>, vector<8x32xf32>, vector<8x32xf32> -> vector<8x32xf32>
    %c0_26 = arith.constant 0 : index
    %c64 = arith.constant 64 : index
    %67 = vector.load %arg16[%c0_26, %c64] : memref<8x128xf32, #tpu.memory_space<vmem>>, vector<8x32xf32>
    tpu.vector_store %arg16[%c0_26, %c64], %66 {strides = array<i32>} : memref<8x128xf32, #tpu.memory_space<vmem>>, vector<8x32xf32>,
    %68 = vector.extract_strided_slice %6 {offsets = [0, 96], sizes = [8, 32], strides = [1, 1]} : vector<8x128xf32> to vector<8x32xf32>
    %69 = vector.extract_strided_slice %7 {offsets = [0, 96], sizes = [8, 32], strides = [1, 1]} : vector<8x128xf32> to vector<8x32xf32>
    %70 = vector.extract_strided_slice %8 {offsets = [0, 96], sizes = [8, 32], strides = [1, 1]} : vector<8x128xf32> to vector<8x32xf32>
    %cst_27 = arith.constant dense<0.000000e+00> : vector<8x8xf32>
    %71 = tpu.matmul %68, %69, %cst_27 {dimension_numbers = #tpu.dot_dimension_numbers<[1], [1], [0], [0], [0, 0, 1, 0], [], []>} : vector<8x32xf32>, vector<8x32xf32>, vector<8x8xf32> -> vector<8x8xf32>
    %cst_28 = arith.constant 0.176776692 : f32
    %72 = vector.broadcast %cst_28 : f32 to vector<8x8xf32>
    %73 = arith.mulf %71, %72 : vector<8x8xf32>
    %74 = vector.broadcast %10 : vector<1x8xf32> to vector<8x8xf32>
    %75 = arith.addf %73, %74 : vector<8x8xf32>
    %cst_29 = arith.constant dense<0xFF800000> : vector<8xf32>
    %76 = vector.multi_reduction <maximumf>, %75, %cst_29 [1] : vector<8x8xf32> to vector<8xf32>
    %77 = vector.shape_cast %76 : vector<8xf32> to vector<8x1xf32>
    %78 = vector.broadcast %77 : vector<8x1xf32> to vector<8x8xf32>
    %79 = arith.subf %75, %78 : vector<8x8xf32>
    %80 = math.exp %79 : vector<8x8xf32>
    %cst_30 = arith.constant dense<0.000000e+00> : vector<8xf32>
    %81 = vector.multi_reduction <add>, %80, %cst_30 [1] : vector<8x8xf32> to vector<8xf32>
    %82 = vector.shape_cast %81 : vector<8xf32> to vector<8x1xf32>
    %83 = vector.broadcast %82 : vector<8x1xf32> to vector<8x8xf32>
    %84 = arith.divf %80, %83 : vector<8x8xf32>
    %cst_31 = arith.constant dense<0.000000e+00> : vector<8x32xf32>
    %85 = tpu.matmul %84, %70, %cst_31 {dimension_numbers = #tpu.dot_dimension_numbers<[1], [0], [0], [1], [0, 0, 1, 1], [], []>} : vector<8x8xf32>, vector<8x32xf32>, vector<8x32xf32> -> vector<8x32xf32>
    %c0_32 = arith.constant 0 : index
    %c96 = arith.constant 96 : index
    %86 = vector.load %arg16[%c0_32, %c96] : memref<8x128xf32, #tpu.memory_space<vmem>>, vector<8x32xf32>
    tpu.vector_store %arg16[%c0_32, %c96], %85 {strides = array<i32>} : memref<8x128xf32, #tpu.memory_space<vmem>>, vector<8x32xf32>,
    %c0_33 = arith.constant 0 : index
    %c0_34 = arith.constant 0 : index
    %87 = vector.load %arg16[%c0_33, %c0_34] : memref<8x128xf32, #tpu.memory_space<vmem>>, vector<8x128xf32>
    %c0_35 = arith.constant 0 : index
    %c0_36 = arith.constant 0 : index
    %88 = vector.load %arg5[%c0_35, %c0_36] : memref<128x128xf32, #tpu.memory_space<vmem>>, vector<128x128xf32>
    %cst_37 = arith.constant dense<0.000000e+00> : vector<8x128xf32>
    %89 = tpu.matmul %87, %88, %cst_37 {dimension_numbers = #tpu.dot_dimension_numbers<[1], [0], [0], [1], [0, 0, 1, 1], [], []>} : vector<8x128xf32>, vector<128x128xf32>, vector<8x128xf32> -> vector<8x128xf32>
    %c0_38 = arith.constant 0 : index
    %c0_39 = arith.constant 0 : index
    %90 = vector.load %arg6[%c0_38, %c0_39] : memref<1x128xf32, #tpu.memory_space<vmem>>, vector<1x128xf32>
    %91 = vector.broadcast %90 : vector<1x128xf32> to vector<8x128xf32>
    %92 = arith.addf %89, %91 : vector<8x128xf32>
    %93 = arith.addf %92, %0 : vector<8x128xf32>
    %c0_40 = arith.constant 0 : index
    %c0_41 = arith.constant 0 : index
    %94 = vector.load %arg7[%c0_40, %c0_41] : memref<1x128xf32, #tpu.memory_space<vmem>>, vector<1x128xf32>
    %c0_42 = arith.constant 0 : index
    %c0_43 = arith.constant 0 : index
    %95 = vector.load %arg8[%c0_42, %c0_43] : memref<1x128xf32, #tpu.memory_space<vmem>>, vector<1x128xf32>
    %cst_44 = arith.constant dense<0.000000e+00> : vector<8xf32>
    %96 = vector.multi_reduction <add>, %93, %cst_44 [1] : vector<8x128xf32> to vector<8xf32>
    %97 = vector.shape_cast %96 : vector<8xf32> to vector<8x1xf32>
    %cst_45 = arith.constant 1.280000e+02 : f32
    %98 = vector.broadcast %cst_45 : f32 to vector<8x1xf32>
    %99 = arith.divf %97, %98 : vector<8x1xf32>
    %100 = vector.broadcast %99 : vector<8x1xf32> to vector<8x128xf32>
    %101 = arith.subf %93, %100 : vector<8x128xf32>
    %102 = arith.mulf %101, %101 : vector<8x128xf32>
    %cst_46 = arith.constant dense<0.000000e+00> : vector<8xf32>
    %103 = vector.multi_reduction <add>, %102, %cst_46 [1] : vector<8x128xf32> to vector<8xf32>
    %104 = vector.shape_cast %103 : vector<8xf32> to vector<8x1xf32>
    %cst_47 = arith.constant 1.280000e+02 : f32
    %105 = vector.broadcast %cst_47 : f32 to vector<8x1xf32>
    %106 = arith.divf %104, %105 : vector<8x1xf32>
    %cst_48 = arith.constant 9.99999996E-13 : f32
    %107 = vector.broadcast %cst_48 : f32 to vector<8x1xf32>
    %108 = arith.addf %106, %107 : vector<8x1xf32>
    %109 = math.rsqrt %108 : vector<8x1xf32>
    %110 = vector.broadcast %109 : vector<8x1xf32> to vector<8x128xf32>
    %111 = arith.mulf %101, %110 : vector<8x128xf32>
    %112 = vector.broadcast %94 : vector<1x128xf32> to vector<8x128xf32>
    %113 = arith.mulf %111, %112 : vector<8x128xf32>
    %114 = vector.broadcast %95 : vector<1x128xf32> to vector<8x128xf32>
    %115 = arith.addf %113, %114 : vector<8x128xf32>
    %c0_49 = arith.constant 0 : index
    %c0_50 = arith.constant 0 : index
    %116 = vector.load %arg9[%c0_49, %c0_50] : memref<128x512xf32, #tpu.memory_space<vmem>>, vector<128x512xf32>
    %cst_51 = arith.constant dense<0.000000e+00> : vector<8x512xf32>
    %117 = tpu.matmul %115, %116, %cst_51 {dimension_numbers = #tpu.dot_dimension_numbers<[1], [0], [0], [1], [0, 0, 1, 1], [], []>} : vector<8x128xf32>, vector<128x512xf32>, vector<8x512xf32> -> vector<8x512xf32>
    %c0_52 = arith.constant 0 : index
    %c0_53 = arith.constant 0 : index
    %118 = vector.load %arg10[%c0_52, %c0_53] : memref<1x512xf32, #tpu.memory_space<vmem>>, vector<1x512xf32>
    %119 = vector.broadcast %118 : vector<1x512xf32> to vector<8x512xf32>
    %120 = arith.addf %117, %119 : vector<8x512xf32>
    %cst_54 = arith.constant 5.000000e-01 : f32
    %121 = vector.broadcast %cst_54 : f32 to vector<8x512xf32>
    %122 = arith.mulf %121, %120 : vector<8x512xf32>
    %cst_55 = arith.constant 4.471500e-02 : f32
    %123 = vector.broadcast %cst_55 : f32 to vector<8x512xf32>
    %124 = arith.mulf %123, %120 : vector<8x512xf32>
    %125 = arith.mulf %124, %120 : vector<8x512xf32>
    %126 = arith.mulf %125, %120 : vector<8x512xf32>
    %127 = arith.addf %120, %126 : vector<8x512xf32>
    %cst_56 = arith.constant 0.797884583 : f32
    %128 = vector.broadcast %cst_56 : f32 to vector<8x512xf32>
    %129 = arith.mulf %128, %127 : vector<8x512xf32>
    %130 = math.tanh %129 : vector<8x512xf32>
    %cst_57 = arith.constant 1.000000e+00 : f32
    %131 = vector.broadcast %cst_57 : f32 to vector<8x512xf32>
    %132 = arith.addf %131, %130 : vector<8x512xf32>
    %133 = arith.mulf %122, %132 : vector<8x512xf32>
    %c0_58 = arith.constant 0 : index
    %c0_59 = arith.constant 0 : index
    %134 = vector.load %arg11[%c0_58, %c0_59] : memref<512x128xf32, #tpu.memory_space<vmem>>, vector<512x128xf32>
    %cst_60 = arith.constant dense<0.000000e+00> : vector<8x128xf32>
    %135 = tpu.matmul %133, %134, %cst_60 {dimension_numbers = #tpu.dot_dimension_numbers<[1], [0], [0], [1], [0, 0, 1, 1], [], []>} : vector<8x512xf32>, vector<512x128xf32>, vector<8x128xf32> -> vector<8x128xf32>
    %c0_61 = arith.constant 0 : index
    %c0_62 = arith.constant 0 : index
    %136 = vector.load %arg12[%c0_61, %c0_62] : memref<1x128xf32, #tpu.memory_space<vmem>>, vector<1x128xf32>
    %137 = vector.broadcast %136 : vector<1x128xf32> to vector<8x128xf32>
    %138 = arith.addf %135, %137 : vector<8x128xf32>
    %139 = arith.addf %138, %115 : vector<8x128xf32>
    %c0_63 = arith.constant 0 : index
    %c0_64 = arith.constant 0 : index
    %140 = vector.load %arg13[%c0_63, %c0_64] : memref<1x128xf32, #tpu.memory_space<vmem>>, vector<1x128xf32>
    %c0_65 = arith.constant 0 : index
    %c0_66 = arith.constant 0 : index
    %141 = vector.load %arg14[%c0_65, %c0_66] : memref<1x128xf32, #tpu.memory_space<vmem>>, vector<1x128xf32>
    %cst_67 = arith.constant dense<0.000000e+00> : vector<8xf32>
    %142 = vector.multi_reduction <add>, %139, %cst_67 [1] : vector<8x128xf32> to vector<8xf32>
    %143 = vector.shape_cast %142 : vector<8xf32> to vector<8x1xf32>
    %cst_68 = arith.constant 1.280000e+02 : f32
    %144 = vector.broadcast %cst_68 : f32 to vector<8x1xf32>
    %145 = arith.divf %143, %144 : vector<8x1xf32>
    %146 = vector.broadcast %145 : vector<8x1xf32> to vector<8x128xf32>
    %147 = arith.subf %139, %146 : vector<8x128xf32>
    %148 = arith.mulf %147, %147 : vector<8x128xf32>
    %cst_69 = arith.constant dense<0.000000e+00> : vector<8xf32>
    %149 = vector.multi_reduction <add>, %148, %cst_69 [1] : vector<8x128xf32> to vector<8xf32>
    %150 = vector.shape_cast %149 : vector<8xf32> to vector<8x1xf32>
    %cst_70 = arith.constant 1.280000e+02 : f32
    %151 = vector.broadcast %cst_70 : f32 to vector<8x1xf32>
    %152 = arith.divf %150, %151 : vector<8x1xf32>
    %cst_71 = arith.constant 9.99999996E-13 : f32
    %153 = vector.broadcast %cst_71 : f32 to vector<8x1xf32>
    %154 = arith.addf %152, %153 : vector<8x1xf32>
    %155 = math.rsqrt %154 : vector<8x1xf32>
    %156 = vector.broadcast %155 : vector<8x1xf32> to vector<8x128xf32>
    %157 = arith.mulf %147, %156 : vector<8x128xf32>
    %158 = vector.broadcast %140 : vector<1x128xf32> to vector<8x128xf32>
    %159 = arith.mulf %157, %158 : vector<8x128xf32>
    %160 = vector.broadcast %141 : vector<1x128xf32> to vector<8x128xf32>
    %161 = arith.addf %159, %160 : vector<8x128xf32>
    %c0_72 = arith.constant 0 : index
    %c0_73 = arith.constant 0 : index
    %162 = vector.load %arg15[%c0_72, %c0_73] : memref<8x128xf32, #tpu.memory_space<vmem>>, vector<8x128xf32>
    tpu.vector_store %arg15[%c0_72, %c0_73], %161 {strides = array<i32>} : memref<8x128xf32, #tpu.memory_space<vmem>>, vector<8x128xf32>,
    return
  }
  func.func @transform_0(%arg0: i32) -> (i32, i32) {
    %c0_i32 = arith.constant 0 : i32
    %c0_i32_0 = arith.constant 0 : i32
    return %arg0, %c0_i32 : i32, i32
  }
  func.func @transform_1(%arg0: i32) -> (i32, i32, i32) {
    %c0_i32 = arith.constant 0 : i32
    %c0_i32_0 = arith.constant 0 : i32
    %c0_i32_1 = arith.constant 0 : i32
    return %arg0, %c0_i32, %c0_i32_0 : i32, i32, i32
  }
  func.func @transform_2(%arg0: i32) -> (i32, i32) {
    %c0_i32 = arith.constant 0 : i32
    %c0_i32_0 = arith.constant 0 : i32
    %c0_i32_1 = arith.constant 0 : i32
    return %c0_i32, %c0_i32_0 : i32, i32
  }
  func.func @transform_3(%arg0: i32) -> (i32, i32) {
    %c0_i32 = arith.constant 0 : i32
    %c0_i32_0 = arith.constant 0 : i32
    %c0_i32_1 = arith.constant 0 : i32
    return %c0_i32, %c0_i32_0 : i32, i32
  }
  func.func @transform_4(%arg0: i32) -> (i32, i32) {
    %c0_i32 = arith.constant 0 : i32
    %c0_i32_0 = arith.constant 0 : i32
    %c0_i32_1 = arith.constant 0 : i32
    return %c0_i32, %c0_i32_0 : i32, i32
  }
  func.func @transform_5(%arg0: i32) -> (i32, i32) {
    %c0_i32 = arith.constant 0 : i32
    %c0_i32_0 = arith.constant 0 : i32
    %c0_i32_1 = arith.constant 0 : i32
    return %c0_i32, %c0_i32_0 : i32, i32
  }
  func.func @transform_6(%arg0: i32) -> (i32, i32) {
    %c0_i32 = arith.constant 0 : i32
    %c0_i32_0 = arith.constant 0 : i32
    %c0_i32_1 = arith.constant 0 : i32
    return %c0_i32, %c0_i32_0 : i32, i32
  }
  func.func @transform_7(%arg0: i32) -> (i32, i32) {
    %c0_i32 = arith.constant 0 : i32
    %c0_i32_0 = arith.constant 0 : i32
    %c0_i32_1 = arith.constant 0 : i32
    return %c0_i32, %c0_i32_0 : i32, i32
  }
  func.func @transform_8(%arg0: i32) -> (i32, i32) {
    %c0_i32 = arith.constant 0 : i32
    %c0_i32_0 = arith.constant 0 : i32
    %c0_i32_1 = arith.constant 0 : i32
    return %c0_i32, %c0_i32_0 : i32, i32
  }
  func.func @transform_9(%arg0: i32) -> (i32, i32) {
    %c0_i32 = arith.constant 0 : i32
    %c0_i32_0 = arith.constant 0 : i32
    %c0_i32_1 = arith.constant 0 : i32
    return %c0_i32, %c0_i32_0 : i32, i32
  }
  func.func @transform_10(%arg0: i32) -> (i32, i32) {
    %c0_i32 = arith.constant 0 : i32
    %c0_i32_0 = arith.constant 0 : i32
    %c0_i32_1 = arith.constant 0 : i32
    return %c0_i32, %c0_i32_0 : i32, i32
  }
  func.func @transform_11(%arg0: i32) -> (i32, i32) {
    %c0_i32 = arith.constant 0 : i32
    %c0_i32_0 = arith.constant 0 : i32
    %c0_i32_1 = arith.constant 0 : i32
    return %c0_i32, %c0_i32_0 : i32, i32
  }
  func.func @transform_12(%arg0: i32) -> (i32, i32) {
    %c0_i32 = arith.constant 0 : i32
    %c0_i32_0 = arith.constant 0 : i32
    %c0_i32_1 = arith.constant 0 : i32
    return %c0_i32, %c0_i32_0 : i32, i32
  }
  func.func @transform_13(%arg0: i32) -> (i32, i32) {
    %c0_i32 = arith.constant 0 : i32
    %c0_i32_0 = arith.constant 0 : i32
    %c0_i32_1 = arith.constant 0 : i32
    return %c0_i32, %c0_i32_0 : i32, i32
  }
  func.func @transform_14(%arg0: i32) -> (i32, i32) {
    %c0_i32 = arith.constant 0 : i32
    %c0_i32_0 = arith.constant 0 : i32
    return %arg0, %c0_i32 : i32, i32
  }
}

module attributes {stable_mosaic.version = 11 : i64} {
  func.func @_head_kernel(%arg0: i32, %arg1: memref<2x128xf32, #tpu.memory_space<vmem>>, %arg2: memref<128x128xf32, #tpu.memory_space<vmem>>, %arg3: memref<1x128xf32, #tpu.memory_space<vmem>>, %arg4: memref<128x128xf32, #tpu.memory_space<vmem>>, %arg5: memref<1x128xf32, #tpu.memory_space<vmem>>, %arg6: memref<2x128xf32, #tpu.memory_space<vmem>>) attributes {dimension_semantics = [#tpu.dimension_semantics<arbitrary>], iteration_bounds = array<i64: 1>, scalar_prefetch = 0 : i64, scratch_operands = 0 : i64, tpu.core_type = #tpu.core_type<tc>, window_params = [{pipeline_mode = #tpu.pipeline_mode<synchronous>, transform_indices = @transform_0, window_bounds = array<i64: 2, 128>}, {pipeline_mode = #tpu.pipeline_mode<synchronous>, transform_indices = @transform_1, window_bounds = array<i64: 128, 128>}, {pipeline_mode = #tpu.pipeline_mode<synchronous>, transform_indices = @transform_2, window_bounds = array<i64: 1, 128>}, {pipeline_mode = #tpu.pipeline_mode<synchronous>, transform_indices = @transform_3, window_bounds = array<i64: 128, 128>}, {pipeline_mode = #tpu.pipeline_mode<synchronous>, transform_indices = @transform_4, window_bounds = array<i64: 1, 128>}, {pipeline_mode = #tpu.pipeline_mode<synchronous>, transform_indices = @transform_5, window_bounds = array<i64: 2, 128>}]} {
    %c0 = arith.constant 0 : index
    %c0_0 = arith.constant 0 : index
    %0 = vector.load %arg1[%c0, %c0_0] : memref<2x128xf32, #tpu.memory_space<vmem>>, vector<2x128xf32>
    %c0_1 = arith.constant 0 : index
    %c0_2 = arith.constant 0 : index
    %1 = vector.load %arg2[%c0_1, %c0_2] : memref<128x128xf32, #tpu.memory_space<vmem>>, vector<128x128xf32>
    %cst = arith.constant dense<0.000000e+00> : vector<2x128xf32>
    %2 = tpu.matmul %0, %1, %cst {dimension_numbers = #tpu.dot_dimension_numbers<[1], [0], [0], [1], [0, 0, 1, 1], [], []>} : vector<2x128xf32>, vector<128x128xf32>, vector<2x128xf32> -> vector<2x128xf32>
    %c0_3 = arith.constant 0 : index
    %c0_4 = arith.constant 0 : index
    %3 = vector.load %arg3[%c0_3, %c0_4] : memref<1x128xf32, #tpu.memory_space<vmem>>, vector<1x128xf32>
    %4 = vector.broadcast %3 : vector<1x128xf32> to vector<2x128xf32>
    %5 = arith.addf %2, %4 : vector<2x128xf32>
    %6 = math.tanh %5 : vector<2x128xf32>
    %c0_5 = arith.constant 0 : index
    %c0_6 = arith.constant 0 : index
    %7 = vector.load %arg4[%c0_5, %c0_6] : memref<128x128xf32, #tpu.memory_space<vmem>>, vector<128x128xf32>
    %cst_7 = arith.constant dense<0.000000e+00> : vector<2x128xf32>
    %8 = tpu.matmul %6, %7, %cst_7 {dimension_numbers = #tpu.dot_dimension_numbers<[1], [0], [0], [1], [0, 0, 1, 1], [], []>} : vector<2x128xf32>, vector<128x128xf32>, vector<2x128xf32> -> vector<2x128xf32>
    %c0_8 = arith.constant 0 : index
    %c0_9 = arith.constant 0 : index
    %9 = vector.load %arg5[%c0_8, %c0_9] : memref<1x128xf32, #tpu.memory_space<vmem>>, vector<1x128xf32>
    %10 = vector.broadcast %9 : vector<1x128xf32> to vector<2x128xf32>
    %11 = arith.addf %8, %10 : vector<2x128xf32>
    %c0_10 = arith.constant 0 : index
    %c0_11 = arith.constant 0 : index
    %12 = vector.load %arg6[%c0_10, %c0_11] : memref<2x128xf32, #tpu.memory_space<vmem>>, vector<2x128xf32>
    tpu.vector_store %arg6[%c0_10, %c0_11], %11 {strides = array<i32>} : memref<2x128xf32, #tpu.memory_space<vmem>>, vector<2x128xf32>,
    return
  }
  func.func @transform_0(%arg0: i32) -> (i32, i32) {
    %c0_i32 = arith.constant 0 : i32
    %c0_i32_0 = arith.constant 0 : i32
    %c0_i32_1 = arith.constant 0 : i32
    return %c0_i32, %c0_i32_0 : i32, i32
  }
  func.func @transform_1(%arg0: i32) -> (i32, i32) {
    %c0_i32 = arith.constant 0 : i32
    %c0_i32_0 = arith.constant 0 : i32
    %c0_i32_1 = arith.constant 0 : i32
    return %c0_i32, %c0_i32_0 : i32, i32
  }
  func.func @transform_2(%arg0: i32) -> (i32, i32) {
    %c0_i32 = arith.constant 0 : i32
    %c0_i32_0 = arith.constant 0 : i32
    %c0_i32_1 = arith.constant 0 : i32
    return %c0_i32, %c0_i32_0 : i32, i32
  }
  func.func @transform_3(%arg0: i32) -> (i32, i32) {
    %c0_i32 = arith.constant 0 : i32
    %c0_i32_0 = arith.constant 0 : i32
    %c0_i32_1 = arith.constant 0 : i32
    return %c0_i32, %c0_i32_0 : i32, i32
  }
  func.func @transform_4(%arg0: i32) -> (i32, i32) {
    %c0_i32 = arith.constant 0 : i32
    %c0_i32_0 = arith.constant 0 : i32
    %c0_i32_1 = arith.constant 0 : i32
    return %c0_i32, %c0_i32_0 : i32, i32
  }
  func.func @transform_5(%arg0: i32) -> (i32, i32) {
    %c0_i32 = arith.constant 0 : i32
    %c0_i32_0 = arith.constant 0 : i32
    %c0_i32_1 = arith.constant 0 : i32
    return %c0_i32, %c0_i32_0 : i32, i32
  }
}

</mosaic_0001>

<llo_original>
// kernel: duygu_analizi_forward.4
$region0: #{duygu_analizi_forward.4}
  #allocation0 [shape = 'u32[]', space=smem, size = 0x4, offset = 0x4, fixed_abs, tag = 'smem constant byte address 0x4 - core index']
  #allocation1 [shape = 'u32[144,128]{1,0:T(1,128)}', space=vmem, size = 0x12000, scoped, tag = 'internal scratch']
  %s0 = inlined_call_operand.vmem [shape: f32[16,128], index: 0, kind: input, shape index: {}]
  %s1 = inlined_call_operand.vmem [shape: f32[8,128], index: 1, kind: input, shape index: {}]
  %s2 = inlined_call_operand.vmem [shape: f32[1,128], index: 2, kind: input, shape index: {}]
  %s3 = inlined_call_operand.vmem [shape: f32[1,128], index: 3, kind: input, shape index: {}]
  %s4 = inlined_call_operand.vmem [shape: f32[1,128], index: 4, kind: input, shape index: {}]
  %s5 = inlined_call_operand.vmem [shape: f32[16,128], index: 5, kind: output, shape index: {}]
  %s6 = sld [smem:[#allocation0]]
  $region53: #{duygu_analizi_forward.4} parent=0
    _
  %s8 = ssub.s32 1, %s6
  %s9 = scalar_select 0, %s8, %s6
  loop: start=0, step=1, limit=4
  $region2: #{duygu_analizi_forward.4} parent=0 // loop_pre_header
    _
  $region3: #{duygu_analizi_forward.4} parent=0 // loop_header
    %s11 = sphi 0, %s15
    %p12 = scmp.ge.s32.totalorder %s11, 4
    %s21 = sphi 0, %s23
    %s24 = sphi 0, %s21
    %s25 = sphi 0, %s24
    %s41 = sphi 0, %s25
    %s45 = sphi 0, %s45
    %s47 = sphi 0, %s45
    %s48 = sphi 0, %s47
    %s62 = sphi 0, %s48
    %s66 = sphi 0, %s66
    %s68 = sphi 0, %s66
    %s69 = sphi 0, %s68
    %s83 = sphi 0, %s69
    %s87 = sphi 0, %s87
    %s89 = sphi 0, %s87
    %s90 = sphi 0, %s89
    %s104 = sphi 0, %s90
    %s108 = sphi 0, %s108
    %s110 = sphi 0, %s108
    %s111 = sphi 0, %s110
    %s125 = sphi 0, %s111
    %s131 = sphi 0, %s133
    %s134 = sphi 0, %s131
    %s135 = sphi 0, %s134
    %s151 = sphi 0, %s135
  $region4: #{duygu_analizi_forward.4} parent=0 // loop_header_branch
    %14 = sbr.rel (%p12) target = $region8
  $region5: #{duygu_analizi_forward.4} parent=0 // loop_body
    %s16 = ssub.s32 %s11, 1
    %s17 = ssub.s32 %s11, 2
    %s18 = sadd.s32 %s11, 1
    %s19 = ssub.s32 %s11, %s18
    %p20 = scmp.eq.s32.totalorder %s19, 0
    %s22 = sadd.s32 %s21, 1
    %s23 = scalar_select %p20, %s21, %s22
    %p26 = pneg %p20
    %p27 = scmp.eq.s32.totalorder %s11, 1
    %p28 = por %p26, %p27
    %p29 = scmp.ne.s32.totalorder %s21, %s24
    %p30 = scmp.eq.s32.totalorder %s11, 0
    %p31 = por %p29, %p30
    %p32 = scmp.ne.s32.totalorder %s21, %s24
    %p33 = scmp.eq.s32.totalorder %s16, 1
    %p34 = por %p32, %p33
    %p35 = scmp.ne.s32.totalorder %s24, %s25
    %p36 = scmp.eq.s32.totalorder %s16, 0
    %p37 = por %p35, %p36
    %p38 = scmp.ne.s32.totalorder %s24, %s25
    %p39 = scmp.eq.s32.totalorder %s17, 1
    %p40 = por %p38, %p39
    %p42 = scmp.ne.s32.totalorder %s25, %s41
    %p43 = scmp.eq.s32.totalorder %s17, 0
    %p44 = por %p42, %p43
    %s46 = sadd.s32 %s45, 1
    %p49 = scmp.eq.s32.totalorder %s11, 1
    %p50 = scmp.ne.s32.totalorder %s45, %s47
    %p51 = scmp.eq.s32.totalorder %s11, 0
    %p52 = por %p50, %p51
    %p53 = scmp.ne.s32.totalorder %s45, %s47
    %p54 = scmp.eq.s32.totalorder %s16, 1
    %p55 = por %p53, %p54
    %p56 = scmp.ne.s32.totalorder %s47, %s48
    %p57 = scmp.eq.s32.totalorder %s16, 0
    %p58 = por %p56, %p57
    %p59 = scmp.ne.s32.totalorder %s47, %s48
    %p60 = scmp.eq.s32.totalorder %s17, 1
    %p61 = por %p59, %p60
    %p63 = scmp.ne.s32.totalorder %s48, %s62
    %p64 = scmp.eq.s32.totalorder %s17, 0
    %p65 = por %p63, %p64
    %s67 = sadd.s32 %s66, 1
    %p70 = scmp.eq.s32.totalorder %s11, 1
    %p71 = scmp.ne.s32.totalorder %s66, %s68
    %p72 = scmp.eq.s32.totalorder %s11, 0
    %p73 = por %p71, %p72
    %p74 = scmp.ne.s32.totalorder %s66, %s68
    %p75 = scmp.eq.s32.totalorder %s16, 1
    %p76 = por %p74, %p75
    %p77 = scmp.ne.s32.totalorder %s68, %s69
    %p78 = scmp.eq.s32.totalorder %s16, 0
    %p79 = por %p77, %p78
    %p80 = scmp.ne.s32.totalorder %s68, %s69
    %p81 = scmp.eq.s32.totalorder %s17, 1
    %p82 = por %p80, %p81
    %p84 = scmp.ne.s32.totalorder %s69, %s83
    %p85 = scmp.eq.s32.totalorder %s17, 0
    %p86 = por %p84, %p85
    %s88 = sadd.s32 %s87, 1
    %p91 = scmp.eq.s32.totalorder %s11, 1
    %p92 = scmp.ne.s32.totalorder %s87, %s89
    %p93 = scmp.eq.s32.totalorder %s11, 0
    %p94 = por %p92, %p93
    %p95 = scmp.ne.s32.totalorder %s87, %s89
    %p96 = scmp.eq.s32.totalorder %s16, 1
    %p97 = por %p95, %p96
    %p98 = scmp.ne.s32.totalorder %s89, %s90
    %p99 = scmp.eq.s32.totalorder %s16, 0
    %p100 = por %p98, %p99
    %p101 = scmp.ne.s32.totalorder %s89, %s90
    %p102 = scmp.eq.s32.totalorder %s17, 1
    %p103 = por %p101, %p102
    %p105 = scmp.ne.s32.totalorder %s90, %s104
    %p106 = scmp.eq.s32.totalorder %s17, 0
    %p107 = por %p105, %p106
    %s109 = sadd.s32 %s108, 1
    %p112 = scmp.eq.s32.totalorder %s11, 1
    %p113 = scmp.ne.s32.totalorder %s108, %s110
    %p114 = scmp.eq.s32.totalorder %s11, 0
    %p115 = por %p113, %p114
    %p116 = scmp.ne.s32.totalorder %s108, %s110
    %p117 = scmp.eq.s32.totalorder %s16, 1
    %p118 = por %p116, %p117
    %p119 = scmp.ne.s32.totalorder %s110, %s111
    %p120 = scmp.eq.s32.totalorder %s16, 0
    %p121 = por %p119, %p120
    %p122 = scmp.ne.s32.totalorder %s110, %s111
    %p123 = scmp.eq.s32.totalorder %s17, 1
    %p124 = por %p122, %p123
    %p126 = scmp.ne.s32.totalorder %s111, %s125
    %p127 = scmp.eq.s32.totalorder %s17, 0
    %p128 = por %p126, %p127
    %s129 = ssub.s32 %s11, %s18
    %p130 = scmp.eq.s32.totalorder %s129, 0
    %s132 = sadd.s32 %s131, 1
    %s133 = scalar_select %p130, %s131, %s132
    %p136 = pneg %p130
    %p137 = scmp.eq.s32.totalorder %s11, 1
    %p138 = por %p136, %p137
    %p139 = scmp.ne.s32.totalorder %s131, %s134
    %p140 = scmp.eq.s32.totalorder %s11, 0
    %p141 = por %p139, %p140
    %p142 = scmp.ne.s32.totalorder %s131, %s134
    %p143 = scmp.eq.s32.totalorder %s16, 1
    %p144 = por %p142, %p143
    %p145 = scmp.ne.s32.totalorder %s134, %s135
    %p146 = scmp.eq.s32.totalorder %s16, 0
    %p147 = por %p145, %p146
    %p148 = scmp.ne.s32.totalorder %s134, %s135
    %p149 = scmp.eq.s32.totalorder %s17, 1
    %p150 = por %p148, %p149
    %p152 = scmp.ne.s32.totalorder %s135, %s151
    %p153 = scmp.eq.s32.totalorder %s17, 0
    %p154 = por %p152, %p153
    %p155 = scmp.le.s32.totalorder 1, %s11
    %p156 = scmp.lt.s32.totalorder %s11, 3
    %p157 = pnand %p155, %p156
    %p158 = pneg %p157
    // Predicated region
    $region9: #{duygu_analizi_forward.4} parent=5 // pred_check
      _
    $region10: #{duygu_analizi_forward.4} parent=5 // pred_check_branch
      %160 = sbr.rel (%p157) target = $region12
    $region11: #{duygu_analizi_forward.4} parent=5 // pred_region
      %s161 = ssub.s32 %s11, 1
      // Predicated region
      $region13: #{duygu_analizi_forward.4} parent=11 // pred_check
        %p162 = pneg %p58
      $region14: #{duygu_analizi_forward.4} parent=11 // pred_check_branch
        %164 = sbr.rel (%p162) target = $region16
      $region15: #{duygu_analizi_forward.4} parent=11 // pred_region
        _
      $region16: #{duygu_analizi_forward.4} parent=11 // pred_fallthru
        _
      // Predicated region
      $region17: #{duygu_analizi_forward.4} parent=11 // pred_check
        %p165 = pneg %p79
      $region18: #{duygu_analizi_forward.4} parent=11 // pred_check_branch
        %167 = sbr.rel (%p165) target = $region20
      $region19: #{duygu_analizi_forward.4} parent=11 // pred_region
        _
      $region20: #{duygu_analizi_forward.4} parent=11 // pred_fallthru
        _
      // Predicated region
      $region21: #{duygu_analizi_forward.4} parent=11 // pred_check
        %p168 = pneg %p100
      $region22: #{duygu_analizi_forward.4} parent=11 // pred_check_branch
        %170 = sbr.rel (%p168) target = $region24
      $region23: #{duygu_analizi_forward.4} parent=11 // pred_region
        _
      $region24: #{duygu_analizi_forward.4} parent=11 // pred_fallthru
        _
      // Predicated region
      $region25: #{duygu_analizi_forward.4} parent=11 // pred_check
        %p171 = pneg %p121
      $region26: #{duygu_analizi_forward.4} parent=11 // pred_check_branch
        %173 = sbr.rel (%p171) target = $region28
      $region27: #{duygu_analizi_forward.4} parent=11 // pred_region
        _
      $region28: #{duygu_analizi_forward.4} parent=11 // pred_fallthru
        _
    $region12: #{duygu_analizi_forward.4} parent=5 // pred_fallthru
      _
    %p174 = scmp.lt.s32.totalorder %s11, 2
    // Predicated region
    $region29: #{duygu_analizi_forward.4} parent=5 // pred_check
      %p175 = pneg %p174
    $region30: #{duygu_analizi_forward.4} parent=5 // pred_check_branch
      %177 = sbr.rel (%p175) target = $region32
    $region31: #{duygu_analizi_forward.4} parent=5 // pred_region
      // Predicated region
      $region33: #{duygu_analizi_forward.4} parent=31 // pred_check
        %p178 = pneg %p31
      $region34: #{duygu_analizi_forward.4} parent=31 // pred_check_branch
        %180 = sbr.rel (%p178) target = $region36
      $region35: #{duygu_analizi_forward.4} parent=31 // pred_region
        %p181 = scmp.lt.s32.totalorder %s11, 1
        %s182 = scalar_select %p181, %s11, 1
        %s183 = smul.addr %s182, 8
        %s184 = scalar_lea.vmem %s0, %s183
      $region36: #{duygu_analizi_forward.4} parent=31 // pred_fallthru
        _
    $region32: #{duygu_analizi_forward.4} parent=5 // pred_fallthru
      _
    %p185 = scmp.le.s32.totalorder 1, %s11
    %p186 = scmp.lt.s32.totalorder %s11, 3
    %p187 = pnand %p185, %p186
    %p188 = pneg %p187
    // Predicated region
    $region37: #{duygu_analizi_forward.4} parent=5 // pred_check
      _
    $region38: #{duygu_analizi_forward.4} parent=5 // pred_check_branch
      %190 = sbr.rel (%p187) target = $region40
    $region39: #{duygu_analizi_forward.4} parent=5 // pred_region
      %s191 = ssub.s32 %s11, 1
      %p192 = scmp.lt.s32.totalorder %s16, 1
      %s193 = scalar_select %p192, %s16, 1
      %s194 = smul.addr %s193, 8
      %s195 = scalar_lea.vmem %s0, %s194
      %p196 = pneg %p37
      %p197 = pneg %p34
      %p198 = pneg %p58
      %p199 = pneg %p55
      %p200 = pneg %p79
      %p201 = pneg %p76
      %p202 = pneg %p100
      %p203 = pneg %p97
      %p204 = pneg %p121
      %p205 = pneg %p118
      %p206 = pneg %p147
      %p207 = pneg %p144
      %p208 = scmp.lt.s32.totalorder %s16, 1
      %s209 = scalar_select %p208, %s16, 1
      %s210 = smul.addr %s209, 8
      %s211 = scalar_lea.vmem %s5, %s210
      %p212 = scmp.lt.s32.totalorder %s16, 1
      %s213 = scalar_select %p212, %s16, 1
      %s214 = smul.addr %s213, 8
      %s215 = scalar_lea.vmem %s0, %s214
      %p216 = scmp.lt.s32.totalorder %s16, 1
      %s217 = scalar_select %p216, %s16, 1
      %s218 = smul.addr %s217, 8
      %s219 = scalar_lea.vmem %s5, %s218
      %v220 = vld [vmem:[%s215] sm:$0xff]
      %v221 = vld [vmem:[%s1] sm:$0xff]
      %v222 = vadd.f32 %v220, %v221
      %v223 = vld [vmem:[%s2] sm:$0x1]
      %v225 = vlaneseq
      %v226 = vshrl.u32 %v225, 7
      %v227 = vsub.s32 0, %v226
      %v228 = vrot.slane %v223, %v227
      %v230 = vadd.f32 %v222, %v228
      %v231 = vld [vmem:[%s3] sm:$0x1]
      %v232 = vld [vmem:[%s4] sm:$0x1]
      %233 = vadd.xlane.f32.xlu0 %v230
      %v234 = vpop.xlane.xlu0 %233
      %v235 = vrcp.pop 128.0
      %v236 = vmul.f32 %v234, %v235
      %v237 = vsub.f32 %v230, %v236
      %v238 = vmul.f32 %v237, %v237
      %239 = vadd.xlane.f32.xlu0 %v238
      %v240 = vpop.xlane.xlu0 %239
      %v241 = vmul.f32 %v240, %v235
      %v242 = vadd.f32 %v241, 1e-12
      %v243 = vrsqrt.pop %v242
      %v244 = vmul.f32 %v237, %v243
      %v246 = vlaneseq
      %v247 = vshrl.u32 %v246, 7
      %v248 = vsub.s32 0, %v247
      %v249 = vrot.slane %v231, %v248
      %v251 = vmul.f32 %v244, %v249
      %v253 = vlaneseq
      %v254 = vshrl.u32 %v253, 7
      %v255 = vsub.s32 0, %v254
      %v256 = vrot.slane %v232, %v255
      %v258 = vadd.f32 %v251, %v256
      %259 = vst [vmem:[%s219] sm:$0xff] %v258
      %p260 = scmp.lt.s32.totalorder %s16, 1
      %s261 = scalar_select %p260, %s16, 1
      %s262 = smul.addr %s261, 8
      %s263 = scalar_lea.vmem %s5, %s262
      // Predicated region
      $region41: #{duygu_analizi_forward.4} parent=39 // pred_check
        %p264 = pneg %p144
      $region42: #{duygu_analizi_forward.4} parent=39 // pred_check_branch
        %266 = sbr.rel (%p264) target = $region44
      $region43: #{duygu_analizi_forward.4} parent=39 // pred_region
        _
      $region44: #{duygu_analizi_forward.4} parent=39 // pred_fallthru
        _
    $region40: #{duygu_analizi_forward.4} parent=5 // pred_fallthru
      _
    %p267 = scmp.le.s32.totalorder 2, %s11
    // Predicated region
    $region45: #{duygu_analizi_forward.4} parent=5 // pred_check
      %p268 = pneg %p267
    $region46: #{duygu_analizi_forward.4} parent=5 // pred_check_branch
      %270 = sbr.rel (%p268) target = $region48
    $region47: #{duygu_analizi_forward.4} parent=5 // pred_region
      %s271 = ssub.s32 %s11, 2
      // Predicated region
      $region49: #{duygu_analizi_forward.4} parent=47 // pred_check
        %p272 = pneg %p150
      $region50: #{duygu_analizi_forward.4} parent=47 // pred_check_branch
        %274 = sbr.rel (%p272) target = $region52
      $region51: #{duygu_analizi_forward.4} parent=47 // pred_region
        %p275 = scmp.lt.s32.totalorder %s17, 1
        %s276 = scalar_select %p275, %s17, 1
        %s277 = smul.addr %s276, 8
        %s278 = scalar_lea.vmem %s5, %s277
      $region52: #{duygu_analizi_forward.4} parent=47 // pred_fallthru
        _
    $region48: #{duygu_analizi_forward.4} parent=5 // pred_fallthru
      _
  $region6: #{duygu_analizi_forward.4} parent=0 // loop_footer
    %s15 = sadd.s32 1, %s11
  $region7: #{duygu_analizi_forward.4} parent=0 // loop_footer_branch
    %10 = sbr.rel target = $region3
  $region8: #{duygu_analizi_forward.4} parent=0 // loop_exit
    _

// kernel: duygu_analizi_forward.7
$region0: #{duygu_analizi_forward.7}
  #allocation0 [shape = 'u32[]', space=smem, size = 0x4, offset = 0x4, fixed_abs, tag = 'smem constant byte address 0x4 - core index']
  #allocation1 [shape = 'u32[144,128]{1,0:T(1,128)}', space=vmem, size = 0x12000, scoped, tag = 'internal scratch']
  %s0 = inlined_call_operand.vmem [shape: f32[2,128], index: 0, kind: input, shape index: {}]
  %s1 = inlined_call_operand.vmem [shape: f32[128,128], index: 1, kind: input, shape index: {}]
  %s2 = inlined_call_operand.vmem [shape: f32[1,128], index: 2, kind: input, shape index: {}]
  %s3 = inlined_call_operand.vmem [shape: f32[128,128], index: 3, kind: input, shape index: {}]
  %s4 = inlined_call_operand.vmem [shape: f32[1,128], index: 4, kind: input, shape index: {}]
  %s5 = inlined_call_operand.hbm [shape: f32[2,128], index: 5, kind: output, shape index: {}]
  %s6 = sld [smem:[#allocation0]]
  $region30: #{duygu_analizi_forward.7} parent=0
    _
  %s8 = ssub.s32 1, %s6
  %s9 = scalar_select 0, %s8, %s6
  $region1: #{duygu_analizi_forward.7} parent=0
    #allocation2 [shape = 'u8[1024]{0}', space=vmem, size = 0x400, scoped, tag = 'output window, operand 0, single buffered']
    #allocation3 [shape = 's32[1]{0}', space=sflag, size = 0x4, scoped, tag = 'scoped memory for duygu_analizi_forward.7']
    %10 = vsyncpa [#allocation3], 0
    // Predicated region
    $region2: #{duygu_analizi_forward.7} parent=1 // pred_check
      _
    $region3: #{duygu_analizi_forward.7} parent=1 // pred_check_branch
      %12 = sbr.rel (0) target = $region5
    $region4: #{duygu_analizi_forward.7} parent=1 // pred_region
      _
    $region5: #{duygu_analizi_forward.7} parent=1 // pred_fallthru
      _
    // Predicated region
    $region6: #{duygu_analizi_forward.7} parent=1 // pred_check
      _
    $region7: #{duygu_analizi_forward.7} parent=1 // pred_check_branch
      %14 = sbr.rel (0) target = $region9
    $region8: #{duygu_analizi_forward.7} parent=1 // pred_region
      _
    $region9: #{duygu_analizi_forward.7} parent=1 // pred_fallthru
      _
    // Predicated region
    $region10: #{duygu_analizi_forward.7} parent=1 // pred_check
      _
    $region11: #{duygu_analizi_forward.7} parent=1 // pred_check_branch
      %16 = sbr.rel (0) target = $region13
    $region12: #{duygu_analizi_forward.7} parent=1 // pred_region
      _
    $region13: #{duygu_analizi_forward.7} parent=1 // pred_fallthru
      _
    // Predicated region
    $region14: #{duygu_analizi_forward.7} parent=1 // pred_check
      _
    $region15: #{duygu_analizi_forward.7} parent=1 // pred_check_branch
      %18 = sbr.rel (0) target = $region17
    $region16: #{duygu_analizi_forward.7} parent=1 // pred_region
      _
    $region17: #{duygu_analizi_forward.7} parent=1 // pred_fallthru
      _
    // Predicated region
    $region18: #{duygu_analizi_forward.7} parent=1 // pred_check
      _
    $region19: #{duygu_analizi_forward.7} parent=1 // pred_check_branch
      %20 = sbr.rel (0) target = $region21
    $region20: #{duygu_analizi_forward.7} parent=1 // pred_region
      _
    $region21: #{duygu_analizi_forward.7} parent=1 // pred_fallthru
      _
    %v21 = vld [vmem:[%s0] sm:$0x3]
    %v22 = vld [vmem:[%s1] sm:$0xff]
    %v23 = vld [vmem:[%s1 + $0x8] sm:$0xff]
    %v24 = vld [vmem:[%s1 + $0x10] sm:$0xff]
    %v25 = vld [vmem:[%s1 + $0x18] sm:$0xff]
    %v26 = vld [vmem:[%s1 + $0x20] sm:$0xff]
    %v27 = vld [vmem:[%s1 + $0x28] sm:$0xff]
    %v28 = vld [vmem:[%s1 + $0x30] sm:$0xff]
    %v29 = vld [vmem:[%s1 + $0x38] sm:$0xff]
    %v30 = vld [vmem:[%s1 + $0x40] sm:$0xff]
    %v31 = vld [vmem:[%s1 + $0x48] sm:$0xff]
    %v32 = vld [vmem:[%s1 + $0x50] sm:$0xff]
    %v33 = vld [vmem:[%s1 + $0x58] sm:$0xff]
    %v34 = vld [vmem:[%s1 + $0x60] sm:$0xff]
    %v35 = vld [vmem:[%s1 + $0x68] sm:$0xff]
    %v36 = vld [vmem:[%s1 + $0x70] sm:$0xff]
    %v37 = vld [vmem:[%s1 + $0x78] sm:$0xff]
    %v38 = vld [vmem:[%s2] sm:$0x1]
    %v40 = vlaneseq
    %v41 = vshrl.u32 %v40, 7
    %v42 = vsub.s32 0, %v41
    %v43 = vrot.slane %v38, %v42
    %45 = vmatprep.subr.mxu0 0.0
    %46 = vmatpush1.msra.mxu0 %v37
    %47 = vmatprep.subr.mxu0 0.0
    %48 = vmatpush1.msra.mxu0 %v36
    %49 = vmatprep.subr.mxu0 0.0
    %50 = vmatpush1.msra.mxu0 %v35
    %51 = vmatprep.subr.mxu0 0.0
    %52 = vmatpush1.msra.mxu0 %v34
    %53 = vmatprep.subr.mxu0 0.0
    %54 = vmatpush1.msra.mxu0 %v33
    %55 = vmatprep.subr.mxu0 0.0
    %56 = vmatpush1.msra.mxu0 %v32
    %57 = vmatprep.subr.mxu0 0.0
    %58 = vmatpush1.msra.mxu0 %v31
    %59 = vmatprep.subr.mxu0 0.0
    %60 = vmatpush1.msra.mxu0 %v30
    %61 = vmatprep.subr.mxu0 0.0
    %62 = vmatpush1.msra.mxu0 %v29
    %63 = vmatprep.subr.mxu0 0.0
    %64 = vmatpush1.msra.mxu0 %v28
    %65 = vmatprep.subr.mxu0 0.0
    %66 = vmatpush1.msra.mxu0 %v27
    %67 = vmatprep.subr.mxu0 0.0
    %68 = vmatpush1.msra.mxu0 %v26
    %69 = vmatprep.subr.mxu0 0.0
    %70 = vmatpush1.msra.mxu0 %v25
    %71 = vmatprep.subr.mxu0 0.0
    %72 = vmatpush1.msra.mxu0 %v24
    %73 = vmatprep.subr.mxu0 0.0
    %74 = vmatpush1.msra.mxu0 %v23
    %75 = vmatprep.subr.mxu0 0.0
    %76 = vmatpush1.msra.mxu0 %v22
    %77 = vmatprep.subr.mxu0 0.0
    %78 = vmatpush2.msra.mxu0 0.0
    %79 = vmatprep.subr.mxu0 0.0
    %80 = vmatpush2.msra.mxu0 0.0
    %81 = vmatprep.subr.mxu0 0.0
    %82 = vmatpush2.msra.mxu0 0.0
    %83 = vmatprep.subr.mxu0 0.0
    %84 = vmatpush2.msra.mxu0 0.0
    %85 = vmatprep.subr.mxu0 0.0
    %86 = vmatpush2.msra.mxu0 0.0
    %87 = vmatprep.subr.mxu0 0.0
    %88 = vmatpush2.msra.mxu0 0.0
    %89 = vmatprep.subr.mxu0 0.0
    %90 = vmatpush2.msra.mxu0 0.0
    %91 = vmatprep.subr.mxu0 0.0
    %92 = vmatpush2.msra.mxu0 0.0
    %93 = vmatprep.subr.mxu0 0.0
    %94 = vmatpush2.msra.mxu0 0.0
    %95 = vmatprep.subr.mxu0 0.0
    %96 = vmatpush2.msra.mxu0 0.0
    %97 = vmatprep.subr.mxu0 0.0
    %98 = vmatpush2.msra.mxu0 0.0
    %99 = vmatprep.subr.mxu0 0.0
    %100 = vmatpush2.msra.mxu0 0.0
    %101 = vmatprep.subr.mxu0 0.0
    %102 = vmatpush2.msra.mxu0 0.0
    %103 = vmatprep.subr.mxu0 0.0
    %104 = vmatpush2.msra.mxu0 0.0
    %105 = vmatprep.subr.mxu0 0.0
    %106 = vmatpush2.msra.mxu0 0.0
    %107 = vmatprep.subr.mxu0 0.0
    %108 = vmatpush2.msra.mxu0 0.0
    %109 = vmatprep.mubr.f32.mxu0 0.0
    %110 = vmatmul.mubr.f32.gmra.mxu0 %v21
    %v111 = vpop.f32.mrf.mxu0
    %v112 = vadd.f32 %v43, %v111
    %v113 = vpop.f32.mrf.mxu0
    %114 = vdwg.mxu0
    %v115 = vtanh.pop %v112
    %v116 = vld [vmem:[%s3] sm:$0xff]
    %v117 = vld [vmem:[%s3 + $0x8] sm:$0xff]
    %v118 = vld [vmem:[%s3 + $0x10] sm:$0xff]
    %v119 = vld [vmem:[%s3 + $0x18] sm:$0xff]
    %v120 = vld [vmem:[%s3 + $0x20] sm:$0xff]
    %v121 = vld [vmem:[%s3 + $0x28] sm:$0xff]
    %v122 = vld [vmem:[%s3 + $0x30] sm:$0xff]
    %v123 = vld [vmem:[%s3 + $0x38] sm:$0xff]
    %v124 = vld [vmem:[%s3 + $0x40] sm:$0xff]
    %v125 = vld [vmem:[%s3 + $0x48] sm:$0xff]
    %v126 = vld [vmem:[%s3 + $0x50] sm:$0xff]
    %v127 = vld [vmem:[%s3 + $0x58] sm:$0xff]
    %v128 = vld [vmem:[%s3 + $0x60] sm:$0xff]
    %v129 = vld [vmem:[%s3 + $0x68] sm:$0xff]
    %v130 = vld [vmem:[%s3 + $0x70] sm:$0xff]
    %v131 = vld [vmem:[%s3 + $0x78] sm:$0xff]
    %v132 = vld [vmem:[%s4] sm:$0x1]
    %v134 = vlaneseq
    %v135 = vshrl.u32 %v134, 7
    %v136 = vsub.s32 0, %v135
    %v137 = vrot.slane %v132, %v136
    %139 = vmatprep.subr.mxu0 0.0
    %140 = vmatpush1.msra.mxu0 %v131
    %141 = vmatprep.subr.mxu0 0.0
    %142 = vmatpush1.msra.mxu0 %v130
    %143 = vmatprep.subr.mxu0 0.0
    %144 = vmatpush1.msra.mxu0 %v129
    %145 = vmatprep.subr.mxu0 0.0
    %146 = vmatpush1.msra.mxu0 %v128
    %147 = vmatprep.subr.mxu0 0.0
    %148 = vmatpush1.msra.mxu0 %v127
    %149 = vmatprep.subr.mxu0 0.0
    %150 = vmatpush1.msra.mxu0 %v126
    %151 = vmatprep.subr.mxu0 0.0
    %152 = vmatpush1.msra.mxu0 %v125
    %153 = vmatprep.subr.mxu0 0.0
    %154 = vmatpush1.msra.mxu0 %v124
    %155 = vmatprep.subr.mxu0 0.0
    %156 = vmatpush1.msra.mxu0 %v123
    %157 = vmatprep.subr.mxu0 0.0
    %158 = vmatpush1.msra.mxu0 %v122
    %159 = vmatprep.subr.mxu0 0.0
    %160 = vmatpush1.msra.mxu0 %v121
    %161 = vmatprep.subr.mxu0 0.0
    %162 = vmatpush1.msra.mxu0 %v120
    %163 = vmatprep.subr.mxu0 0.0
    %164 = vmatpush1.msra.mxu0 %v119
    %165 = vmatprep.subr.mxu0 0.0
    %166 = vmatpush1.msra.mxu0 %v118
    %167 = vmatprep.subr.mxu0 0.0
    %168 = vmatpush1.msra.mxu0 %v117
    %169 = vmatprep.subr.mxu0 0.0
    %170 = vmatpush1.msra.mxu0 %v116
    %171 = vmatprep.subr.mxu0 0.0
    %172 = vmatpush2.msra.mxu0 0.0
    %173 = vmatprep.subr.mxu0 0.0
    %174 = vmatpush2.msra.mxu0 0.0
    %175 = vmatprep.subr.mxu0 0.0
    %176 = vmatpush2.msra.mxu0 0.0
    %177 = vmatprep.subr.mxu0 0.0
    %178 = vmatpush2.msra.mxu0 0.0
    %179 = vmatprep.subr.mxu0 0.0
    %180 = vmatpush2.msra.mxu0 0.0
    %181 = vmatprep.subr.mxu0 0.0
    %182 = vmatpush2.msra.mxu0 0.0
    %183 = vmatprep.subr.mxu0 0.0
    %184 = vmatpush2.msra.mxu0 0.0
    %185 = vmatprep.subr.mxu0 0.0
    %186 = vmatpush2.msra.mxu0 0.0
    %187 = vmatprep.subr.mxu0 0.0
    %188 = vmatpush2.msra.mxu0 0.0
    %189 = vmatprep.subr.mxu0 0.0
    %190 = vmatpush2.msra.mxu0 0.0
    %191 = vmatprep.subr.mxu0 0.0
    %192 = vmatpush2.msra.mxu0 0.0
    %193 = vmatprep.subr.mxu0 0.0
    %194 = vmatpush2.msra.mxu0 0.0
    %195 = vmatprep.subr.mxu0 0.0
    %196 = vmatpush2.msra.mxu0 0.0
    %197 = vmatprep.subr.mxu0 0.0
    %198 = vmatpush2.msra.mxu0 0.0
    %199 = vmatprep.subr.mxu0 0.0
    %200 = vmatpush2.msra.mxu0 0.0
    %201 = vmatprep.subr.mxu0 0.0
    %202 = vmatpush2.msra.mxu0 0.0
    %203 = vmatprep.mubr.f32.mxu0 0.0
    %204 = vmatmul.mubr.f32.gmra.mxu0 %v115
    %v205 = vpop.f32.mrf.mxu0
    %v206 = vadd.f32 %v137, %v205
    %v207 = vpop.f32.mrf.mxu0
    %208 = vdwg.mxu0
    %209 = vst [vmem:[#allocation2] sm:$0x3] %v206
    // Predicated region
    $region22: #{duygu_analizi_forward.7} parent=1 // pred_check
      _
    $region23: #{duygu_analizi_forward.7} parent=1 // pred_check_branch
      %211 = sbr.rel (0) target = $region25
    $region24: #{duygu_analizi_forward.7} parent=1 // pred_region
      %s213 = ssub.s32 32, 32
      %214 = vsyncadd [#allocation3], %s213
      %s216 = sshll.u32 [#allocation2], 4
      %s217 = int_to_ptr.vmem [resolvable:$true] %s216
      %219 = dma.vmem_to_hbm [thread:$0]  %s217, 32, %s5, [#allocation3]
    $region25: #{duygu_analizi_forward.7} parent=1 // pred_fallthru
      _
    // Predicated region
    $region26: #{duygu_analizi_forward.7} parent=1 // pred_check
      _
    $region27: #{duygu_analizi_forward.7} parent=1 // pred_check_branch
      %221 = sbr.rel (0) target = $region29
    $region28: #{duygu_analizi_forward.7} parent=1 // pred_region
      %222 = dma.done [#allocation3], 32
    $region29: #{duygu_analizi_forward.7} parent=1 // pred_fallthru
      _
    %223 = vsyncpa [#allocation3], 1

// kernel: duygu_analizi_forward.5
$region0: #{duygu_analizi_forward.5}
  #allocation0 [shape = 'u32[]', space=smem, size = 0x4, offset = 0x4, fixed_abs, tag = 'smem constant byte address 0x4 - core index']
  #allocation1 [shape = 'u32[144,128]{1,0:T(1,128)}', space=vmem, size = 0x12000, scoped, tag = 'internal scratch']
  #allocation2 [shape = 'f32[8,128]{1,0:T(8,128)}', space=vmem, size = 0x1000, scoped, tag = 'scratch operand']
  %s0 = inlined_call_operand.vmem [shape: f32[16,128], index: 0, kind: input, shape index: {}]
  %s1 = inlined_call_operand.vmem [shape: f32[2,1,8], index: 1, kind: input, shape index: {}]
  %s2 = inlined_call_operand.vmem [shape: f32[128,384], index: 2, kind: input, shape index: {}]
  %s3 = inlined_call_operand.vmem [shape: f32[1,384], index: 3, kind: input, shape index: {}]
  %s4 = inlined_call_operand.hbm [shape: f32[128,128], index: 4, kind: input, shape index: {}]
  %s5 = inlined_call_operand.vmem [shape: f32[1,128], index: 5, kind: input, shape index: {}]
  %s6 = inlined_call_operand.vmem [shape: f32[1,128], index: 6, kind: input, shape index: {}]
  %s7 = inlined_call_operand.vmem [shape: f32[1,128], index: 7, kind: input, shape index: {}]
  %s8 = inlined_call_operand.vmem [shape: f32[128,512], index: 8, kind: input, shape index: {}]
  %s9 = inlined_call_operand.vmem [shape: f32[1,512], index: 9, kind: input, shape index: {}]
  %s10 = inlined_call_operand.vmem [shape: f32[512,128], index: 10, kind: input, shape index: {}]
  %s11 = inlined_call_operand.vmem [shape: f32[1,128], index: 11, kind: input, shape index: {}]
  %s12 = inlined_call_operand.vmem [shape: f32[1,128], index: 12, kind: input, shape index: {}]
  %s13 = inlined_call_operand.vmem [shape: f32[1,128], index: 13, kind: input, shape index: {}]
  %s14 = inlined_call_operand.vmem [shape: f32[16,128], index: 14, kind: output, shape index: {}]
  %s15 = sld [smem:[#allocation0]]
  $region93: #{duygu_analizi_forward.5} parent=0
    _
  %s17 = ssub.s32 1, %s15
  %s18 = scalar_select 0, %s17, %s15
  $region1: #{duygu_analizi_forward.5} parent=0
    #allocation3 [shape = 'u8[65536]{0}', space=vmem, size = 0x10000, scoped, tag = 'input window, operand 4, single buffered']
    #allocation4 [shape = 's32[2]{0}', space=sflag, size = 0x8, scoped, tag = 'scoped memory for duygu_analizi_forward.5']
    %19 = vsyncpa [#allocation4], 0
    loop: start=0, step=1, limit=4
    $region2: #{duygu_analizi_forward.5} parent=1 // loop_pre_header
      _
    $region3: #{duygu_analizi_forward.5} parent=1 // loop_header
      %s21 = sphi 0, %s25
      %p22 = scmp.ge.s32.totalorder %s21, 4
      %s31 = sphi 0, %s33
      %s34 = sphi 0, %s31
      %s35 = sphi 0, %s34
      %s51 = sphi 0, %s35
      %s57 = sphi 0, %s59
      %s60 = sphi 0, %s57
      %s61 = sphi 0, %s60
      %s77 = sphi 0, %s61
      %s81 = sphi 0, %s81
      %s83 = sphi 0, %s81
      %s84 = sphi 0, %s83
      %s98 = sphi 0, %s84
      %s102 = sphi 0, %s102
      %s104 = sphi 0, %s102
      %s105 = sphi 0, %s104
      %s119 = sphi 0, %s105
      %s123 = sphi 0, %s123
      %s125 = sphi 0, %s123
      %s126 = sphi 0, %s125
      %s140 = sphi 0, %s126
      %s144 = sphi 0, %s144
      %s146 = sphi 0, %s144
      %s147 = sphi 0, %s146
      %s161 = sphi 0, %s147
      %s165 = sphi 0, %s165
      %s167 = sphi 0, %s165
      %s168 = sphi 0, %s167
      %s182 = sphi 0, %s168
      %s186 = sphi 0, %s186
      %s188 = sphi 0, %s186
      %s189 = sphi 0, %s188
      %s203 = sphi 0, %s189
      %s207 = sphi 0, %s207
      %s209 = sphi 0, %s207
      %s210 = sphi 0, %s209
      %s224 = sphi 0, %s210
      %s228 = sphi 0, %s228
      %s230 = sphi 0, %s228
      %s231 = sphi 0, %s230
      %s245 = sphi 0, %s231
      %s249 = sphi 0, %s249
      %s251 = sphi 0, %s249
      %s252 = sphi 0, %s251
      %s266 = sphi 0, %s252
      %s270 = sphi 0, %s270
      %s272 = sphi 0, %s270
      %s273 = sphi 0, %s272
      %s287 = sphi 0, %s273
      %s291 = sphi 0, %s291
      %s293 = sphi 0, %s291
      %s294 = sphi 0, %s293
      %s308 = sphi 0, %s294
      %s312 = sphi 0, %s312
      %s314 = sphi 0, %s312
      %s315 = sphi 0, %s314
      %s329 = sphi 0, %s315
      %s335 = sphi 0, %s337
      %s338 = sphi 0, %s335
      %s339 = sphi 0, %s338
      %s355 = sphi 0, %s339
    $region4: #{duygu_analizi_forward.5} parent=1 // loop_header_branch
      %24 = sbr.rel (%p22) target = $region8
    $region5: #{duygu_analizi_forward.5} parent=1 // loop_body
      %s26 = ssub.s32 %s21, 1
      %s27 = ssub.s32 %s21, 2
      %s28 = sadd.s32 %s21, 1
      %s29 = ssub.s32 %s21, %s28
      %p30 = scmp.eq.s32.totalorder %s29, 0
      %s32 = sadd.s32 %s31, 1
      %s33 = scalar_select %p30, %s31, %s32
      %p36 = pneg %p30
      %p37 = scmp.eq.s32.totalorder %s21, 1
      %p38 = por %p36, %p37
      %p39 = scmp.ne.s32.totalorder %s31, %s34
      %p40 = scmp.eq.s32.totalorder %s21, 0
      %p41 = por %p39, %p40
      %p42 = scmp.ne.s32.totalorder %s31, %s34
      %p43 = scmp.eq.s32.totalorder %s26, 1
      %p44 = por %p42, %p43
      %p45 = scmp.ne.s32.totalorder %s34, %s35
      %p46 = scmp.eq.s32.totalorder %s26, 0
      %p47 = por %p45, %p46
      %p48 = scmp.ne.s32.totalorder %s34, %s35
      %p49 = scmp.eq.s32.totalorder %s27, 1
      %p50 = por %p48, %p49
      %p52 = scmp.ne.s32.totalorder %s35, %s51
      %p53 = scmp.eq.s32.totalorder %s27, 0
      %p54 = por %p52, %p53
      %s55 = ssub.s32 %s21, %s28
      %p56 = scmp.eq.s32.totalorder %s55, 0
      %s58 = sadd.s32 %s57, 1
      %s59 = scalar_select %p56, %s57, %s58
      %p62 = pneg %p56
      %p63 = scmp.eq.s32.totalorder %s21, 1
      %p64 = por %p62, %p63
      %p65 = scmp.ne.s32.totalorder %s57, %s60
      %p66 = scmp.eq.s32.totalorder %s21, 0
      %p67 = por %p65, %p66
      %p68 = scmp.ne.s32.totalorder %s57, %s60
      %p69 = scmp.eq.s32.totalorder %s26, 1
      %p70 = por %p68, %p69
      %p71 = scmp.ne.s32.totalorder %s60, %s61
      %p72 = scmp.eq.s32.totalorder %s26, 0
      %p73 = por %p71, %p72
      %p74 = scmp.ne.s32.totalorder %s60, %s61
      %p75 = scmp.eq.s32.totalorder %s27, 1
      %p76 = por %p74, %p75
      %p78 = scmp.ne.s32.totalorder %s61, %s77
      %p79 = scmp.eq.s32.totalorder %s27, 0
      %p80 = por %p78, %p79
      %s82 = sadd.s32 %s81, 1
      %p85 = scmp.eq.s32.totalorder %s21, 1
      %p86 = scmp.ne.s32.totalorder %s81, %s83
      %p87 = scmp.eq.s32.totalorder %s21, 0
      %p88 = por %p86, %p87
      %p89 = scmp.ne.s32.totalorder %s81, %s83
      %p90 = scmp.eq.s32.totalorder %s26, 1
      %p91 = por %p89, %p90
      %p92 = scmp.ne.s32.totalorder %s83, %s84
      %p93 = scmp.eq.s32.totalorder %s26, 0
      %p94 = por %p92, %p93
      %p95 = scmp.ne.s32.totalorder %s83, %s84
      %p96 = scmp.eq.s32.totalorder %s27, 1
      %p97 = por %p95, %p96
      %p99 = scmp.ne.s32.totalorder %s84, %s98
      %p100 = scmp.eq.s32.totalorder %s27, 0
      %p101 = por %p99, %p100
      %s103 = sadd.s32 %s102, 1
      %p106 = scmp.eq.s32.totalorder %s21, 1
      %p107 = scmp.ne.s32.totalorder %s102, %s104
      %p108 = scmp.eq.s32.totalorder %s21, 0
      %p109 = por %p107, %p108
      %p110 = scmp.ne.s32.totalorder %s102, %s104
      %p111 = scmp.eq.s32.totalorder %s26, 1
      %p112 = por %p110, %p111
      %p113 = scmp.ne.s32.totalorder %s104, %s105
      %p114 = scmp.eq.s32.totalorder %s26, 0
      %p115 = por %p113, %p114
      %p116 = scmp.ne.s32.totalorder %s104, %s105
      %p117 = scmp.eq.s32.totalorder %s27, 1
      %p118 = por %p116, %p117
      %p120 = scmp.ne.s32.totalorder %s105, %s119
      %p121 = scmp.eq.s32.totalorder %s27, 0
      %p122 = por %p120, %p121
      %s124 = sadd.s32 %s123, 1
      %p127 = scmp.eq.s32.totalorder %s21, 1
      %p128 = scmp.ne.s32.totalorder %s123, %s125
      %p129 = scmp.eq.s32.totalorder %s21, 0
      %p130 = por %p128, %p129
      %p131 = scmp.ne.s32.totalorder %s123, %s125
      %p132 = scmp.eq.s32.totalorder %s26, 1
      %p133 = por %p131, %p132
      %p134 = scmp.ne.s32.totalorder %s125, %s126
      %p135 = scmp.eq.s32.totalorder %s26, 0
      %p136 = por %p134, %p135
      %p137 = scmp.ne.s32.totalorder %s125, %s126
      %p138 = scmp.eq.s32.totalorder %s27, 1
      %p139 = por %p137, %p138
      %p141 = scmp.ne.s32.totalorder %s126, %s140
      %p142 = scmp.eq.s32.totalorder %s27, 0
      %p143 = por %p141, %p142
      %s145 = sadd.s32 %s144, 1
      %p148 = scmp.eq.s32.totalorder %s21, 1
      %p149 = scmp.ne.s32.totalorder %s144, %s146
      %p150 = scmp.eq.s32.totalorder %s21, 0
      %p151 = por %p149, %p150
      %p152 = scmp.ne.s32.totalorder %s144, %s146
      %p153 = scmp.eq.s32.totalorder %s26, 1
      %p154 = por %p152, %p153
      %p155 = scmp.ne.s32.totalorder %s146, %s147
      %p156 = scmp.eq.s32.totalorder %s26, 0
      %p157 = por %p155, %p156
      %p158 = scmp.ne.s32.totalorder %s146, %s147
      %p159 = scmp.eq.s32.totalorder %s27, 1
      %p160 = por %p158, %p159
      %p162 = scmp.ne.s32.totalorder %s147, %s161
      %p163 = scmp.eq.s32.totalorder %s27, 0
      %p164 = por %p162, %p163
      %s166 = sadd.s32 %s165, 1
      %p169 = scmp.eq.s32.totalorder %s21, 1
      %p170 = scmp.ne.s32.totalorder %s165, %s167
      %p171 = scmp.eq.s32.totalorder %s21, 0
      %p172 = por %p170, %p171
      %p173 = scmp.ne.s32.totalorder %s165, %s167
      %p174 = scmp.eq.s32.totalorder %s26, 1
      %p175 = por %p173, %p174
      %p176 = scmp.ne.s32.totalorder %s167, %s168
      %p177 = scmp.eq.s32.totalorder %s26, 0
      %p178 = por %p176, %p177
      %p179 = scmp.ne.s32.totalorder %s167, %s168
      %p180 = scmp.eq.s32.totalorder %s27, 1
      %p181 = por %p179, %p180
      %p183 = scmp.ne.s32.totalorder %s168, %s182
      %p184 = scmp.eq.s32.totalorder %s27, 0
      %p185 = por %p183, %p184
      %s187 = sadd.s32 %s186, 1
      %p190 = scmp.eq.s32.totalorder %s21, 1
      %p191 = scmp.ne.s32.totalorder %s186, %s188
      %p192 = scmp.eq.s32.totalorder %s21, 0
      %p193 = por %p191, %p192
      %p194 = scmp.ne.s32.totalorder %s186, %s188
      %p195 = scmp.eq.s32.totalorder %s26, 1
      %p196 = por %p194, %p195
      %p197 = scmp.ne.s32.totalorder %s188, %s189
      %p198 = scmp.eq.s32.totalorder %s26, 0
      %p199 = por %p197, %p198
      %p200 = scmp.ne.s32.totalorder %s188, %s189
      %p201 = scmp.eq.s32.totalorder %s27, 1
      %p202 = por %p200, %p201
      %p204 = scmp.ne.s32.totalorder %s189, %s203
      %p205 = scmp.eq.s32.totalorder %s27, 0
      %p206 = por %p204, %p205
      %s208 = sadd.s32 %s207, 1
      %p211 = scmp.eq.s32.totalorder %s21, 1
      %p212 = scmp.ne.s32.totalorder %s207, %s209
      %p213 = scmp.eq.s32.totalorder %s21, 0
      %p214 = por %p212, %p213
      %p215 = scmp.ne.s32.totalorder %s207, %s209
      %p216 = scmp.eq.s32.totalorder %s26, 1
      %p217 = por %p215, %p216
      %p218 = scmp.ne.s32.totalorder %s209, %s210
      %p219 = scmp.eq.s32.totalorder %s26, 0
      %p220 = por %p218, %p219
      %p221 = scmp.ne.s32.totalorder %s209, %s210
      %p222 = scmp.eq.s32.totalorder %s27, 1
      %p223 = por %p221, %p222
      %p225 = scmp.ne.s32.totalorder %s210, %s224
      %p226 = scmp.eq.s32.totalorder %s27, 0
      %p227 = por %p225, %p226
      %s229 = sadd.s32 %s228, 1
      %p232 = scmp.eq.s32.totalorder %s21, 1
      %p233 = scmp.ne.s32.totalorder %s228, %s230
      %p234 = scmp.eq.s32.totalorder %s21, 0
      %p235 = por %p233, %p234
      %p236 = scmp.ne.s32.totalorder %s228, %s230
      %p237 = scmp.eq.s32.totalorder %s26, 1
      %p238 = por %p236, %p237
      %p239 = scmp.ne.s32.totalorder %s230, %s231
      %p240 = scmp.eq.s32.totalorder %s26, 0
      %p241 = por %p239, %p240
      %p242 = scmp.ne.s32.totalorder %s230, %s231
      %p243 = scmp.eq.s32.totalorder %s27, 1
      %p244 = por %p242, %p243
      %p246 = scmp.ne.s32.totalorder %s231, %s245
      %p247 = scmp.eq.s32.totalorder %s27, 0
      %p248 = por %p246, %p247
      %s250 = sadd.s32 %s249, 1
      %p253 = scmp.eq.s32.totalorder %s21, 1
      %p254 = scmp.ne.s32.totalorder %s249, %s251
      %p255 = scmp.eq.s32.totalorder %s21, 0
      %p256 = por %p254, %p255
      %p257 = scmp.ne.s32.totalorder %s249, %s251
      %p258 = scmp.eq.s32.totalorder %s26, 1
      %p259 = por %p257, %p258
      %p260 = scmp.ne.s32.totalorder %s251, %s252
      %p261 = scmp.eq.s32.totalorder %s26, 0
      %p262 = por %p260, %p261
      %p263 = scmp.ne.s32.totalorder %s251, %s252
      %p264 = scmp.eq.s32.totalorder %s27, 1
      %p265 = por %p263, %p264
      %p267 = scmp.ne.s32.totalorder %s252, %s266
      %p268 = scmp.eq.s32.totalorder %s27, 0
      %p269 = por %p267, %p268
      %s271 = sadd.s32 %s270, 1
      %p274 = scmp.eq.s32.totalorder %s21, 1
      %p275 = scmp.ne.s32.totalorder %s270, %s272
      %p276 = scmp.eq.s32.totalorder %s21, 0
      %p277 = por %p275, %p276
      %p278 = scmp.ne.s32.totalorder %s270, %s272
      %p279 = scmp.eq.s32.totalorder %s26, 1
      %p280 = por %p278, %p279
      %p281 = scmp.ne.s32.totalorder %s272, %s273
      %p282 = scmp.eq.s32.totalorder %s26, 0
      %p283 = por %p281, %p282
      %p284 = scmp.ne.s32.totalorder %s272, %s273
      %p285 = scmp.eq.s32.totalorder %s27, 1
      %p286 = por %p284, %p285
      %p288 = scmp.ne.s32.totalorder %s273, %s287
      %p289 = scmp.eq.s32.totalorder %s27, 0
      %p290 = por %p288, %p289
      %s292 = sadd.s32 %s291, 1
      %p295 = scmp.eq.s32.totalorder %s21, 1
      %p296 = scmp.ne.s32.totalorder %s291, %s293
      %p297 = scmp.eq.s32.totalorder %s21, 0
      %p298 = por %p296, %p297
      %p299 = scmp.ne.s32.totalorder %s291, %s293
      %p300 = scmp.eq.s32.totalorder %s26, 1
      %p301 = por %p299, %p300
      %p302 = scmp.ne.s32.totalorder %s293, %s294
      %p303 = scmp.eq.s32.totalorder %s26, 0
      %p304 = por %p302, %p303
      %p305 = scmp.ne.s32.totalorder %s293, %s294
      %p306 = scmp.eq.s32.totalorder %s27, 1
      %p307 = por %p305, %p306
      %p309 = scmp.ne.s32.totalorder %s294, %s308
      %p310 = scmp.eq.s32.totalorder %s27, 0
      %p311 = por %p309, %p310
      %s313 = sadd.s32 %s312, 1
      %p316 = scmp.eq.s32.totalorder %s21, 1
      %p317 = scmp.ne.s32.totalorder %s312, %s314
      %p318 = scmp.eq.s32.totalorder %s21, 0
      %p319 = por %p317, %p318
      %p320 = scmp.ne.s32.totalorder %s312, %s314
      %p321 = scmp.eq.s32.totalorder %s26, 1
      %p322 = por %p320, %p321
      %p323 = scmp.ne.s32.totalorder %s314, %s315
      %p324 = scmp.eq.s32.totalorder %s26, 0
      %p325 = por %p323, %p324
      %p326 = scmp.ne.s32.totalorder %s314, %s315
      %p327 = scmp.eq.s32.totalorder %s27, 1
      %p328 = por %p326, %p327
      %p330 = scmp.ne.s32.totalorder %s315, %s329
      %p331 = scmp.eq.s32.totalorder %s27, 0
      %p332 = por %p330, %p331
      %s333 = ssub.s32 %s21, %s28
      %p334 = scmp.eq.s32.totalorder %s333, 0
      %s336 = sadd.s32 %s335, 1
      %s337 = scalar_select %p334, %s335, %s336
      %p340 = pneg %p334
      %p341 = scmp.eq.s32.totalorder %s21, 1
      %p342 = por %p340, %p341
      %p343 = scmp.ne.s32.totalorder %s335, %s338
      %p344 = scmp.eq.s32.totalorder %s21, 0
      %p345 = por %p343, %p344
      %p346 = scmp.ne.s32.totalorder %s335, %s338
      %p347 = scmp.eq.s32.totalorder %s26, 1
      %p348 = por %p346, %p347
      %p349 = scmp.ne.s32.totalorder %s338, %s339
      %p350 = scmp.eq.s32.totalorder %s26, 0
      %p351 = por %p349, %p350
      %p352 = scmp.ne.s32.totalorder %s338, %s339
      %p353 = scmp.eq.s32.totalorder %s27, 1
      %p354 = por %p352, %p353
      %p356 = scmp.ne.s32.totalorder %s339, %s355
      %p357 = scmp.eq.s32.totalorder %s27, 0
      %p358 = por %p356, %p357
      %p359 = scmp.le.s32.totalorder 1, %s21
      %p360 = scmp.lt.s32.totalorder %s21, 3
      %p361 = pnand %p359, %p360
      %p362 = pneg %p361
      // Predicated region
      $region9: #{duygu_analizi_forward.5} parent=5 // pred_check
        _
      $region10: #{duygu_analizi_forward.5} parent=5 // pred_check_branch
        %364 = sbr.rel (%p361) target = $region12
      $region11: #{duygu_analizi_forward.5} parent=5 // pred_region
        %s365 = ssub.s32 %s21, 1
        // Predicated region
        $region13: #{duygu_analizi_forward.5} parent=11 // pred_check
          %p366 = pneg %p94
        $region14: #{duygu_analizi_forward.5} parent=11 // pred_check_branch
          %368 = sbr.rel (%p366) target = $region16
        $region15: #{duygu_analizi_forward.5} parent=11 // pred_region
          _
        $region16: #{duygu_analizi_forward.5} parent=11 // pred_fallthru
          _
        // Predicated region
        $region17: #{duygu_analizi_forward.5} parent=11 // pred_check
          %p369 = pneg %p115
        $region18: #{duygu_analizi_forward.5} parent=11 // pred_check_branch
          %371 = sbr.rel (%p369) target = $region20
        $region19: #{duygu_analizi_forward.5} parent=11 // pred_region
          _
        $region20: #{duygu_analizi_forward.5} parent=11 // pred_fallthru
          _
        // Predicated region
        $region21: #{duygu_analizi_forward.5} parent=11 // pred_check
          %p372 = pneg %p136
        $region22: #{duygu_analizi_forward.5} parent=11 // pred_check_branch
          %374 = sbr.rel (%p372) target = $region24
        $region23: #{duygu_analizi_forward.5} parent=11 // pred_region
          %s376 = ssub.s32 2048, 2048
          %377 = vsyncadd [#allocation4], %s376
          %s378 = sshll.u32 [#allocation3], 4
          %s379 = int_to_ptr.vmem [resolvable:$true] %s378
          %384 = dma.hbm_to_vmem [thread:$0]  %s4, 2048, %s379, [#allocation4], 128, 128, 8
        $region24: #{duygu_analizi_forward.5} parent=11 // pred_fallthru
          _
        // Predicated region
        $region25: #{duygu_analizi_forward.5} parent=11 // pred_check
          %p385 = pneg %p157
        $region26: #{duygu_analizi_forward.5} parent=11 // pred_check_branch
          %387 = sbr.rel (%p385) target = $region28
        $region27: #{duygu_analizi_forward.5} parent=11 // pred_region
          _
        $region28: #{duygu_analizi_forward.5} parent=11 // pred_fallthru
          _
        // Predicated region
        $region29: #{duygu_analizi_forward.5} parent=11 // pred_check
          %p388 = pneg %p178
        $region30: #{duygu_analizi_forward.5} parent=11 // pred_check_branch
          %390 = sbr.rel (%p388) target = $region32
        $region31: #{duygu_analizi_forward.5} parent=11 // pred_region
          _
        $region32: #{duygu_analizi_forward.5} parent=11 // pred_fallthru
          _
        // Predicated region
        $region33: #{duygu_analizi_forward.5} parent=11 // pred_check
          %p391 = pneg %p199
        $region34: #{duygu_analizi_forward.5} parent=11 // pred_check_branch
          %393 = sbr.rel (%p391) target = $region36
        $region35: #{duygu_analizi_forward.5} parent=11 // pred_region
          _
        $region36: #{duygu_analizi_forward.5} parent=11 // pred_fallthru
          _
        // Predicated region
        $region37: #{duygu_analizi_forward.5} parent=11 // pred_check
          %p394 = pneg %p220
        $region38: #{duygu_analizi_forward.5} parent=11 // pred_check_branch
          %396 = sbr.rel (%p394) target = $region40
        $region39: #{duygu_analizi_forward.5} parent=11 // pred_region
          _
        $region40: #{duygu_analizi_forward.5} parent=11 // pred_fallthru
          _
        // Predicated region
        $region41: #{duygu_analizi_forward.5} parent=11 // pred_check
          %p397 = pneg %p241
        $region42: #{duygu_analizi_forward.5} parent=11 // pred_check_branch
          %399 = sbr.rel (%p397) target = $region44
        $region43: #{duygu_analizi_forward.5} parent=11 // pred_region
          _
        $region44: #{duygu_analizi_forward.5} parent=11 // pred_fallthru
          _
        // Predicated region
        $region45: #{duygu_analizi_forward.5} parent=11 // pred_check
          %p400 = pneg %p262
        $region46: #{duygu_analizi_forward.5} parent=11 // pred_check_branch
          %402 = sbr.rel (%p400) target = $region48
        $region47: #{duygu_analizi_forward.5} parent=11 // pred_region
          _
        $region48: #{duygu_analizi_forward.5} parent=11 // pred_fallthru
          _
        // Predicated region
        $region49: #{duygu_analizi_forward.5} parent=11 // pred_check
          %p403 = pneg %p283
        $region50: #{duygu_analizi_forward.5} parent=11 // pred_check_branch
          %405 = sbr.rel (%p403) target = $region52
        $region51: #{duygu_analizi_forward.5} parent=11 // pred_region
          _
        $region52: #{duygu_analizi_forward.5} parent=11 // pred_fallthru
          _
        // Predicated region
        $region53: #{duygu_analizi_forward.5} parent=11 // pred_check
          %p406 = pneg %p304
        $region54: #{duygu_analizi_forward.5} parent=11 // pred_check_branch
          %408 = sbr.rel (%p406) target = $region56
        $region55: #{duygu_analizi_forward.5} parent=11 // pred_region
          _
        $region56: #{duygu_analizi_forward.5} parent=11 // pred_fallthru
          _
        // Predicated region
        $region57: #{duygu_analizi_forward.5} parent=11 // pred_check
          %p409 = pneg %p325
        $region58: #{duygu_analizi_forward.5} parent=11 // pred_check_branch
          %411 = sbr.rel (%p409) target = $region60
        $region59: #{duygu_analizi_forward.5} parent=11 // pred_region
          _
        $region60: #{duygu_analizi_forward.5} parent=11 // pred_fallthru
          _
      $region12: #{duygu_analizi_forward.5} parent=5 // pred_fallthru
        _
      %p412 = scmp.lt.s32.totalorder %s21, 2
      // Predicated region
      $region61: #{duygu_analizi_forward.5} parent=5 // pred_check
        %p413 = pneg %p412
      $region62: #{duygu_analizi_forward.5} parent=5 // pred_check_branch
        %415 = sbr.rel (%p413) target = $region64
      $region63: #{duygu_analizi_forward.5} parent=5 // pred_region
        // Predicated region
        $region65: #{duygu_analizi_forward.5} parent=63 // pred_check
          %p416 = pneg %p41
        $region66: #{duygu_analizi_forward.5} parent=63 // pred_check_branch
          %418 = sbr.rel (%p416) target = $region68
        $region67: #{duygu_analizi_forward.5} parent=63 // pred_region
          %p419 = scmp.lt.s32.totalorder %s21, 1
          %s420 = scalar_select %p419, %s21, 1
          %s421 = smul.addr %s420, 8
          %s422 = scalar_lea.vmem %s0, %s421
        $region68: #{duygu_analizi_forward.5} parent=63 // pred_fallthru
          _
        // Predicated region
        $region69: #{duygu_analizi_forward.5} parent=63 // pred_check
          %p423 = pneg %p67
        $region70: #{duygu_analizi_forward.5} parent=63 // pred_check_branch
          %425 = sbr.rel (%p423) target = $region72
        $region71: #{duygu_analizi_forward.5} parent=63 // pred_region
          %p426 = scmp.lt.s32.totalorder %s21, 1
          %s427 = scalar_select %p426, %s21, 1
          %s428 = scalar_lea.vmem %s1, %s427
        $region72: #{duygu_analizi_forward.5} parent=63 // pred_fallthru
          _
      $region64: #{duygu_analizi_forward.5} parent=5 // pred_fallthru
        _
      %p429 = scmp.le.s32.totalorder 1, %s21
      %p430 = scmp.lt.s32.totalorder %s21, 3
      %p431 = pnand %p429, %p430
      %p432 = pneg %p431
      // Predicated region
      $region73: #{duygu_analizi_forward.5} parent=5 // pred_check
        _
      $region74: #{duygu_analizi_forward.5} parent=5 // pred_check_branch
        %434 = sbr.rel (%p431) target = $region76
      $region75: #{duygu_analizi_forward.5} parent=5 // pred_region
        %s435 = ssub.s32 %s21, 1
        // Predicated region
        $region77: #{duygu_analizi_forward.5} parent=75 // pred_check
          %p436 = pneg %p136
        $region78: #{duygu_analizi_forward.5} parent=75 // pred_check_branch
          %438 = sbr.rel (%p436) target = $region80
        $region79: #{duygu_analizi_forward.5} parent=75 // pred_region
          %439 = dma.done [#allocation4], 2048
        $region80: #{duygu_analizi_forward.5} parent=75 // pred_fallthru
          _
        %p440 = scmp.lt.s32.totalorder %s26, 1
        %s441 = scalar_select %p440, %s26, 1
        %s442 = smul.addr %s441, 8
        %s443 = scalar_lea.vmem %s0, %s442
        %p444 = pneg %p47
        %p445 = pneg %p44
        %p446 = scmp.lt.s32.totalorder %s26, 1
        %s447 = scalar_select %p446, %s26, 1
        %s448 = scalar_lea.vmem %s1, %s447
        %p449 = pneg %p73
        %p450 = pneg %p70
        %p451 = pneg %p94
        %p452 = pneg %p91
        %p453 = pneg %p115
        %p454 = pneg %p112
        %p455 = pneg %p136
        %p456 = pneg %p133
        %p457 = pneg %p157
        %p458 = pneg %p154
        %p459 = pneg %p178
        %p460 = pneg %p175
        %p461 = pneg %p199
        %p462 = pneg %p196
        %p463 = pneg %p220
        %p464 = pneg %p217
        %p465 = pneg %p241
        %p466 = pneg %p238
        %p467 = pneg %p262
        %p468 = pneg %p259
        %p469 = pneg %p283
        %p470 = pneg %p280
        %p471 = pneg %p304
        %p472 = pneg %p301
        %p473 = pneg %p325
        %p474 = pneg %p322
        %p475 = pneg %p351
        %p476 = pneg %p348
        %p477 = scmp.lt.s32.totalorder %s26, 1
        %s478 = scalar_select %p477, %s26, 1
        %s479 = smul.addr %s478, 8
        %s480 = scalar_lea.vmem %s14, %s479
        %p481 = scmp.lt.s32.totalorder %s26, 1
        %s482 = scalar_select %p481, %s26, 1
        %s483 = smul.addr %s482, 8
        %s484 = scalar_lea.vmem %s0, %s483
        %p485 = scmp.lt.s32.totalorder %s26, 1
        %s486 = scalar_select %p485, %s26, 1
        %s487 = scalar_lea.vmem %s1, %s486
        %p488 = scmp.lt.s32.totalorder %s26, 1
        %s489 = scalar_select %p488, %s26, 1
        %s490 = smul.addr %s489, 8
        %s491 = scalar_lea.vmem %s14, %s490
        %v492 = vld [vmem:[%s484] sm:$0xff]
        %v493 = vld [vmem:[%s2] sm:$0xff]
        %v494 = vld [vmem:[%s2 + $0x8] sm:$0xff]
        %v495 = vld [vmem:[%s2 + $0x10] sm:$0xff]
        %v496 = vld [vmem:[%s2 + $0x18] sm:$0xff]
        %v497 = vld [vmem:[%s2 + $0x20] sm:$0xff]
        %v498 = vld [vmem:[%s2 + $0x28] sm:$0xff]
        %v499 = vld [vmem:[%s2 + $0x30] sm:$0xff]
        %v500 = vld [vmem:[%s2 + $0x38] sm:$0xff]
        %v501 = vld [vmem:[%s2 + $0x40] sm:$0xff]
        %v502 = vld [vmem:[%s2 + $0x48] sm:$0xff]
        %v503 = vld [vmem:[%s2 + $0x50] sm:$0xff]
        %v504 = vld [vmem:[%s2 + $0x58] sm:$0xff]
        %v505 = vld [vmem:[%s2 + $0x60] sm:$0xff]
        %v506 = vld [vmem:[%s2 + $0x68] sm:$0xff]
        %v507 = vld [vmem:[%s2 + $0x70] sm:$0xff]
        %v508 = vld [vmem:[%s2 + $0x78] sm:$0xff]
        %v509 = vld [vmem:[%s2 + $0x80] sm:$0xff]
        %v510 = vld [vmem:[%s2 + $0x88] sm:$0xff]
        %v511 = vld [vmem:[%s2 + $0x90] sm:$0xff]
        %v512 = vld [vmem:[%s2 + $0x98] sm:$0xff]
        %v513 = vld [vmem:[%s2 + $0xa0] sm:$0xff]
        %v514 = vld [vmem:[%s2 + $0xa8] sm:$0xff]
        %v515 = vld [vmem:[%s2 + $0xb0] sm:$0xff]
        %v516 = vld [vmem:[%s2 + $0xb8] sm:$0xff]
        %v517 = vld [vmem:[%s2 + $0xc0] sm:$0xff]
        %v518 = vld [vmem:[%s2 + $0xc8] sm:$0xff]
        %v519 = vld [vmem:[%s2 + $0xd0] sm:$0xff]
        %v520 = vld [vmem:[%s2 + $0xd8] sm:$0xff]
        %v521 = vld [vmem:[%s2 + $0xe0] sm:$0xff]
        %v522 = vld [vmem:[%s2 + $0xe8] sm:$0xff]
        %v523 = vld [vmem:[%s2 + $0xf0] sm:$0xff]
        %v524 = vld [vmem:[%s2 + $0xf8] sm:$0xff]
        %v525 = vld [vmem:[%s2 + $0x100] sm:$0xff]
        %v526 = vld [vmem:[%s2 + $0x108] sm:$0xff]
        %v527 = vld [vmem:[%s2 + $0x110] sm:$0xff]
        %v528 = vld [vmem:[%s2 + $0x118] sm:$0xff]
        %v529 = vld [vmem:[%s2 + $0x120] sm:$0xff]
        %v530 = vld [vmem:[%s2 + $0x128] sm:$0xff]
        %v531 = vld [vmem:[%s2 + $0x130] sm:$0xff]
        %v532 = vld [vmem:[%s2 + $0x138] sm:$0xff]
        %v533 = vld [vmem:[%s2 + $0x140] sm:$0xff]
        %v534 = vld [vmem:[%s2 + $0x148] sm:$0xff]
        %v535 = vld [vmem:[%s2 + $0x150] sm:$0xff]
        %v536 = vld [vmem:[%s2 + $0x158] sm:$0xff]
        %v537 = vld [vmem:[%s2 + $0x160] sm:$0xff]
        %v538 = vld [vmem:[%s2 + $0x168] sm:$0xff]
        %v539 = vld [vmem:[%s2 + $0x170] sm:$0xff]
        %v540 = vld [vmem:[%s2 + $0x178] sm:$0xff]
        %v541 = vld [vmem:[%s3] sm:$0x7]
        %v543 = vlaneseq
        %v544 = vshrl.u32 %v543, 7
        %v545 = vsub.s32 0, %v544
        %v546 = vrot.slane %v541, %v545
        %v547 = vlaneseq
        %v548 = vshrl.u32 %v547, 7
        %v549 = vsub.s32 1, %v548
        %v550 = vrot.slane %v541, %v549
        %v551 = vlaneseq
        %v552 = vshrl.u32 %v551, 7
        %v553 = vsub.s32 2, %v552
        %v554 = vrot.slane %v541, %v553
        %558 = vmatprep.subr.mxu0 %v539
        %559 = vmatpush1.msra.mxu0 %v538
        %560 = vmatprep.subr.mxu0 %v536
        %561 = vmatpush1.msra.mxu0 %v535
        %562 = vmatprep.subr.mxu0 %v533
        %563 = vmatpush1.msra.mxu0 %v532
        %564 = vmatprep.subr.mxu0 %v530
        %565 = vmatpush1.msra.mxu0 %v529
        %566 = vmatprep.subr.mxu0 %v527
        %567 = vmatpush1.msra.mxu0 %v526
        %568 = vmatprep.subr.mxu0 %v524
        %569 = vmatpush1.msra.mxu0 %v523
        %570 = vmatprep.subr.mxu0 %v521
        %571 = vmatpush1.msra.mxu0 %v520
        %572 = vmatprep.subr.mxu0 %v518
        %573 = vmatpush1.msra.mxu0 %v517
        %574 = vmatprep.subr.mxu0 %v515
        %575 = vmatpush1.msra.mxu0 %v514
        %576 = vmatprep.subr.mxu0 %v512
        %577 = vmatpush1.msra.mxu0 %v511
        %578 = vmatprep.subr.mxu0 %v509
        %579 = vmatpush1.msra.mxu0 %v508
        %580 = vmatprep.subr.mxu0 %v506
        %581 = vmatpush1.msra.mxu0 %v505
        %582 = vmatprep.subr.mxu0 %v503
        %583 = vmatpush1.msra.mxu0 %v502
        %584 = vmatprep.subr.mxu0 %v500
        %585 = vmatpush1.msra.mxu0 %v499
        %586 = vmatprep.subr.mxu0 %v497
        %587 = vmatpush1.msra.mxu0 %v496
        %588 = vmatprep.subr.mxu0 %v494
        %589 = vmatpush1.msra.mxu0 %v493
        %590 = vmatprep.subr.mxu0 0.0
        %591 = vmatpush2.msra.mxu0 0.0
        %592 = vmatprep.subr.mxu0 0.0
        %593 = vmatpush2.msra.mxu0 0.0
        %594 = vmatprep.subr.mxu0 0.0
        %595 = vmatpush2.msra.mxu0 0.0
        %596 = vmatprep.subr.mxu0 0.0
        %597 = vmatpush2.msra.mxu0 0.0
        %598 = vmatprep.subr.mxu0 0.0
        %599 = vmatpush2.msra.mxu0 0.0
        %600 = vmatprep.subr.mxu0 0.0
        %601 = vmatpush2.msra.mxu0 0.0
        %602 = vmatprep.subr.mxu0 0.0
        %603 = vmatpush2.msra.mxu0 0.0
        %604 = vmatprep.subr.mxu0 0.0
        %605 = vmatpush2.msra.mxu0 0.0
        %606 = vmatprep.subr.mxu0 0.0
        %607 = vmatpush2.msra.mxu0 0.0
        %608 = vmatprep.subr.mxu0 0.0
        %609 = vmatpush2.msra.mxu0 0.0
        %610 = vmatprep.subr.mxu0 0.0
        %611 = vmatpush2.msra.mxu0 0.0
        %612 = vmatprep.subr.mxu0 0.0
        %613 = vmatpush2.msra.mxu0 0.0
        %614 = vmatprep.subr.mxu0 0.0
        %615 = vmatpush2.msra.mxu0 0.0
        %616 = vmatprep.subr.mxu0 0.0
        %617 = vmatpush2.msra.mxu0 0.0
        %618 = vmatprep.subr.mxu0 0.0
        %619 = vmatpush2.msra.mxu0 0.0
        %620 = vmatprep.subr.mxu0 0.0
        %621 = vmatpush2.msra.mxu0 0.0
        %622 = vmatprep.mubr.f32.mxu0 0.0
        %623 = vmatmul.mubr.f32.gmra.mxu0 %v492
        %v624 = vpop.f32.mrf.mxu0
        %v625 = vadd.f32 %v546, %v624
        %v626 = vpop.f32.mrf.mxu0
        %v627 = vadd.f32 %v550, %v626
        %628 = vdwg.mxu0
        %629 = vmatprep.subr.mxu0 0.0
        %630 = vmatpush1.msra.mxu0 %v540
        %631 = vmatprep.subr.mxu0 0.0
        %632 = vmatpush1.msra.mxu0 %v537
        %633 = vmatprep.subr.mxu0 0.0
        %634 = vmatpush1.msra.mxu0 %v534
        %635 = vmatprep.subr.mxu0 0.0
        %636 = vmatpush1.msra.mxu0 %v531
        %637 = vmatprep.subr.mxu0 0.0
        %638 = vmatpush1.msra.mxu0 %v528
        %639 = vmatprep.subr.mxu0 0.0
        %640 = vmatpush1.msra.mxu0 %v525
        %641 = vmatprep.subr.mxu0 0.0
        %642 = vmatpush1.msra.mxu0 %v522
        %643 = vmatprep.subr.mxu0 0.0
        %644 = vmatpush1.msra.mxu0 %v519
        %645 = vmatprep.subr.mxu0 0.0
        %646 = vmatpush1.msra.mxu0 %v516
        %647 = vmatprep.subr.mxu0 0.0
        %648 = vmatpush1.msra.mxu0 %v513
        %649 = vmatprep.subr.mxu0 0.0
        %650 = vmatpush1.msra.mxu0 %v510
        %651 = vmatprep.subr.mxu0 0.0
        %652 = vmatpush1.msra.mxu0 %v507
        %653 = vmatprep.subr.mxu0 0.0
        %654 = vmatpush1.msra.mxu0 %v504
        %655 = vmatprep.subr.mxu0 0.0
        %656 = vmatpush1.msra.mxu0 %v501
        %657 = vmatprep.subr.mxu0 0.0
        %658 = vmatpush1.msra.mxu0 %v498
        %659 = vmatprep.subr.mxu0 0.0
        %660 = vmatpush1.msra.mxu0 %v495
        %661 = vmatprep.subr.mxu0 0.0
        %662 = vmatpush2.msra.mxu0 0.0
        %663 = vmatprep.subr.mxu0 0.0
        %664 = vmatpush2.msra.mxu0 0.0
        %665 = vmatprep.subr.mxu0 0.0
        %666 = vmatpush2.msra.mxu0 0.0
        %667 = vmatprep.subr.mxu0 0.0
        %668 = vmatpush2.msra.mxu0 0.0
        %669 = vmatprep.subr.mxu0 0.0
        %670 = vmatpush2.msra.mxu0 0.0
        %671 = vmatprep.subr.mxu0 0.0
        %672 = vmatpush2.msra.mxu0 0.0
        %673 = vmatprep.subr.mxu0 0.0
        %674 = vmatpush2.msra.mxu0 0.0
        %675 = vmatprep.subr.mxu0 0.0
        %676 = vmatpush2.msra.mxu0 0.0
        %677 = vmatprep.subr.mxu0 0.0
        %678 = vmatpush2.msra.mxu0 0.0
        %679 = vmatprep.subr.mxu0 0.0
        %680 = vmatpush2.msra.mxu0 0.0
        %681 = vmatprep.subr.mxu0 0.0
        %682 = vmatpush2.msra.mxu0 0.0
        %683 = vmatprep.subr.mxu0 0.0
        %684 = vmatpush2.msra.mxu0 0.0
        %685 = vmatprep.subr.mxu0 0.0
        %686 = vmatpush2.msra.mxu0 0.0
        %687 = vmatprep.subr.mxu0 0.0
        %688 = vmatpush2.msra.mxu0 0.0
        %689 = vmatprep.subr.mxu0 0.0
        %690 = vmatpush2.msra.mxu0 0.0
        %691 = vmatprep.subr.mxu0 0.0
        %692 = vmatpush2.msra.mxu0 0.0
        %693 = vmatprep.mubr.f32.mxu0 0.0
        %694 = vmatmul.mubr.f32.gmra.mxu0 %v492
        %v695 = vpop.f32.mrf.mxu0
        %v696 = vadd.f32 %v554, %v695
        %v697 = vpop.f32.mrf.mxu0
        %698 = vdwg.mxu0
        %v699 = vld [vmem:[%s487] sm:$0x1]
        %vm700 = vcmask 261120
        %v702 = vsel %vm700, %v625, 0
        %v705 = vsel %vm700, %v627, 0
        %707 = vmatprep.subr.mxu0 0.0
        %708 = vmatpush1.xpose.msra.mxu0 0.0
        %709 = vmatprep.subr.mxu0 0.0
        %710 = vmatpush1.xpose.msra.mxu0 0.0
        %711 = vmatprep.subr.mxu0 0.0
        %712 = vmatpush1.xpose.msra.mxu0 0.0
        %713 = vmatprep.subr.mxu0 0.0
        %714 = vmatpush1.xpose.msra.mxu0 0.0
        %715 = vmatprep.subr.mxu0 0.0
        %716 = vmatpush1.xpose.msra.mxu0 0.0
        %717 = vmatprep.subr.mxu0 0.0
        %718 = vmatpush1.xpose.msra.mxu0 0.0
        %719 = vmatprep.subr.mxu0 0.0
        %720 = vmatpush1.xpose.msra.mxu0 0.0
        %721 = vmatprep.subr.mxu0 0.0
        %722 = vmatpush1.xpose.msra.mxu0 0.0
        %723 = vmatprep.subr.mxu0 0.0
        %724 = vmatpush1.xpose.msra.mxu0 0.0
        %725 = vmatprep.subr.mxu0 0.0
        %726 = vmatpush1.xpose.msra.mxu0 0.0
        %727 = vmatprep.subr.mxu0 0.0
        %728 = vmatpush1.xpose.msra.mxu0 0.0
        %729 = vmatprep.subr.mxu0 0.0
        %730 = vmatpush1.xpose.msra.mxu0 0.0
        %731 = vmatprep.subr.mxu0 0.0
        %732 = vmatpush1.xpose.msra.mxu0 0.0
        %733 = vmatprep.subr.mxu0 0.0
        %734 = vmatpush1.xpose.msra.mxu0 0.0
        %735 = vmatprep.subr.mxu0 0.0
        %736 = vmatpush1.xpose.msra.mxu0 0.0
        %737 = vmatprep.subr.mxu0 0.0
        %738 = vmatpush1.xpose.msra.mxu0 %v705
        %739 = vmatprep.subr.mxu0 0.0
        %740 = vmatpush2.xpose.msra.mxu0 0.0
        %741 = vmatprep.subr.mxu0 0.0
        %742 = vmatpush2.xpose.msra.mxu0 0.0
        %743 = vmatprep.subr.mxu0 0.0
        %744 = vmatpush2.xpose.msra.mxu0 0.0
        %745 = vmatprep.subr.mxu0 0.0
        %746 = vmatpush2.xpose.msra.mxu0 0.0
        %747 = vmatprep.subr.mxu0 0.0
        %748 = vmatpush2.xpose.msra.mxu0 0.0
        %749 = vmatprep.subr.mxu0 0.0
        %750 = vmatpush2.xpose.msra.mxu0 0.0
        %751 = vmatprep.subr.mxu0 0.0
        %752 = vmatpush2.xpose.msra.mxu0 0.0
        %753 = vmatprep.subr.mxu0 0.0
        %754 = vmatpush2.xpose.msra.mxu0 0.0
        %755 = vmatprep.subr.mxu0 0.0
        %756 = vmatpush2.xpose.msra.mxu0 0.0
        %757 = vmatprep.subr.mxu0 0.0
        %758 = vmatpush2.xpose.msra.mxu0 0.0
        %759 = vmatprep.subr.mxu0 0.0
        %760 = vmatpush2.xpose.msra.mxu0 0.0
        %761 = vmatprep.subr.mxu0 0.0
        %762 = vmatpush2.xpose.msra.mxu0 0.0
        %763 = vmatprep.subr.mxu0 0.0
        %764 = vmatpush2.xpose.msra.mxu0 0.0
        %765 = vmatprep.subr.mxu0 0.0
        %766 = vmatpush2.xpose.msra.mxu0 0.0
        %767 = vmatprep.subr.mxu0 0.0
        %768 = vmatpush2.xpose.msra.mxu0 0.0
        %769 = vmatprep.subr.mxu0 0.0
        %770 = vmatpush2.xpose.msra.mxu0 0.0
        %771 = vmatprep.mubr.f32.mxu0 0.0
        %772 = vmatmul.mubr.f32.gmra.mxu0 %v702
        %v773 = vpop.f32.mrf.mxu0
        %v774 = vadd.f32 0.0, %v773
        %v775 = vpop.f32.mrf.mxu0
        %776 = vdwg.mxu0
        %v777 = vmul.f32 %v774, 0.17677669
        %v779 = vlaneseq
        %v780 = vshrl.u32 %v779, 7
        %v781 = vsub.s32 0, %v780
        %v782 = vrot.slane %v699, %v781
        %v784 = vadd.f32 %v777, %v782
        %vm785 = vcmask 64512
        %v786 = vsel %vm785, %v784, -inf
        %787 = vmax.xlane.f32.xlu0 %v786
        %v788 = vpop.xlane.xlu0 %787
        %v789 = vsub.f32 %v784, %v788
        %v790 = vmul.f32 %v789, 1.442695
        %v791 = vpow.pop %v790
        %v792 = vsel %vm785, %v791, 0.0
        %793 = vadd.xlane.f32.xlu0 %v792
        %v794 = vpop.xlane.xlu0 %793
        %v795 = vrcp.pop %v794
        %v796 = vmul.f32 %v791, %v795
        %v798 = vsel %vm785, %v796, 0
        %800 = vmatprep.subr.mxu0 0.0
        %801 = vmatpush1.msra.mxu0 0.0
        %802 = vmatprep.subr.mxu0 0.0
        %803 = vmatpush1.msra.mxu0 0.0
        %804 = vmatprep.subr.mxu0 0.0
        %805 = vmatpush1.msra.mxu0 0.0
        %806 = vmatprep.subr.mxu0 0.0
        %807 = vmatpush1.msra.mxu0 0.0
        %808 = vmatprep.subr.mxu0 0.0
        %809 = vmatpush1.msra.mxu0 0.0
        %810 = vmatprep.subr.mxu0 0.0
        %811 = vmatpush1.msra.mxu0 0.0
        %812 = vmatprep.subr.mxu0 0.0
        %813 = vmatpush1.msra.mxu0 0.0
        %814 = vmatprep.subr.mxu0 0.0
        %815 = vmatpush1.msra.mxu0 0.0
        %816 = vmatprep.subr.mxu0 0.0
        %817 = vmatpush1.msra.mxu0 0.0
        %818 = vmatprep.subr.mxu0 0.0
        %819 = vmatpush1.msra.mxu0 0.0
        %820 = vmatprep.subr.mxu0 0.0
        %821 = vmatpush1.msra.mxu0 0.0
        %822 = vmatprep.subr.mxu0 0.0
        %823 = vmatpush1.msra.mxu0 0.0
        %824 = vmatprep.subr.mxu0 0.0
        %825 = vmatpush1.msra.mxu0 0.0
        %826 = vmatprep.subr.mxu0 0.0
        %827 = vmatpush1.msra.mxu0 0.0
        %828 = vmatprep.subr.mxu0 0.0
        %829 = vmatpush1.msra.mxu0 0.0
        %830 = vmatprep.subr.mxu0 0.0
        %831 = vmatpush1.msra.mxu0 %v696
        %832 = vmatprep.subr.mxu0 0.0
        %833 = vmatpush2.msra.mxu0 0.0
        %834 = vmatprep.subr.mxu0 0.0
        %835 = vmatpush2.msra.mxu0 0.0
        %836 = vmatprep.subr.mxu0 0.0
        %837 = vmatpush2.msra.mxu0 0.0
        %838 = vmatprep.subr.mxu0 0.0
        %839 = vmatpush2.msra.mxu0 0.0
        %840 = vmatprep.subr.mxu0 0.0
        %841 = vmatpush2.msra.mxu0 0.0
        %842 = vmatprep.subr.mxu0 0.0
        %843 = vmatpush2.msra.mxu0 0.0
        %844 = vmatprep.subr.mxu0 0.0
        %845 = vmatpush2.msra.mxu0 0.0
        %846 = vmatprep.subr.mxu0 0.0
        %847 = vmatpush2.msra.mxu0 0.0
        %848 = vmatprep.subr.mxu0 0.0
        %849 = vmatpush2.msra.mxu0 0.0
        %850 = vmatprep.subr.mxu0 0.0
        %851 = vmatpush2.msra.mxu0 0.0
        %852 = vmatprep.subr.mxu0 0.0
        %853 = vmatpush2.msra.mxu0 0.0
        %854 = vmatprep.subr.mxu0 0.0
        %855 = vmatpush2.msra.mxu0 0.0
        %856 = vmatprep.subr.mxu0 0.0
        %857 = vmatpush2.msra.mxu0 0.0
        %858 = vmatprep.subr.mxu0 0.0
        %859 = vmatpush2.msra.mxu0 0.0
        %860 = vmatprep.subr.mxu0 0.0
        %861 = vmatpush2.msra.mxu0 0.0
        %862 = vmatprep.subr.mxu0 0.0
        %863 = vmatpush2.msra.mxu0 0.0
        %864 = vmatprep.mubr.f32.mxu0 0.0
        %865 = vmatmul.mubr.f32.gmra.mxu0 %v798
        %v866 = vpop.f32.mrf.mxu0
        %v867 = vadd.f32 0.0, %v866
        %v868 = vpop.f32.mrf.mxu0
        %869 = vdwg.mxu0
        %870 = vst.msk [vmem:[#allocation2] sm:$0xff] %vm700, %v867
        %871 = vrot.lane.b32.xlu0 %v625, 96
        %v872 = vpop.permute.xlu0 %871
        %873 = vrot.lane.b32.xlu0 %v627, 96
        %v874 = vpop.permute.xlu0 %873
        %v875 = vsel %vm700, %v872, 0
        %v877 = vsel %vm700, %v874, 0
        %879 = vmatprep.subr.mxu0 0.0
        %880 = vmatpush1.xpose.msra.mxu0 0.0
        %881 = vmatprep.subr.mxu0 0.0
        %882 = vmatpush1.xpose.msra.mxu0 0.0
        %883 = vmatprep.subr.mxu0 0.0
        %884 = vmatpush1.xpose.msra.mxu0 0.0
        %885 = vmatprep.subr.mxu0 0.0
        %886 = vmatpush1.xpose.msra.mxu0 0.0
        %887 = vmatprep.subr.mxu0 0.0
        %888 = vmatpush1.xpose.msra.mxu0 0.0
        %889 = vmatprep.subr.mxu0 0.0
        %890 = vmatpush1.xpose.msra.mxu0 0.0
        %891 = vmatprep.subr.mxu0 0.0
        %892 = vmatpush1.xpose.msra.mxu0 0.0
        %893 = vmatprep.subr.mxu0 0.0
        %894 = vmatpush1.xpose.msra.mxu0 0.0
        %895 = vmatprep.subr.mxu0 0.0
        %896 = vmatpush1.xpose.msra.mxu0 0.0
        %897 = vmatprep.subr.mxu0 0.0
        %898 = vmatpush1.xpose.msra.mxu0 0.0
        %899 = vmatprep.subr.mxu0 0.0
        %900 = vmatpush1.xpose.msra.mxu0 0.0
        %901 = vmatprep.subr.mxu0 0.0
        %902 = vmatpush1.xpose.msra.mxu0 0.0
        %903 = vmatprep.subr.mxu0 0.0
        %904 = vmatpush1.xpose.msra.mxu0 0.0
        %905 = vmatprep.subr.mxu0 0.0
        %906 = vmatpush1.xpose.msra.mxu0 0.0
        %907 = vmatprep.subr.mxu0 0.0
        %908 = vmatpush1.xpose.msra.mxu0 0.0
        %909 = vmatprep.subr.mxu0 0.0
        %910 = vmatpush1.xpose.msra.mxu0 %v877
        %911 = vmatprep.subr.mxu0 0.0
        %912 = vmatpush2.xpose.msra.mxu0 0.0
        %913 = vmatprep.subr.mxu0 0.0
        %914 = vmatpush2.xpose.msra.mxu0 0.0
        %915 = vmatprep.subr.mxu0 0.0
        %916 = vmatpush2.xpose.msra.mxu0 0.0
        %917 = vmatprep.subr.mxu0 0.0
        %918 = vmatpush2.xpose.msra.mxu0 0.0
        %919 = vmatprep.subr.mxu0 0.0
        %920 = vmatpush2.xpose.msra.mxu0 0.0
        %921 = vmatprep.subr.mxu0 0.0
        %922 = vmatpush2.xpose.msra.mxu0 0.0
        %923 = vmatprep.subr.mxu0 0.0
        %924 = vmatpush2.xpose.msra.mxu0 0.0
        %925 = vmatprep.subr.mxu0 0.0
        %926 = vmatpush2.xpose.msra.mxu0 0.0
        %927 = vmatprep.subr.mxu0 0.0
        %928 = vmatpush2.xpose.msra.mxu0 0.0
        %929 = vmatprep.subr.mxu0 0.0
        %930 = vmatpush2.xpose.msra.mxu0 0.0
        %931 = vmatprep.subr.mxu0 0.0
        %932 = vmatpush2.xpose.msra.mxu0 0.0
        %933 = vmatprep.subr.mxu0 0.0
        %934 = vmatpush2.xpose.msra.mxu0 0.0
        %935 = vmatprep.subr.mxu0 0.0
        %936 = vmatpush2.xpose.msra.mxu0 0.0
        %937 = vmatprep.subr.mxu0 0.0
        %938 = vmatpush2.xpose.msra.mxu0 0.0
        %939 = vmatprep.subr.mxu0 0.0
        %940 = vmatpush2.xpose.msra.mxu0 0.0
        %941 = vmatprep.subr.mxu0 0.0
        %942 = vmatpush2.xpose.msra.mxu0 0.0
        %943 = vmatprep.mubr.f32.mxu0 0.0
        %944 = vmatmul.mubr.f32.gmra.mxu0 %v875
        %v945 = vpop.f32.mrf.mxu0
        %v946 = vadd.f32 0.0, %v945
        %v947 = vpop.f32.mrf.mxu0
        %948 = vdwg.mxu0
        %v949 = vmul.f32 %v946, 0.17677669
        %v950 = vadd.f32 %v949, %v782
        %v951 = vsel %vm785, %v950, -inf
        %952 = vmax.xlane.f32.xlu0 %v951
        %v953 = vpop.xlane.xlu0 %952
        %v954 = vsub.f32 %v950, %v953
        %v955 = vmul.f32 %v954, 1.442695
        %v956 = vpow.pop %v955
        %v957 = vsel %vm785, %v956, 0.0
        %958 = vadd.xlane.f32.xlu0 %v957
        %v959 = vpop.xlane.xlu0 %958
        %v960 = vrcp.pop %v959
        %v961 = vmul.f32 %v956, %v960
        %963 = vrot.lane.b32.xlu0 %v696, 96
        %v964 = vpop.permute.xlu0 %963
        %v967 = vsel %vm785, %v961, 0
        %969 = vmatprep.subr.mxu0 0.0
        %970 = vmatpush1.msra.mxu0 0.0
        %971 = vmatprep.subr.mxu0 0.0
        %972 = vmatpush1.msra.mxu0 0.0
        %973 = vmatprep.subr.mxu0 0.0
        %974 = vmatpush1.msra.mxu0 0.0
        %975 = vmatprep.subr.mxu0 0.0
        %976 = vmatpush1.msra.mxu0 0.0
        %977 = vmatprep.subr.mxu0 0.0
        %978 = vmatpush1.msra.mxu0 0.0
        %979 = vmatprep.subr.mxu0 0.0
        %980 = vmatpush1.msra.mxu0 0.0
        %981 = vmatprep.subr.mxu0 0.0
        %982 = vmatpush1.msra.mxu0 0.0
        %983 = vmatprep.subr.mxu0 0.0
        %984 = vmatpush1.msra.mxu0 0.0
        %985 = vmatprep.subr.mxu0 0.0
        %986 = vmatpush1.msra.mxu0 0.0
        %987 = vmatprep.subr.mxu0 0.0
        %988 = vmatpush1.msra.mxu0 0.0
        %989 = vmatprep.subr.mxu0 0.0
        %990 = vmatpush1.msra.mxu0 0.0
        %991 = vmatprep.subr.mxu0 0.0
        %992 = vmatpush1.msra.mxu0 0.0
        %993 = vmatprep.subr.mxu0 0.0
        %994 = vmatpush1.msra.mxu0 0.0
        %995 = vmatprep.subr.mxu0 0.0
        %996 = vmatpush1.msra.mxu0 0.0
        %997 = vmatprep.subr.mxu0 0.0
        %998 = vmatpush1.msra.mxu0 0.0
        %999 = vmatprep.subr.mxu0 0.0
        %1000 = vmatpush1.msra.mxu0 %v964
        %1001 = vmatprep.subr.mxu0 0.0
        %1002 = vmatpush2.msra.mxu0 0.0
        %1003 = vmatprep.subr.mxu0 0.0
        %1004 = vmatpush2.msra.mxu0 0.0
        %1005 = vmatprep.subr.mxu0 0.0
        %1006 = vmatpush2.msra.mxu0 0.0
        %1007 = vmatprep.subr.mxu0 0.0
        %1008 = vmatpush2.msra.mxu0 0.0
        %1009 = vmatprep.subr.mxu0 0.0
        %1010 = vmatpush2.msra.mxu0 0.0
        %1011 = vmatprep.subr.mxu0 0.0
        %1012 = vmatpush2.msra.mxu0 0.0
        %1013 = vmatprep.subr.mxu0 0.0
        %1014 = vmatpush2.msra.mxu0 0.0
        %1015 = vmatprep.subr.mxu0 0.0
        %1016 = vmatpush2.msra.mxu0 0.0
        %1017 = vmatprep.subr.mxu0 0.0
        %1018 = vmatpush2.msra.mxu0 0.0
        %1019 = vmatprep.subr.mxu0 0.0
        %1020 = vmatpush2.msra.mxu0 0.0
        %1021 = vmatprep.subr.mxu0 0.0
        %1022 = vmatpush2.msra.mxu0 0.0
        %1023 = vmatprep.subr.mxu0 0.0
        %1024 = vmatpush2.msra.mxu0 0.0
        %1025 = vmatprep.subr.mxu0 0.0
        %1026 = vmatpush2.msra.mxu0 0.0
        %1027 = vmatprep.subr.mxu0 0.0
        %1028 = vmatpush2.msra.mxu0 0.0
        %1029 = vmatprep.subr.mxu0 0.0
        %1030 = vmatpush2.msra.mxu0 0.0
        %1031 = vmatprep.subr.mxu0 0.0
        %1032 = vmatpush2.msra.mxu0 0.0
        %1033 = vmatprep.mubr.f32.mxu0 0.0
        %1034 = vmatmul.mubr.f32.gmra.mxu0 %v967
        %v1035 = vpop.f32.mrf.mxu0
        %v1036 = vadd.f32 0.0, %v1035
        %v1037 = vpop.f32.mrf.mxu0
        %1038 = vdwg.mxu0
        %1040 = vrot.lane.b32.xlu0 %v1036, 32
        %v1041 = vpop.permute.xlu0 %1040
        %vm1043 = vcmask 523520
        %1044 = vst.msk [vmem:[#allocation2] sm:$0xff] %vm1043, %v1041
        %1045 = vrot.lane.b32.xlu0 %v625, 64
        %v1046 = vpop.permute.xlu0 %1045
        %1047 = vrot.lane.b32.xlu0 %v627, 64
        %v1048 = vpop.permute.xlu0 %1047
        %v1049 = vsel %vm700, %v1046, 0
        %v1051 = vsel %vm700, %v1048, 0
        %1053 = vmatprep.subr.mxu0 0.0
        %1054 = vmatpush1.xpose.msra.mxu0 0.0
        %1055 = vmatprep.subr.mxu0 0.0
        %1056 = vmatpush1.xpose.msra.mxu0 0.0
        %1057 = vmatprep.subr.mxu0 0.0
        %1058 = vmatpush1.xpose.msra.mxu0 0.0
        %1059 = vmatprep.subr.mxu0 0.0
        %1060 = vmatpush1.xpose.msra.mxu0 0.0
        %1061 = vmatprep.subr.mxu0 0.0
        %1062 = vmatpush1.xpose.msra.mxu0 0.0
        %1063 = vmatprep.subr.mxu0 0.0
        %1064 = vmatpush1.xpose.msra.mxu0 0.0
        %1065 = vmatprep.subr.mxu0 0.0
        %1066 = vmatpush1.xpose.msra.mxu0 0.0
        %1067 = vmatprep.subr.mxu0 0.0
        %1068 = vmatpush1.xpose.msra.mxu0 0.0
        %1069 = vmatprep.subr.mxu0 0.0
        %1070 = vmatpush1.xpose.msra.mxu0 0.0
        %1071 = vmatprep.subr.mxu0 0.0
        %1072 = vmatpush1.xpose.msra.mxu0 0.0
        %1073 = vmatprep.subr.mxu0 0.0
        %1074 = vmatpush1.xpose.msra.mxu0 0.0
        %1075 = vmatprep.subr.mxu0 0.0
        %1076 = vmatpush1.xpose.msra.mxu0 0.0
        %1077 = vmatprep.subr.mxu0 0.0
        %1078 = vmatpush1.xpose.msra.mxu0 0.0
        %1079 = vmatprep.subr.mxu0 0.0
        %1080 = vmatpush1.xpose.msra.mxu0 0.0
        %1081 = vmatprep.subr.mxu0 0.0
        %1082 = vmatpush1.xpose.msra.mxu0 0.0
        %1083 = vmatprep.subr.mxu0 0.0
        %1084 = vmatpush1.xpose.msra.mxu0 %v1051
        %1085 = vmatprep.subr.mxu0 0.0
        %1086 = vmatpush2.xpose.msra.mxu0 0.0
        %1087 = vmatprep.subr.mxu0 0.0
        %1088 = vmatpush2.xpose.msra.mxu0 0.0
        %1089 = vmatprep.subr.mxu0 0.0
        %1090 = vmatpush2.xpose.msra.mxu0 0.0
        %1091 = vmatprep.subr.mxu0 0.0
        %1092 = vmatpush2.xpose.msra.mxu0 0.0
        %1093 = vmatprep.subr.mxu0 0.0
        %1094 = vmatpush2.xpose.msra.mxu0 0.0
        %1095 = vmatprep.subr.mxu0 0.0
        %1096 = vmatpush2.xpose.msra.mxu0 0.0
        %1097 = vmatprep.subr.mxu0 0.0
        %1098 = vmatpush2.xpose.msra.mxu0 0.0
        %1099 = vmatprep.subr.mxu0 0.0
        %1100 = vmatpush2.xpose.msra.mxu0 0.0
        %1101 = vmatprep.subr.mxu0 0.0
        %1102 = vmatpush2.xpose.msra.mxu0 0.0
        %1103 = vmatprep.subr.mxu0 0.0
        %1104 = vmatpush2.xpose.msra.mxu0 0.0
        %1105 = vmatprep.subr.mxu0 0.0
        %1106 = vmatpush2.xpose.msra.mxu0 0.0
        %1107 = vmatprep.subr.mxu0 0.0
        %1108 = vmatpush2.xpose.msra.mxu0 0.0
        %1109 = vmatprep.subr.mxu0 0.0
        %1110 = vmatpush2.xpose.msra.mxu0 0.0
        %1111 = vmatprep.subr.mxu0 0.0
        %1112 = vmatpush2.xpose.msra.mxu0 0.0
        %1113 = vmatprep.subr.mxu0 0.0
        %1114 = vmatpush2.xpose.msra.mxu0 0.0
        %1115 = vmatprep.subr.mxu0 0.0
        %1116 = vmatpush2.xpose.msra.mxu0 0.0
        %1117 = vmatprep.mubr.f32.mxu0 0.0
        %1118 = vmatmul.mubr.f32.gmra.mxu0 %v1049
        %v1119 = vpop.f32.mrf.mxu0
        %v1120 = vadd.f32 0.0, %v1119
        %v1121 = vpop.f32.mrf.mxu0
        %1122 = vdwg.mxu0
        %v1123 = vmul.f32 %v1120, 0.17677669
        %v1124 = vadd.f32 %v1123, %v782
        %v1125 = vsel %vm785, %v1124, -inf
        %1126 = vmax.xlane.f32.xlu0 %v1125
        %v1127 = vpop.xlane.xlu0 %1126
        %v1128 = vsub.f32 %v1124, %v1127
        %v1129 = vmul.f32 %v1128, 1.442695
        %v1130 = vpow.pop %v1129
        %v1131 = vsel %vm785, %v1130, 0.0
        %1132 = vadd.xlane.f32.xlu0 %v1131
        %v1133 = vpop.xlane.xlu0 %1132
        %v1134 = vrcp.pop %v1133
        %v1135 = vmul.f32 %v1130, %v1134
        %1136 = vrot.lane.b32.xlu0 %v696, 64
        %v1137 = vpop.permute.xlu0 %1136
        %v1140 = vsel %vm785, %v1135, 0
        %1142 = vmatprep.subr.mxu0 0.0
        %1143 = vmatpush1.msra.mxu0 0.0
        %1144 = vmatprep.subr.mxu0 0.0
        %1145 = vmatpush1.msra.mxu0 0.0
        %1146 = vmatprep.subr.mxu0 0.0
        %1147 = vmatpush1.msra.mxu0 0.0
        %1148 = vmatprep.subr.mxu0 0.0
        %1149 = vmatpush1.msra.mxu0 0.0
        %1150 = vmatprep.subr.mxu0 0.0
        %1151 = vmatpush1.msra.mxu0 0.0
        %1152 = vmatprep.subr.mxu0 0.0
        %1153 = vmatpush1.msra.mxu0 0.0
        %1154 = vmatprep.subr.mxu0 0.0
        %1155 = vmatpush1.msra.mxu0 0.0
        %1156 = vmatprep.subr.mxu0 0.0
        %1157 = vmatpush1.msra.mxu0 0.0
        %1158 = vmatprep.subr.mxu0 0.0
        %1159 = vmatpush1.msra.mxu0 0.0
        %1160 = vmatprep.subr.mxu0 0.0
        %1161 = vmatpush1.msra.mxu0 0.0
        %1162 = vmatprep.subr.mxu0 0.0
        %1163 = vmatpush1.msra.mxu0 0.0
        %1164 = vmatprep.subr.mxu0 0.0
        %1165 = vmatpush1.msra.mxu0 0.0
        %1166 = vmatprep.subr.mxu0 0.0
        %1167 = vmatpush1.msra.mxu0 0.0
        %1168 = vmatprep.subr.mxu0 0.0
        %1169 = vmatpush1.msra.mxu0 0.0
        %1170 = vmatprep.subr.mxu0 0.0
        %1171 = vmatpush1.msra.mxu0 0.0
        %1172 = vmatprep.subr.mxu0 0.0
        %1173 = vmatpush1.msra.mxu0 %v1137
        %1174 = vmatprep.subr.mxu0 0.0
        %1175 = vmatpush2.msra.mxu0 0.0
        %1176 = vmatprep.subr.mxu0 0.0
        %1177 = vmatpush2.msra.mxu0 0.0
        %1178 = vmatprep.subr.mxu0 0.0
        %1179 = vmatpush2.msra.mxu0 0.0
        %1180 = vmatprep.subr.mxu0 0.0
        %1181 = vmatpush2.msra.mxu0 0.0
        %1182 = vmatprep.subr.mxu0 0.0
        %1183 = vmatpush2.msra.mxu0 0.0
        %1184 = vmatprep.subr.mxu0 0.0
        %1185 = vmatpush2.msra.mxu0 0.0
        %1186 = vmatprep.subr.mxu0 0.0
        %1187 = vmatpush2.msra.mxu0 0.0
        %1188 = vmatprep.subr.mxu0 0.0
        %1189 = vmatpush2.msra.mxu0 0.0
        %1190 = vmatprep.subr.mxu0 0.0
        %1191 = vmatpush2.msra.mxu0 0.0
        %1192 = vmatprep.subr.mxu0 0.0
        %1193 = vmatpush2.msra.mxu0 0.0
        %1194 = vmatprep.subr.mxu0 0.0
        %1195 = vmatpush2.msra.mxu0 0.0
        %1196 = vmatprep.subr.mxu0 0.0
        %1197 = vmatpush2.msra.mxu0 0.0
        %1198 = vmatprep.subr.mxu0 0.0
        %1199 = vmatpush2.msra.mxu0 0.0
        %1200 = vmatprep.subr.mxu0 0.0
        %1201 = vmatpush2.msra.mxu0 0.0
        %1202 = vmatprep.subr.mxu0 0.0
        %1203 = vmatpush2.msra.mxu0 0.0
        %1204 = vmatprep.subr.mxu0 0.0
        %1205 = vmatpush2.msra.mxu0 0.0
        %1206 = vmatprep.mubr.f32.mxu0 0.0
        %1207 = vmatmul.mubr.f32.gmra.mxu0 %v1140
        %v1208 = vpop.f32.mrf.mxu0
        %v1209 = vadd.f32 0.0, %v1208
        %v1210 = vpop.f32.mrf.mxu0
        %1211 = vdwg.mxu0
        %1213 = vrot.lane.b32.xlu0 %v1209, 64
        %v1214 = vpop.permute.xlu0 %1213
        %vm1216 = vcmask 785920
        %1217 = vst.msk [vmem:[#allocation2] sm:$0xff] %vm1216, %v1214
        %1218 = vrot.lane.b32.xlu0 %v625, 32
        %v1219 = vpop.permute.xlu0 %1218
        %1220 = vrot.lane.b32.xlu0 %v627, 32
        %v1221 = vpop.permute.xlu0 %1220
        %v1222 = vsel %vm700, %v1219, 0
        %v1224 = vsel %vm700, %v1221, 0
        %1226 = vmatprep.subr.mxu0 0.0
        %1227 = vmatpush1.xpose.msra.mxu0 0.0
        %1228 = vmatprep.subr.mxu0 0.0
        %1229 = vmatpush1.xpose.msra.mxu0 0.0
        %1230 = vmatprep.subr.mxu0 0.0
        %1231 = vmatpush1.xpose.msra.mxu0 0.0
        %1232 = vmatprep.subr.mxu0 0.0
        %1233 = vmatpush1.xpose.msra.mxu0 0.0
        %1234 = vmatprep.subr.mxu0 0.0
        %1235 = vmatpush1.xpose.msra.mxu0 0.0
        %1236 = vmatprep.subr.mxu0 0.0
        %1237 = vmatpush1.xpose.msra.mxu0 0.0
        %1238 = vmatprep.subr.mxu0 0.0
        %1239 = vmatpush1.xpose.msra.mxu0 0.0
        %1240 = vmatprep.subr.mxu0 0.0
        %1241 = vmatpush1.xpose.msra.mxu0 0.0
        %1242 = vmatprep.subr.mxu0 0.0
        %1243 = vmatpush1.xpose.msra.mxu0 0.0
        %1244 = vmatprep.subr.mxu0 0.0
        %1245 = vmatpush1.xpose.msra.mxu0 0.0
        %1246 = vmatprep.subr.mxu0 0.0
        %1247 = vmatpush1.xpose.msra.mxu0 0.0
        %1248 = vmatprep.subr.mxu0 0.0
        %1249 = vmatpush1.xpose.msra.mxu0 0.0
        %1250 = vmatprep.subr.mxu0 0.0
        %1251 = vmatpush1.xpose.msra.mxu0 0.0
        %1252 = vmatprep.subr.mxu0 0.0
        %1253 = vmatpush1.xpose.msra.mxu0 0.0
        %1254 = vmatprep.subr.mxu0 0.0
        %1255 = vmatpush1.xpose.msra.mxu0 0.0
        %1256 = vmatprep.subr.mxu0 0.0
        %1257 = vmatpush1.xpose.msra.mxu0 %v1224
        %1258 = vmatprep.subr.mxu0 0.0
        %1259 = vmatpush2.xpose.msra.mxu0 0.0
        %1260 = vmatprep.subr.mxu0 0.0
        %1261 = vmatpush2.xpose.msra.mxu0 0.0
        %1262 = vmatprep.subr.mxu0 0.0
        %1263 = vmatpush2.xpose.msra.mxu0 0.0
        %1264 = vmatprep.subr.mxu0 0.0
        %1265 = vmatpush2.xpose.msra.mxu0 0.0
        %1266 = vmatprep.subr.mxu0 0.0
        %1267 = vmatpush2.xpose.msra.mxu0 0.0
        %1268 = vmatprep.subr.mxu0 0.0
        %1269 = vmatpush2.xpose.msra.mxu0 0.0
        %1270 = vmatprep.subr.mxu0 0.0
        %1271 = vmatpush2.xpose.msra.mxu0 0.0
        %1272 = vmatprep.subr.mxu0 0.0
        %1273 = vmatpush2.xpose.msra.mxu0 0.0
        %1274 = vmatprep.subr.mxu0 0.0
        %1275 = vmatpush2.xpose.msra.mxu0 0.0
        %1276 = vmatprep.subr.mxu0 0.0
        %1277 = vmatpush2.xpose.msra.mxu0 0.0
        %1278 = vmatprep.subr.mxu0 0.0
        %1279 = vmatpush2.xpose.msra.mxu0 0.0
        %1280 = vmatprep.subr.mxu0 0.0
        %1281 = vmatpush2.xpose.msra.mxu0 0.0
        %1282 = vmatprep.subr.mxu0 0.0
        %1283 = vmatpush2.xpose.msra.mxu0 0.0
        %1284 = vmatprep.subr.mxu0 0.0
        %1285 = vmatpush2.xpose.msra.mxu0 0.0
        %1286 = vmatprep.subr.mxu0 0.0
        %1287 = vmatpush2.xpose.msra.mxu0 0.0
        %1288 = vmatprep.subr.mxu0 0.0
        %1289 = vmatpush2.xpose.msra.mxu0 0.0
        %1290 = vmatprep.mubr.f32.mxu0 0.0
        %1291 = vmatmul.mubr.f32.gmra.mxu0 %v1222
        %v1292 = vpop.f32.mrf.mxu0
        %v1293 = vadd.f32 0.0, %v1292
        %v1294 = vpop.f32.mrf.mxu0
        %1295 = vdwg.mxu0
        %v1296 = vmul.f32 %v1293, 0.17677669
        %v1297 = vadd.f32 %v1296, %v782
        %v1298 = vsel %vm785, %v1297, -inf
        %1299 = vmax.xlane.f32.xlu0 %v1298
        %v1300 = vpop.xlane.xlu0 %1299
        %v1301 = vsub.f32 %v1297, %v1300
        %v1302 = vmul.f32 %v1301, 1.442695
        %v1303 = vpow.pop %v1302
        %v1304 = vsel %vm785, %v1303, 0.0
        %1305 = vadd.xlane.f32.xlu0 %v1304
        %v1306 = vpop.xlane.xlu0 %1305
        %v1307 = vrcp.pop %v1306
        %v1308 = vmul.f32 %v1303, %v1307
        %1309 = vrot.lane.b32.xlu0 %v696, 32
        %v1310 = vpop.permute.xlu0 %1309
        %v1313 = vsel %vm785, %v1308, 0
        %1315 = vmatprep.subr.mxu0 0.0
        %1316 = vmatpush1.msra.mxu0 0.0
        %1317 = vmatprep.subr.mxu0 0.0
        %1318 = vmatpush1.msra.mxu0 0.0
        %1319 = vmatprep.subr.mxu0 0.0
        %1320 = vmatpush1.msra.mxu0 0.0
        %1321 = vmatprep.subr.mxu0 0.0
        %1322 = vmatpush1.msra.mxu0 0.0
        %1323 = vmatprep.subr.mxu0 0.0
        %1324 = vmatpush1.msra.mxu0 0.0
        %1325 = vmatprep.subr.mxu0 0.0
        %1326 = vmatpush1.msra.mxu0 0.0
        %1327 = vmatprep.subr.mxu0 0.0
        %1328 = vmatpush1.msra.mxu0 0.0
        %1329 = vmatprep.subr.mxu0 0.0
        %1330 = vmatpush1.msra.mxu0 0.0
        %1331 = vmatprep.subr.mxu0 0.0
        %1332 = vmatpush1.msra.mxu0 0.0
        %1333 = vmatprep.subr.mxu0 0.0
        %1334 = vmatpush1.msra.mxu0 0.0
        %1335 = vmatprep.subr.mxu0 0.0
        %1336 = vmatpush1.msra.mxu0 0.0
        %1337 = vmatprep.subr.mxu0 0.0
        %1338 = vmatpush1.msra.mxu0 0.0
        %1339 = vmatprep.subr.mxu0 0.0
        %1340 = vmatpush1.msra.mxu0 0.0
        %1341 = vmatprep.subr.mxu0 0.0
        %1342 = vmatpush1.msra.mxu0 0.0
        %1343 = vmatprep.subr.mxu0 0.0
        %1344 = vmatpush1.msra.mxu0 0.0
        %1345 = vmatprep.subr.mxu0 0.0
        %1346 = vmatpush1.msra.mxu0 %v1310
        %1347 = vmatprep.subr.mxu0 0.0
        %1348 = vmatpush2.msra.mxu0 0.0
        %1349 = vmatprep.subr.mxu0 0.0
        %1350 = vmatpush2.msra.mxu0 0.0
        %1351 = vmatprep.subr.mxu0 0.0
        %1352 = vmatpush2.msra.mxu0 0.0
        %1353 = vmatprep.subr.mxu0 0.0
        %1354 = vmatpush2.msra.mxu0 0.0
        %1355 = vmatprep.subr.mxu0 0.0
        %1356 = vmatpush2.msra.mxu0 0.0
        %1357 = vmatprep.subr.mxu0 0.0
        %1358 = vmatpush2.msra.mxu0 0.0
        %1359 = vmatprep.subr.mxu0 0.0
        %1360 = vmatpush2.msra.mxu0 0.0
        %1361 = vmatprep.subr.mxu0 0.0
        %1362 = vmatpush2.msra.mxu0 0.0
        %1363 = vmatprep.subr.mxu0 0.0
        %1364 = vmatpush2.msra.mxu0 0.0
        %1365 = vmatprep.subr.mxu0 0.0
        %1366 = vmatpush2.msra.mxu0 0.0
        %1367 = vmatprep.subr.mxu0 0.0
        %1368 = vmatpush2.msra.mxu0 0.0
        %1369 = vmatprep.subr.mxu0 0.0
        %1370 = vmatpush2.msra.mxu0 0.0
        %1371 = vmatprep.subr.mxu0 0.0
        %1372 = vmatpush2.msra.mxu0 0.0
        %1373 = vmatprep.subr.mxu0 0.0
        %1374 = vmatpush2.msra.mxu0 0.0
        %1375 = vmatprep.subr.mxu0 0.0
        %1376 = vmatpush2.msra.mxu0 0.0
        %1377 = vmatprep.subr.mxu0 0.0
        %1378 = vmatpush2.msra.mxu0 0.0
        %1379 = vmatprep.mubr.f32.mxu0 0.0
        %1380 = vmatmul.mubr.f32.gmra.mxu0 %v1313
        %v1381 = vpop.f32.mrf.mxu0
        %v1382 = vadd.f32 0.0, %v1381
        %v1383 = vpop.f32.mrf.mxu0
        %1384 = vdwg.mxu0
        %1386 = vrot.lane.b32.xlu0 %v1382, 96
        %v1387 = vpop.permute.xlu0 %1386
        %vm1389 = vcmask 1048320
        %1390 = vst.msk [vmem:[#allocation2] sm:$0xff] %vm1389, %v1387
        %v1391 = vld [vmem:[#allocation2] sm:$0xff]
        %v1392 = vld [vmem:[#allocation3] sm:$0xff]
        %v1393 = vld [vmem:[#allocation3 + $0x8] sm:$0xff]
        %v1394 = vld [vmem:[#allocation3 + $0x10] sm:$0xff]
        %v1395 = vld [vmem:[#allocation3 + $0x18] sm:$0xff]
        %v1396 = vld [vmem:[#allocation3 + $0x20] sm:$0xff]
        %v1397 = vld [vmem:[#allocation3 + $0x28] sm:$0xff]
        %v1398 = vld [vmem:[#allocation3 + $0x30] sm:$0xff]
        %v1399 = vld [vmem:[#allocation3 + $0x38] sm:$0xff]
        %v1400 = vld [vmem:[#allocation3 + $0x40] sm:$0xff]
        %v1401 = vld [vmem:[#allocation3 + $0x48] sm:$0xff]
        %v1402 = vld [vmem:[#allocation3 + $0x50] sm:$0xff]
        %v1403 = vld [vmem:[#allocation3 + $0x58] sm:$0xff]
        %v1404 = vld [vmem:[#allocation3 + $0x60] sm:$0xff]
        %v1405 = vld [vmem:[#allocation3 + $0x68] sm:$0xff]
        %v1406 = vld [vmem:[#allocation3 + $0x70] sm:$0xff]
        %v1407 = vld [vmem:[#allocation3 + $0x78] sm:$0xff]
        %v1408 = vld [vmem:[%s5] sm:$0x1]
        %v1410 = vlaneseq
        %v1411 = vshrl.u32 %v1410, 7
        %v1412 = vsub.s32 0, %v1411
        %v1413 = vrot.slane %v1408, %v1412
        %1415 = vmatprep.subr.mxu0 0.0
        %1416 = vmatpush1.msra.mxu0 %v1407
        %1417 = vmatprep.subr.mxu0 0.0
        %1418 = vmatpush1.msra.mxu0 %v1406
        %1419 = vmatprep.subr.mxu0 0.0
        %1420 = vmatpush1.msra.mxu0 %v1405
        %1421 = vmatprep.subr.mxu0 0.0
        %1422 = vmatpush1.msra.mxu0 %v1404
        %1423 = vmatprep.subr.mxu0 0.0
        %1424 = vmatpush1.msra.mxu0 %v1403
        %1425 = vmatprep.subr.mxu0 0.0
        %1426 = vmatpush1.msra.mxu0 %v1402
        %1427 = vmatprep.subr.mxu0 0.0
        %1428 = vmatpush1.msra.mxu0 %v1401
        %1429 = vmatprep.subr.mxu0 0.0
        %1430 = vmatpush1.msra.mxu0 %v1400
        %1431 = vmatprep.subr.mxu0 0.0
        %1432 = vmatpush1.msra.mxu0 %v1399
        %1433 = vmatprep.subr.mxu0 0.0
        %1434 = vmatpush1.msra.mxu0 %v1398
        %1435 = vmatprep.subr.mxu0 0.0
        %1436 = vmatpush1.msra.mxu0 %v1397
        %1437 = vmatprep.subr.mxu0 0.0
        %1438 = vmatpush1.msra.mxu0 %v1396
        %1439 = vmatprep.subr.mxu0 0.0
        %1440 = vmatpush1.msra.mxu0 %v1395
        %1441 = vmatprep.subr.mxu0 0.0
        %1442 = vmatpush1.msra.mxu0 %v1394
        %1443 = vmatprep.subr.mxu0 0.0
        %1444 = vmatpush1.msra.mxu0 %v1393
        %1445 = vmatprep.subr.mxu0 0.0
        %1446 = vmatpush1.msra.mxu0 %v1392
        %1447 = vmatprep.subr.mxu0 0.0
        %1448 = vmatpush2.msra.mxu0 0.0
        %1449 = vmatprep.subr.mxu0 0.0
        %1450 = vmatpush2.msra.mxu0 0.0
        %1451 = vmatprep.subr.mxu0 0.0
        %1452 = vmatpush2.msra.mxu0 0.0
        %1453 = vmatprep.subr.mxu0 0.0
        %1454 = vmatpush2.msra.mxu0 0.0
        %1455 = vmatprep.subr.mxu0 0.0
        %1456 = vmatpush2.msra.mxu0 0.0
        %1457 = vmatprep.subr.mxu0 0.0
        %1458 = vmatpush2.msra.mxu0 0.0
        %1459 = vmatprep.subr.mxu0 0.0
        %1460 = vmatpush2.msra.mxu0 0.0
        %1461 = vmatprep.subr.mxu0 0.0
        %1462 = vmatpush2.msra.mxu0 0.0
        %1463 = vmatprep.subr.mxu0 0.0
        %1464 = vmatpush2.msra.mxu0 0.0
        %1465 = vmatprep.subr.mxu0 0.0
        %1466 = vmatpush2.msra.mxu0 0.0
        %1467 = vmatprep.subr.mxu0 0.0
        %1468 = vmatpush2.msra.mxu0 0.0
        %1469 = vmatprep.subr.mxu0 0.0
        %1470 = vmatpush2.msra.mxu0 0.0
        %1471 = vmatprep.subr.mxu0 0.0
        %1472 = vmatpush2.msra.mxu0 0.0
        %1473 = vmatprep.subr.mxu0 0.0
        %1474 = vmatpush2.msra.mxu0 0.0
        %1475 = vmatprep.subr.mxu0 0.0
        %1476 = vmatpush2.msra.mxu0 0.0
        %1477 = vmatprep.subr.mxu0 0.0
        %1478 = vmatpush2.msra.mxu0 0.0
        %1479 = vmatprep.mubr.f32.mxu0 0.0
        %1480 = vmatmul.mubr.f32.gmra.mxu0 %v1391
        %v1481 = vpop.f32.mrf.mxu0
        %v1482 = vadd.f32 %v1413, %v1481
        %v1483 = vpop.f32.mrf.mxu0
        %1484 = vdwg.mxu0
        %v1485 = vadd.f32 %v1482, %v492
        %v1486 = vld [vmem:[%s6] sm:$0x1]
        %v1487 = vld [vmem:[%s7] sm:$0x1]
        %1488 = vadd.xlane.f32.xlu0 %v1485
        %v1489 = vpop.xlane.xlu0 %1488
        %v1490 = vrcp.pop 128.0
        %v1491 = vmul.f32 %v1489, %v1490
        %v1492 = vsub.f32 %v1485, %v1491
        %v1493 = vmul.f32 %v1492, %v1492
        %1494 = vadd.xlane.f32.xlu0 %v1493
        %v1495 = vpop.xlane.xlu0 %1494
        %v1496 = vmul.f32 %v1495, %v1490
        %v1497 = vadd.f32 %v1496, 1e-12
        %v1498 = vrsqrt.pop %v1497
        %v1499 = vmul.f32 %v1492, %v1498
        %v1501 = vlaneseq
        %v1502 = vshrl.u32 %v1501, 7
        %v1503 = vsub.s32 0, %v1502
        %v1504 = vrot.slane %v1486, %v1503
        %v1506 = vmul.f32 %v1499, %v1504
        %v1508 = vlaneseq
        %v1509 = vshrl.u32 %v1508, 7
        %v1510 = vsub.s32 0, %v1509
        %v1511 = vrot.slane %v1487, %v1510
        %v1513 = vadd.f32 %v1506, %v1511
        %v1514 = vld [vmem:[%s8] sm:$0xff]
        %v1515 = vld [vmem:[%s8 + $0x8] sm:$0xff]
        %v1516 = vld [vmem:[%s8 + $0x10] sm:$0xff]
        %v1517 = vld [vmem:[%s8 + $0x18] sm:$0xff]
        %v1518 = vld [vmem:[%s8 + $0x20] sm:$0xff]
        %v1519 = vld [vmem:[%s8 + $0x28] sm:$0xff]
        %v1520 = vld [vmem:[%s8 + $0x30] sm:$0xff]
        %v1521 = vld [vmem:[%s8 + $0x38] sm:$0xff]
        %v1522 = vld [vmem:[%s8 + $0x40] sm:$0xff]
        %v1523 = vld [vmem:[%s8 + $0x48] sm:$0xff]
        %v1524 = vld [vmem:[%s8 + $0x50] sm:$0xff]
        %v1525 = vld [vmem:[%s8 + $0x58] sm:$0xff]
        %v1526 = vld [vmem:[%s8 + $0x60] sm:$0xff]
        %v1527 = vld [vmem:[%s8 + $0x68] sm:$0xff]
        %v1528 = vld [vmem:[%s8 + $0x70] sm:$0xff]
        %v1529 = vld [vmem:[%s8 + $0x78] sm:$0xff]
        %v1530 = vld [vmem:[%s8 + $0x80] sm:$0xff]
        %v1531 = vld [vmem:[%s8 + $0x88] sm:$0xff]
        %v1532 = vld [vmem:[%s8 + $0x90] sm:$0xff]
        %v1533 = vld [vmem:[%s8 + $0x98] sm:$0xff]
        %v1534 = vld [vmem:[%s8 + $0xa0] sm:$0xff]
        %v1535 = vld [vmem:[%s8 + $0xa8] sm:$0xff]
        %v1536 = vld [vmem:[%s8 + $0xb0] sm:$0xff]
        %v1537 = vld [vmem:[%s8 + $0xb8] sm:$0xff]
        %v1538 = vld [vmem:[%s8 + $0xc0] sm:$0xff]
        %v1539 = vld [vmem:[%s8 + $0xc8] sm:$0xff]
        %v1540 = vld [vmem:[%s8 + $0xd0] sm:$0xff]
        %v1541 = vld [vmem:[%s8 + $0xd8] sm:$0xff]
        %v1542 = vld [vmem:[%s8 + $0xe0] sm:$0xff]
        %v1543 = vld [vmem:[%s8 + $0xe8] sm:$0xff]
        %v1544 = vld [vmem:[%s8 + $0xf0] sm:$0xff]
        %v1545 = vld [vmem:[%s8 + $0xf8] sm:$0xff]
        %v1546 = vld [vmem:[%s8 + $0x100] sm:$0xff]
        %v1547 = vld [vmem:[%s8 + $0x108] sm:$0xff]
        %v1548 = vld [vmem:[%s8 + $0x110] sm:$0xff]
        %v1549 = vld [vmem:[%s8 + $0x118] sm:$0xff]
        %v1550 = vld [vmem:[%s8 + $0x120] sm:$0xff]
        %v1551 = vld [vmem:[%s8 + $0x128] sm:$0xff]
        %v1552 = vld [vmem:[%s8 + $0x130] sm:$0xff]
        %v1553 = vld [vmem:[%s8 + $0x138] sm:$0xff]
        %v1554 = vld [vmem:[%s8 + $0x140] sm:$0xff]
        %v1555 = vld [vmem:[%s8 + $0x148] sm:$0xff]
        %v1556 = vld [vmem:[%s8 + $0x150] sm:$0xff]
        %v1557 = vld [vmem:[%s8 + $0x158] sm:$0xff]
        %v1558 = vld [vmem:[%s8 + $0x160] sm:$0xff]
        %v1559 = vld [vmem:[%s8 + $0x168] sm:$0xff]
        %v1560 = vld [vmem:[%s8 + $0x170] sm:$0xff]
        %v1561 = vld [vmem:[%s8 + $0x178] sm:$0xff]
        %v1562 = vld [vmem:[%s8 + $0x180] sm:$0xff]
        %v1563 = vld [vmem:[%s8 + $0x188] sm:$0xff]
        %v1564 = vld [vmem:[%s8 + $0x190] sm:$0xff]
        %v1565 = vld [vmem:[%s8 + $0x198] sm:$0xff]
        %v1566 = vld [vmem:[%s8 + $0x1a0] sm:$0xff]
        %v1567 = vld [vmem:[%s8 + $0x1a8] sm:$0xff]
        %v1568 = vld [vmem:[%s8 + $0x1b0] sm:$0xff]
        %v1569 = vld [vmem:[%s8 + $0x1b8] sm:$0xff]
        %v1570 = vld [vmem:[%s8 + $0x1c0] sm:$0xff]
        %v1571 = vld [vmem:[%s8 + $0x1c8] sm:$0xff]
        %v1572 = vld [vmem:[%s8 + $0x1d0] sm:$0xff]
        %v1573 = vld [vmem:[%s8 + $0x1d8] sm:$0xff]
        %v1574 = vld [vmem:[%s8 + $0x1e0] sm:$0xff]
        %v1575 = vld [vmem:[%s8 + $0x1e8] sm:$0xff]
        %v1576 = vld [vmem:[%s8 + $0x1f0] sm:$0xff]
        %v1577 = vld [vmem:[%s8 + $0x1f8] sm:$0xff]
        %v1578 = vld [vmem:[%s9] sm:$0xf]
        %v1580 = vlaneseq
        %v1581 = vshrl.u32 %v1580, 7
        %v1582 = vsub.s32 0, %v1581
        %v1583 = vrot.slane %v1578, %v1582
        %v1584 = vlaneseq
        %v1585 = vshrl.u32 %v1584, 7
        %v1586 = vsub.s32 1, %v1585
        %v1587 = vrot.slane %v1578, %v1586
        %v1588 = vlaneseq
        %v1589 = vshrl.u32 %v1588, 7
        %v1590 = vsub.s32 2, %v1589
        %v1591 = vrot.slane %v1578, %v1590
        %v1592 = vlaneseq
        %v1593 = vshrl.u32 %v1592, 7
        %v1594 = vsub.s32 3, %v1593
        %v1595 = vrot.slane %v1578, %v1594
        %1600 = vmatprep.subr.mxu0 %v1575
        %1601 = vmatpush1.msra.mxu0 %v1574
        %1602 = vmatprep.subr.mxu0 %v1571
        %1603 = vmatpush1.msra.mxu0 %v1570
        %1604 = vmatprep.subr.mxu0 %v1567
        %1605 = vmatpush1.msra.mxu0 %v1566
        %1606 = vmatprep.subr.mxu0 %v1563
        %1607 = vmatpush1.msra.mxu0 %v1562
        %1608 = vmatprep.subr.mxu0 %v1559
        %1609 = vmatpush1.msra.mxu0 %v1558
        %1610 = vmatprep.subr.mxu0 %v1555
        %1611 = vmatpush1.msra.mxu0 %v1554
        %1612 = vmatprep.subr.mxu0 %v1551
        %1613 = vmatpush1.msra.mxu0 %v1550
        %1614 = vmatprep.subr.mxu0 %v1547
        %1615 = vmatpush1.msra.mxu0 %v1546
        %1616 = vmatprep.subr.mxu0 %v1543
        %1617 = vmatpush1.msra.mxu0 %v1542
        %1618 = vmatprep.subr.mxu0 %v1539
        %1619 = vmatpush1.msra.mxu0 %v1538
        %1620 = vmatprep.subr.mxu0 %v1535
        %1621 = vmatpush1.msra.mxu0 %v1534
        %1622 = vmatprep.subr.mxu0 %v1531
        %1623 = vmatpush1.msra.mxu0 %v1530
        %1624 = vmatprep.subr.mxu0 %v1527
        %1625 = vmatpush1.msra.mxu0 %v1526
        %1626 = vmatprep.subr.mxu0 %v1523
        %1627 = vmatpush1.msra.mxu0 %v1522
        %1628 = vmatprep.subr.mxu0 %v1519
        %1629 = vmatpush1.msra.mxu0 %v1518
        %1630 = vmatprep.subr.mxu0 %v1515
        %1631 = vmatpush1.msra.mxu0 %v1514
        %1632 = vmatprep.subr.mxu0 0.0
        %1633 = vmatpush2.msra.mxu0 0.0
        %1634 = vmatprep.subr.mxu0 0.0
        %1635 = vmatpush2.msra.mxu0 0.0
        %1636 = vmatprep.subr.mxu0 0.0
        %1637 = vmatpush2.msra.mxu0 0.0
        %1638 = vmatprep.subr.mxu0 0.0
        %1639 = vmatpush2.msra.mxu0 0.0
        %1640 = vmatprep.subr.mxu0 0.0
        %1641 = vmatpush2.msra.mxu0 0.0
        %1642 = vmatprep.subr.mxu0 0.0
        %1643 = vmatpush2.msra.mxu0 0.0
        %1644 = vmatprep.subr.mxu0 0.0
        %1645 = vmatpush2.msra.mxu0 0.0
        %1646 = vmatprep.subr.mxu0 0.0
        %1647 = vmatpush2.msra.mxu0 0.0
        %1648 = vmatprep.subr.mxu0 0.0
        %1649 = vmatpush2.msra.mxu0 0.0
        %1650 = vmatprep.subr.mxu0 0.0
        %1651 = vmatpush2.msra.mxu0 0.0
        %1652 = vmatprep.subr.mxu0 0.0
        %1653 = vmatpush2.msra.mxu0 0.0
        %1654 = vmatprep.subr.mxu0 0.0
        %1655 = vmatpush2.msra.mxu0 0.0
        %1656 = vmatprep.subr.mxu0 0.0
        %1657 = vmatpush2.msra.mxu0 0.0
        %1658 = vmatprep.subr.mxu0 0.0
        %1659 = vmatpush2.msra.mxu0 0.0
        %1660 = vmatprep.subr.mxu0 0.0
        %1661 = vmatpush2.msra.mxu0 0.0
        %1662 = vmatprep.subr.mxu0 0.0
        %1663 = vmatpush2.msra.mxu0 0.0
        %1664 = vmatprep.mubr.f32.mxu0 0.0
        %1665 = vmatmul.mubr.f32.gmra.mxu0 %v1513
        %v1666 = vpop.f32.mrf.mxu0
        %v1667 = vadd.f32 %v1583, %v1666
        %v1668 = vpop.f32.mrf.mxu0
        %v1669 = vadd.f32 %v1587, %v1668
        %1670 = vdwg.mxu0
        %1671 = vmatprep.subr.mxu0 %v1577
        %1672 = vmatpush1.msra.mxu0 %v1576
        %1673 = vmatprep.subr.mxu0 %v1573
        %1674 = vmatpush1.msra.mxu0 %v1572
        %1675 = vmatprep.subr.mxu0 %v1569
        %1676 = vmatpush1.msra.mxu0 %v1568
        %1677 = vmatprep.subr.mxu0 %v1565
        %1678 = vmatpush1.msra.mxu0 %v1564
        %1679 = vmatprep.subr.mxu0 %v1561
        %1680 = vmatpush1.msra.mxu0 %v1560
        %1681 = vmatprep.subr.mxu0 %v1557
        %1682 = vmatpush1.msra.mxu0 %v1556
        %1683 = vmatprep.subr.mxu0 %v1553
        %1684 = vmatpush1.msra.mxu0 %v1552
        %1685 = vmatprep.subr.mxu0 %v1549
        %1686 = vmatpush1.msra.mxu0 %v1548
        %1687 = vmatprep.subr.mxu0 %v1545
        %1688 = vmatpush1.msra.mxu0 %v1544
        %1689 = vmatprep.subr.mxu0 %v1541
        %1690 = vmatpush1.msra.mxu0 %v1540
        %1691 = vmatprep.subr.mxu0 %v1537
        %1692 = vmatpush1.msra.mxu0 %v1536
        %1693 = vmatprep.subr.mxu0 %v1533
        %1694 = vmatpush1.msra.mxu0 %v1532
        %1695 = vmatprep.subr.mxu0 %v1529
        %1696 = vmatpush1.msra.mxu0 %v1528
        %1697 = vmatprep.subr.mxu0 %v1525
        %1698 = vmatpush1.msra.mxu0 %v1524
        %1699 = vmatprep.subr.mxu0 %v1521
        %1700 = vmatpush1.msra.mxu0 %v1520
        %1701 = vmatprep.subr.mxu0 %v1517
        %1702 = vmatpush1.msra.mxu0 %v1516
        %1703 = vmatprep.subr.mxu0 0.0
        %1704 = vmatpush2.msra.mxu0 0.0
        %1705 = vmatprep.subr.mxu0 0.0
        %1706 = vmatpush2.msra.mxu0 0.0
        %1707 = vmatprep.subr.mxu0 0.0
        %1708 = vmatpush2.msra.mxu0 0.0
        %1709 = vmatprep.subr.mxu0 0.0
        %1710 = vmatpush2.msra.mxu0 0.0
        %1711 = vmatprep.subr.mxu0 0.0
        %1712 = vmatpush2.msra.mxu0 0.0
        %1713 = vmatprep.subr.mxu0 0.0
        %1714 = vmatpush2.msra.mxu0 0.0
        %1715 = vmatprep.subr.mxu0 0.0
        %1716 = vmatpush2.msra.mxu0 0.0
        %1717 = vmatprep.subr.mxu0 0.0
        %1718 = vmatpush2.msra.mxu0 0.0
        %1719 = vmatprep.subr.mxu0 0.0
        %1720 = vmatpush2.msra.mxu0 0.0
        %1721 = vmatprep.subr.mxu0 0.0
        %1722 = vmatpush2.msra.mxu0 0.0
        %1723 = vmatprep.subr.mxu0 0.0
        %1724 = vmatpush2.msra.mxu0 0.0
        %1725 = vmatprep.subr.mxu0 0.0
        %1726 = vmatpush2.msra.mxu0 0.0
        %1727 = vmatprep.subr.mxu0 0.0
        %1728 = vmatpush2.msra.mxu0 0.0
        %1729 = vmatprep.subr.mxu0 0.0
        %1730 = vmatpush2.msra.mxu0 0.0
        %1731 = vmatprep.subr.mxu0 0.0
        %1732 = vmatpush2.msra.mxu0 0.0
        %1733 = vmatprep.subr.mxu0 0.0
        %1734 = vmatpush2.msra.mxu0 0.0
        %1735 = vmatprep.mubr.f32.mxu0 0.0
        %1736 = vmatmul.mubr.f32.gmra.mxu0 %v1513
        %v1737 = vpop.f32.mrf.mxu0
        %v1738 = vadd.f32 %v1591, %v1737
        %v1739 = vpop.f32.mrf.mxu0
        %v1740 = vadd.f32 %v1595, %v1739
        %1741 = vdwg.mxu0
        %v1742 = vmul.f32 %v1667, 0.5
        %v1743 = vmul.f32 %v1669, 0.5
        %v1744 = vmul.f32 %v1738, 0.5
        %v1745 = vmul.f32 %v1740, 0.5
        %v1746 = vmul.f32 %v1667, 0.044715
        %v1747 = vmul.f32 %v1669, 0.044715
        %v1748 = vmul.f32 %v1738, 0.044715
        %v1749 = vmul.f32 %v1740, 0.044715
        %v1750 = vmul.f32 %v1746, %v1667
        %v1751 = vmul.f32 %v1747, %v1669
        %v1752 = vmul.f32 %v1748, %v1738
        %v1753 = vmul.f32 %v1749, %v1740
        %v1754 = vmul.f32 %v1750, %v1667
        %v1755 = vmul.f32 %v1751, %v1669
        %v1756 = vmul.f32 %v1752, %v1738
        %v1757 = vmul.f32 %v1753, %v1740
        %v1758 = vadd.f32 %v1667, %v1754
        %v1759 = vadd.f32 %v1669, %v1755
        %v1760 = vadd.f32 %v1738, %v1756
        %v1761 = vadd.f32 %v1740, %v1757
        %v1762 = vmul.f32 %v1758, 0.7978846
        %v1763 = vmul.f32 %v1759, 0.7978846
        %v1764 = vmul.f32 %v1760, 0.7978846
        %v1765 = vmul.f32 %v1761, 0.7978846
        %v1766 = vtanh.pop %v1762
        %v1767 = vtanh.pop %v1763
        %v1768 = vtanh.pop %v1764
        %v1769 = vtanh.pop %v1765
        %v1770 = vadd.f32 %v1766, 1.0
        %v1771 = vadd.f32 %v1767, 1.0
        %v1772 = vadd.f32 %v1768, 1.0
        %v1773 = vadd.f32 %v1769, 1.0
        %v1774 = vmul.f32 %v1742, %v1770
        %v1775 = vmul.f32 %v1743, %v1771
        %v1776 = vmul.f32 %v1744, %v1772
        %v1777 = vmul.f32 %v1745, %v1773
        %v1778 = vld [vmem:[%s10] sm:$0xff]
        %v1779 = vld [vmem:[%s10 + $0x8] sm:$0xff]
        %v1780 = vld [vmem:[%s10 + $0x10] sm:$0xff]
        %v1781 = vld [vmem:[%s10 + $0x18] sm:$0xff]
        %v1782 = vld [vmem:[%s10 + $0x20] sm:$0xff]
        %v1783 = vld [vmem:[%s10 + $0x28] sm:$0xff]
        %v1784 = vld [vmem:[%s10 + $0x30] sm:$0xff]
        %v1785 = vld [vmem:[%s10 + $0x38] sm:$0xff]
        %v1786 = vld [vmem:[%s10 + $0x40] sm:$0xff]
        %v1787 = vld [vmem:[%s10 + $0x48] sm:$0xff]
        %v1788 = vld [vmem:[%s10 + $0x50] sm:$0xff]
        %v1789 = vld [vmem:[%s10 + $0x58] sm:$0xff]
        %v1790 = vld [vmem:[%s10 + $0x60] sm:$0xff]
        %v1791 = vld [vmem:[%s10 + $0x68] sm:$0xff]
        %v1792 = vld [vmem:[%s10 + $0x70] sm:$0xff]
        %v1793 = vld [vmem:[%s10 + $0x78] sm:$0xff]
        %v1794 = vld [vmem:[%s10 + $0x80] sm:$0xff]
        %v1795 = vld [vmem:[%s10 + $0x88] sm:$0xff]
        %v1796 = vld [vmem:[%s10 + $0x90] sm:$0xff]
        %v1797 = vld [vmem:[%s10 + $0x98] sm:$0xff]
        %v1798 = vld [vmem:[%s10 + $0xa0] sm:$0xff]
        %v1799 = vld [vmem:[%s10 + $0xa8] sm:$0xff]
        %v1800 = vld [vmem:[%s10 + $0xb0] sm:$0xff]
        %v1801 = vld [vmem:[%s10 + $0xb8] sm:$0xff]
        %v1802 = vld [vmem:[%s10 + $0xc0] sm:$0xff]
        %v1803 = vld [vmem:[%s10 + $0xc8] sm:$0xff]
        %v1804 = vld [vmem:[%s10 + $0xd0] sm:$0xff]
        %v1805 = vld [vmem:[%s10 + $0xd8] sm:$0xff]
        %v1806 = vld [vmem:[%s10 + $0xe0] sm:$0xff]
        %v1807 = vld [vmem:[%s10 + $0xe8] sm:$0xff]
        %v1808 = vld [vmem:[%s10 + $0xf0] sm:$0xff]
        %v1809 = vld [vmem:[%s10 + $0xf8] sm:$0xff]
        %v1810 = vld [vmem:[%s10 + $0x100] sm:$0xff]
        %v1811 = vld [vmem:[%s10 + $0x108] sm:$0xff]
        %v1812 = vld [vmem:[%s10 + $0x110] sm:$0xff]
        %v1813 = vld [vmem:[%s10 + $0x118] sm:$0xff]
        %v1814 = vld [vmem:[%s10 + $0x120] sm:$0xff]
        %v1815 = vld [vmem:[%s10 + $0x128] sm:$0xff]
        %v1816 = vld [vmem:[%s10 + $0x130] sm:$0xff]
        %v1817 = vld [vmem:[%s10 + $0x138] sm:$0xff]
        %v1818 = vld [vmem:[%s10 + $0x140] sm:$0xff]
        %v1819 = vld [vmem:[%s10 + $0x148] sm:$0xff]
        %v1820 = vld [vmem:[%s10 + $0x150] sm:$0xff]
        %v1821 = vld [vmem:[%s10 + $0x158] sm:$0xff]
        %v1822 = vld [vmem:[%s10 + $0x160] sm:$0xff]
        %v1823 = vld [vmem:[%s10 + $0x168] sm:$0xff]
        %v1824 = vld [vmem:[%s10 + $0x170] sm:$0xff]
        %v1825 = vld [vmem:[%s10 + $0x178] sm:$0xff]
        %v1826 = vld [vmem:[%s10 + $0x180] sm:$0xff]
        %v1827 = vld [vmem:[%s10 + $0x188] sm:$0xff]
        %v1828 = vld [vmem:[%s10 + $0x190] sm:$0xff]
        %v1829 = vld [vmem:[%s10 + $0x198] sm:$0xff]
        %v1830 = vld [vmem:[%s10 + $0x1a0] sm:$0xff]
        %v1831 = vld [vmem:[%s10 + $0x1a8] sm:$0xff]
        %v1832 = vld [vmem:[%s10 + $0x1b0] sm:$0xff]
        %v1833 = vld [vmem:[%s10 + $0x1b8] sm:$0xff]
        %v1834 = vld [vmem:[%s10 + $0x1c0] sm:$0xff]
        %v1835 = vld [vmem:[%s10 + $0x1c8] sm:$0xff]
        %v1836 = vld [vmem:[%s10 + $0x1d0] sm:$0xff]
        %v1837 = vld [vmem:[%s10 + $0x1d8] sm:$0xff]
        %v1838 = vld [vmem:[%s10 + $0x1e0] sm:$0xff]
        %v1839 = vld [vmem:[%s10 + $0x1e8] sm:$0xff]
        %v1840 = vld [vmem:[%s10 + $0x1f0] sm:$0xff]
        %v1841 = vld [vmem:[%s10 + $0x1f8] sm:$0xff]
        %v1842 = vld [vmem:[%s11] sm:$0x1]
        %v1844 = vlaneseq
        %v1845 = vshrl.u32 %v1844, 7
        %v1846 = vsub.s32 0, %v1845
        %v1847 = vrot.slane %v1842, %v1846
        %1849 = vmatprep.subr.mxu0 0.0
        %1850 = vmatpush1.msra.mxu0 %v1793
        %1851 = vmatprep.subr.mxu0 0.0
        %1852 = vmatpush1.msra.mxu0 %v1792
        %1853 = vmatprep.subr.mxu0 0.0
        %1854 = vmatpush1.msra.mxu0 %v1791
        %1855 = vmatprep.subr.mxu0 0.0
        %1856 = vmatpush1.msra.mxu0 %v1790
        %1857 = vmatprep.subr.mxu0 0.0
        %1858 = vmatpush1.msra.mxu0 %v1789
        %1859 = vmatprep.subr.mxu0 0.0
        %1860 = vmatpush1.msra.mxu0 %v1788
        %1861 = vmatprep.subr.mxu0 0.0
        %1862 = vmatpush1.msra.mxu0 %v1787
        %1863 = vmatprep.subr.mxu0 0.0
        %1864 = vmatpush1.msra.mxu0 %v1786
        %1865 = vmatprep.subr.mxu0 0.0
        %1866 = vmatpush1.msra.mxu0 %v1785
        %1867 = vmatprep.subr.mxu0 0.0
        %1868 = vmatpush1.msra.mxu0 %v1784
        %1869 = vmatprep.subr.mxu0 0.0
        %1870 = vmatpush1.msra.mxu0 %v1783
        %1871 = vmatprep.subr.mxu0 0.0
        %1872 = vmatpush1.msra.mxu0 %v1782
        %1873 = vmatprep.subr.mxu0 0.0
        %1874 = vmatpush1.msra.mxu0 %v1781
        %1875 = vmatprep.subr.mxu0 0.0
        %1876 = vmatpush1.msra.mxu0 %v1780
        %1877 = vmatprep.subr.mxu0 0.0
        %1878 = vmatpush1.msra.mxu0 %v1779
        %1879 = vmatprep.subr.mxu0 0.0
        %1880 = vmatpush1.msra.mxu0 %v1778
        %1881 = vmatprep.subr.mxu0 0.0
        %1882 = vmatpush2.msra.mxu0 %v1809
        %1883 = vmatprep.subr.mxu0 0.0
        %1884 = vmatpush2.msra.mxu0 %v1808
        %1885 = vmatprep.subr.mxu0 0.0
        %1886 = vmatpush2.msra.mxu0 %v1807
        %1887 = vmatprep.subr.mxu0 0.0
        %1888 = vmatpush2.msra.mxu0 %v1806
        %1889 = vmatprep.subr.mxu0 0.0
        %1890 = vmatpush2.msra.mxu0 %v1805
        %1891 = vmatprep.subr.mxu0 0.0
        %1892 = vmatpush2.msra.mxu0 %v1804
        %1893 = vmatprep.subr.mxu0 0.0
        %1894 = vmatpush2.msra.mxu0 %v1803
        %1895 = vmatprep.subr.mxu0 0.0
        %1896 = vmatpush2.msra.mxu0 %v1802
        %1897 = vmatprep.subr.mxu0 0.0
        %1898 = vmatpush2.msra.mxu0 %v1801
        %1899 = vmatprep.subr.mxu0 0.0
        %1900 = vmatpush2.msra.mxu0 %v1800
        %1901 = vmatprep.subr.mxu0 0.0
        %1902 = vmatpush2.msra.mxu0 %v1799
        %1903 = vmatprep.subr.mxu0 0.0
        %1904 = vmatpush2.msra.mxu0 %v1798
        %1905 = vmatprep.subr.mxu0 0.0
        %1906 = vmatpush2.msra.mxu0 %v1797
        %1907 = vmatprep.subr.mxu0 0.0
        %1908 = vmatpush2.msra.mxu0 %v1796
        %1909 = vmatprep.subr.mxu0 0.0
        %1910 = vmatpush2.msra.mxu0 %v1795
        %1911 = vmatprep.subr.mxu0 0.0
        %1912 = vmatpush2.msra.mxu0 %v1794
        %1913 = vmatprep.mubr.f32.mxu0 %v1775
        %1914 = vmatmul.mubr.f32.gmra.mxu0 %v1774
        %v1915 = vpop.f32.mrf.mxu0
        %v1916 = vadd.f32 %v1847, %v1915
        %v1917 = vpop.f32.mrf.mxu0
        %1918 = vdwg.mxu0
        %1919 = vmatprep.subr.mxu0 0.0
        %1920 = vmatpush1.msra.mxu0 %v1825
        %1921 = vmatprep.subr.mxu0 0.0
        %1922 = vmatpush1.msra.mxu0 %v1824
        %1923 = vmatprep.subr.mxu0 0.0
        %1924 = vmatpush1.msra.mxu0 %v1823
        %1925 = vmatprep.subr.mxu0 0.0
        %1926 = vmatpush1.msra.mxu0 %v1822
        %1927 = vmatprep.subr.mxu0 0.0
        %1928 = vmatpush1.msra.mxu0 %v1821
        %1929 = vmatprep.subr.mxu0 0.0
        %1930 = vmatpush1.msra.mxu0 %v1820
        %1931 = vmatprep.subr.mxu0 0.0
        %1932 = vmatpush1.msra.mxu0 %v1819
        %1933 = vmatprep.subr.mxu0 0.0
        %1934 = vmatpush1.msra.mxu0 %v1818
        %1935 = vmatprep.subr.mxu0 0.0
        %1936 = vmatpush1.msra.mxu0 %v1817
        %1937 = vmatprep.subr.mxu0 0.0
        %1938 = vmatpush1.msra.mxu0 %v1816
        %1939 = vmatprep.subr.mxu0 0.0
        %1940 = vmatpush1.msra.mxu0 %v1815
        %1941 = vmatprep.subr.mxu0 0.0
        %1942 = vmatpush1.msra.mxu0 %v1814
        %1943 = vmatprep.subr.mxu0 0.0
        %1944 = vmatpush1.msra.mxu0 %v1813
        %1945 = vmatprep.subr.mxu0 0.0
        %1946 = vmatpush1.msra.mxu0 %v1812
        %1947 = vmatprep.subr.mxu0 0.0
        %1948 = vmatpush1.msra.mxu0 %v1811
        %1949 = vmatprep.subr.mxu0 0.0
        %1950 = vmatpush1.msra.mxu0 %v1810
        %1951 = vmatprep.subr.mxu0 0.0
        %1952 = vmatpush2.msra.mxu0 %v1841
        %1953 = vmatprep.subr.mxu0 0.0
        %1954 = vmatpush2.msra.mxu0 %v1840
        %1955 = vmatprep.subr.mxu0 0.0
        %1956 = vmatpush2.msra.mxu0 %v1839
        %1957 = vmatprep.subr.mxu0 0.0
        %1958 = vmatpush2.msra.mxu0 %v1838
        %1959 = vmatprep.subr.mxu0 0.0
        %1960 = vmatpush2.msra.mxu0 %v1837
        %1961 = vmatprep.subr.mxu0 0.0
        %1962 = vmatpush2.msra.mxu0 %v1836
        %1963 = vmatprep.subr.mxu0 0.0
        %1964 = vmatpush2.msra.mxu0 %v1835
        %1965 = vmatprep.subr.mxu0 0.0
        %1966 = vmatpush2.msra.mxu0 %v1834
        %1967 = vmatprep.subr.mxu0 0.0
        %1968 = vmatpush2.msra.mxu0 %v1833
        %1969 = vmatprep.subr.mxu0 0.0
        %1970 = vmatpush2.msra.mxu0 %v1832
        %1971 = vmatprep.subr.mxu0 0.0
        %1972 = vmatpush2.msra.mxu0 %v1831
        %1973 = vmatprep.subr.mxu0 0.0
        %1974 = vmatpush2.msra.mxu0 %v1830
        %1975 = vmatprep.subr.mxu0 0.0
        %1976 = vmatpush2.msra.mxu0 %v1829
        %1977 = vmatprep.subr.mxu0 0.0
        %1978 = vmatpush2.msra.mxu0 %v1828
        %1979 = vmatprep.subr.mxu0 0.0
        %1980 = vmatpush2.msra.mxu0 %v1827
        %1981 = vmatprep.subr.mxu0 0.0
        %1982 = vmatpush2.msra.mxu0 %v1826
        %1983 = vmatprep.mubr.f32.mxu0 %v1777
        %1984 = vmatmul.mubr.f32.gmra.mxu0 %v1776
        %v1985 = vpop.f32.mrf.mxu0
        %v1986 = vadd.f32 %v1916, %v1985
        %v1987 = vpop.f32.mrf.mxu0
        %1988 = vdwg.mxu0
        %v1989 = vadd.f32 %v1986, %v1513
        %v1990 = vld [vmem:[%s12] sm:$0x1]
        %v1991 = vld [vmem:[%s13] sm:$0x1]
        %1992 = vadd.xlane.f32.xlu0 %v1989
        %v1993 = vpop.xlane.xlu0 %1992
        %v1994 = vmul.f32 %v1993, %v1490
        %v1995 = vsub.f32 %v1989, %v1994
        %v1996 = vmul.f32 %v1995, %v1995
        %1997 = vadd.xlane.f32.xlu0 %v1996
        %v1998 = vpop.xlane.xlu0 %1997
        %v1999 = vmul.f32 %v1998, %v1490
        %v2000 = vadd.f32 %v1999, 1e-12
        %v2001 = vrsqrt.pop %v2000
        %v2002 = vmul.f32 %v1995, %v2001
        %v2004 = vlaneseq
        %v2005 = vshrl.u32 %v2004, 7
        %v2006 = vsub.s32 0, %v2005
        %v2007 = vrot.slane %v1990, %v2006
        %v2009 = vmul.f32 %v2002, %v2007
        %v2011 = vlaneseq
        %v2012 = vshrl.u32 %v2011, 7
        %v2013 = vsub.s32 0, %v2012
        %v2014 = vrot.slane %v1991, %v2013
        %v2016 = vadd.f32 %v2009, %v2014
        %2017 = vst [vmem:[%s491] sm:$0xff] %v2016
        %p2018 = scmp.lt.s32.totalorder %s26, 1
        %s2019 = scalar_select %p2018, %s26, 1
        %s2020 = smul.addr %s2019, 8
        %s2021 = scalar_lea.vmem %s14, %s2020
        // Predicated region
        $region81: #{duygu_analizi_forward.5} parent=75 // pred_check
          %p2022 = pneg %p348
        $region82: #{duygu_analizi_forward.5} parent=75 // pred_check_branch
          %2024 = sbr.rel (%p2022) target = $region84
        $region83: #{duygu_analizi_forward.5} parent=75 // pred_region
          _
        $region84: #{duygu_analizi_forward.5} parent=75 // pred_fallthru
          _
      $region76: #{duygu_analizi_forward.5} parent=5 // pred_fallthru
        _
      %p2025 = scmp.le.s32.totalorder 2, %s21
      // Predicated region
      $region85: #{duygu_analizi_forward.5} parent=5 // pred_check
        %p2026 = pneg %p2025
      $region86: #{duygu_analizi_forward.5} parent=5 // pred_check_branch
        %2028 = sbr.rel (%p2026) target = $region88
      $region87: #{duygu_analizi_forward.5} parent=5 // pred_region
        %s2029 = ssub.s32 %s21, 2
        // Predicated region
        $region89: #{duygu_analizi_forward.5} parent=87 // pred_check
          %p2030 = pneg %p354
        $region90: #{duygu_analizi_forward.5} parent=87 // pred_check_branch
          %2032 = sbr.rel (%p2030) target = $region92
        $region91: #{duygu_analizi_forward.5} parent=87 // pred_region
          %p2033 = scmp.lt.s32.totalorder %s27, 1
          %s2034 = scalar_select %p2033, %s27, 1
          %s2035 = smul.addr %s2034, 8
          %s2036 = scalar_lea.vmem %s14, %s2035
        $region92: #{duygu_analizi_forward.5} parent=87 // pred_fallthru
          _
      $region88: #{duygu_analizi_forward.5} parent=5 // pred_fallthru
        _
    $region6: #{duygu_analizi_forward.5} parent=1 // loop_footer
      %s25 = sadd.s32 1, %s21
    $region7: #{duygu_analizi_forward.5} parent=1 // loop_footer_branch
      %20 = sbr.rel target = $region3
    $region8: #{duygu_analizi_forward.5} parent=1 // loop_exit
      _
    %2037 = vsyncpa [#allocation4], 1
    %s2038 = scalar_lea.sflag [#allocation4], 1
    %2039 = vsyncpa %s2038, 1

// kernel: duygu_analizi_forward.6
$region0: #{duygu_analizi_forward.6}
  #allocation0 [shape = 'u32[]', space=smem, size = 0x4, offset = 0x4, fixed_abs, tag = 'smem constant byte address 0x4 - core index']
  #allocation1 [shape = 'u32[144,128]{1,0:T(1,128)}', space=vmem, size = 0x12000, scoped, tag = 'internal scratch']
  #allocation2 [shape = 'f32[8,128]{1,0:T(8,128)}', space=vmem, size = 0x1000, scoped, tag = 'scratch operand']
  %s0 = inlined_call_operand.vmem [shape: f32[16,128], index: 0, kind: input, shape index: {}]
  %s1 = inlined_call_operand.vmem [shape: f32[2,1,8], index: 1, kind: input, shape index: {}]
  %s2 = inlined_call_operand.vmem [shape: f32[128,384], index: 2, kind: input, shape index: {}]
  %s3 = inlined_call_operand.vmem [shape: f32[1,384], index: 3, kind: input, shape index: {}]
  %s4 = inlined_call_operand.vmem [shape: f32[128,128], index: 4, kind: input, shape index: {}]
  %s5 = inlined_call_operand.vmem [shape: f32[1,128], index: 5, kind: input, shape index: {}]
  %s6 = inlined_call_operand.vmem [shape: f32[1,128], index: 6, kind: input, shape index: {}]
  %s7 = inlined_call_operand.vmem [shape: f32[1,128], index: 7, kind: input, shape index: {}]
  %s8 = inlined_call_operand.vmem [shape: f32[128,512], index: 8, kind: input, shape index: {}]
  %s9 = inlined_call_operand.vmem [shape: f32[1,512], index: 9, kind: input, shape index: {}]
  %s10 = inlined_call_operand.vmem [shape: f32[512,128], index: 10, kind: input, shape index: {}]
  %s11 = inlined_call_operand.vmem [shape: f32[1,128], index: 11, kind: input, shape index: {}]
  %s12 = inlined_call_operand.vmem [shape: f32[1,128], index: 12, kind: input, shape index: {}]
  %s13 = inlined_call_operand.vmem [shape: f32[1,128], index: 13, kind: input, shape index: {}]
  %s14 = inlined_call_operand.vmem [shape: f32[16,128], index: 14, kind: output, shape index: {}]
  %s15 = sld [smem:[#allocation0]]
  $region89: #{duygu_analizi_forward.6} parent=0
    _
  %s17 = ssub.s32 1, %s15
  %s18 = scalar_select 0, %s17, %s15
  loop: start=0, step=1, limit=4
  $region2: #{duygu_analizi_forward.6} parent=0 // loop_pre_header
    _
  $region3: #{duygu_analizi_forward.6} parent=0 // loop_header
    %s20 = sphi 0, %s24
    %p21 = scmp.ge.s32.totalorder %s20, 4
    %s30 = sphi 0, %s32
    %s33 = sphi 0, %s30
    %s34 = sphi 0, %s33
    %s50 = sphi 0, %s34
    %s56 = sphi 0, %s58
    %s59 = sphi 0, %s56
    %s60 = sphi 0, %s59
    %s76 = sphi 0, %s60
    %s80 = sphi 0, %s80
    %s82 = sphi 0, %s80
    %s83 = sphi 0, %s82
    %s97 = sphi 0, %s83
    %s101 = sphi 0, %s101
    %s103 = sphi 0, %s101
    %s104 = sphi 0, %s103
    %s118 = sphi 0, %s104
    %s122 = sphi 0, %s122
    %s124 = sphi 0, %s122
    %s125 = sphi 0, %s124
    %s139 = sphi 0, %s125
    %s143 = sphi 0, %s143
    %s145 = sphi 0, %s143
    %s146 = sphi 0, %s145
    %s160 = sphi 0, %s146
    %s164 = sphi 0, %s164
    %s166 = sphi 0, %s164
    %s167 = sphi 0, %s166
    %s181 = sphi 0, %s167
    %s185 = sphi 0, %s185
    %s187 = sphi 0, %s185
    %s188 = sphi 0, %s187
    %s202 = sphi 0, %s188
    %s206 = sphi 0, %s206
    %s208 = sphi 0, %s206
    %s209 = sphi 0, %s208
    %s223 = sphi 0, %s209
    %s227 = sphi 0, %s227
    %s229 = sphi 0, %s227
    %s230 = sphi 0, %s229
    %s244 = sphi 0, %s230
    %s248 = sphi 0, %s248
    %s250 = sphi 0, %s248
    %s251 = sphi 0, %s250
    %s265 = sphi 0, %s251
    %s269 = sphi 0, %s269
    %s271 = sphi 0, %s269
    %s272 = sphi 0, %s271
    %s286 = sphi 0, %s272
    %s290 = sphi 0, %s290
    %s292 = sphi 0, %s290
    %s293 = sphi 0, %s292
    %s307 = sphi 0, %s293
    %s311 = sphi 0, %s311
    %s313 = sphi 0, %s311
    %s314 = sphi 0, %s313
    %s328 = sphi 0, %s314
    %s334 = sphi 0, %s336
    %s337 = sphi 0, %s334
    %s338 = sphi 0, %s337
    %s354 = sphi 0, %s338
  $region4: #{duygu_analizi_forward.6} parent=0 // loop_header_branch
    %23 = sbr.rel (%p21) target = $region8
  $region5: #{duygu_analizi_forward.6} parent=0 // loop_body
    %s25 = ssub.s32 %s20, 1
    %s26 = ssub.s32 %s20, 2
    %s27 = sadd.s32 %s20, 1
    %s28 = ssub.s32 %s20, %s27
    %p29 = scmp.eq.s32.totalorder %s28, 0
    %s31 = sadd.s32 %s30, 1
    %s32 = scalar_select %p29, %s30, %s31
    %p35 = pneg %p29
    %p36 = scmp.eq.s32.totalorder %s20, 1
    %p37 = por %p35, %p36
    %p38 = scmp.ne.s32.totalorder %s30, %s33
    %p39 = scmp.eq.s32.totalorder %s20, 0
    %p40 = por %p38, %p39
    %p41 = scmp.ne.s32.totalorder %s30, %s33
    %p42 = scmp.eq.s32.totalorder %s25, 1
    %p43 = por %p41, %p42
    %p44 = scmp.ne.s32.totalorder %s33, %s34
    %p45 = scmp.eq.s32.totalorder %s25, 0
    %p46 = por %p44, %p45
    %p47 = scmp.ne.s32.totalorder %s33, %s34
    %p48 = scmp.eq.s32.totalorder %s26, 1
    %p49 = por %p47, %p48
    %p51 = scmp.ne.s32.totalorder %s34, %s50
    %p52 = scmp.eq.s32.totalorder %s26, 0
    %p53 = por %p51, %p52
    %s54 = ssub.s32 %s20, %s27
    %p55 = scmp.eq.s32.totalorder %s54, 0
    %s57 = sadd.s32 %s56, 1
    %s58 = scalar_select %p55, %s56, %s57
    %p61 = pneg %p55
    %p62 = scmp.eq.s32.totalorder %s20, 1
    %p63 = por %p61, %p62
    %p64 = scmp.ne.s32.totalorder %s56, %s59
    %p65 = scmp.eq.s32.totalorder %s20, 0
    %p66 = por %p64, %p65
    %p67 = scmp.ne.s32.totalorder %s56, %s59
    %p68 = scmp.eq.s32.totalorder %s25, 1
    %p69 = por %p67, %p68
    %p70 = scmp.ne.s32.totalorder %s59, %s60
    %p71 = scmp.eq.s32.totalorder %s25, 0
    %p72 = por %p70, %p71
    %p73 = scmp.ne.s32.totalorder %s59, %s60
    %p74 = scmp.eq.s32.totalorder %s26, 1
    %p75 = por %p73, %p74
    %p77 = scmp.ne.s32.totalorder %s60, %s76
    %p78 = scmp.eq.s32.totalorder %s26, 0
    %p79 = por %p77, %p78
    %s81 = sadd.s32 %s80, 1
    %p84 = scmp.eq.s32.totalorder %s20, 1
    %p85 = scmp.ne.s32.totalorder %s80, %s82
    %p86 = scmp.eq.s32.totalorder %s20, 0
    %p87 = por %p85, %p86
    %p88 = scmp.ne.s32.totalorder %s80, %s82
    %p89 = scmp.eq.s32.totalorder %s25, 1
    %p90 = por %p88, %p89
    %p91 = scmp.ne.s32.totalorder %s82, %s83
    %p92 = scmp.eq.s32.totalorder %s25, 0
    %p93 = por %p91, %p92
    %p94 = scmp.ne.s32.totalorder %s82, %s83
    %p95 = scmp.eq.s32.totalorder %s26, 1
    %p96 = por %p94, %p95
    %p98 = scmp.ne.s32.totalorder %s83, %s97
    %p99 = scmp.eq.s32.totalorder %s26, 0
    %p100 = por %p98, %p99
    %s102 = sadd.s32 %s101, 1
    %p105 = scmp.eq.s32.totalorder %s20, 1
    %p106 = scmp.ne.s32.totalorder %s101, %s103
    %p107 = scmp.eq.s32.totalorder %s20, 0
    %p108 = por %p106, %p107
    %p109 = scmp.ne.s32.totalorder %s101, %s103
    %p110 = scmp.eq.s32.totalorder %s25, 1
    %p111 = por %p109, %p110
    %p112 = scmp.ne.s32.totalorder %s103, %s104
    %p113 = scmp.eq.s32.totalorder %s25, 0
    %p114 = por %p112, %p113
    %p115 = scmp.ne.s32.totalorder %s103, %s104
    %p116 = scmp.eq.s32.totalorder %s26, 1
    %p117 = por %p115, %p116
    %p119 = scmp.ne.s32.totalorder %s104, %s118
    %p120 = scmp.eq.s32.totalorder %s26, 0
    %p121 = por %p119, %p120
    %s123 = sadd.s32 %s122, 1
    %p126 = scmp.eq.s32.totalorder %s20, 1
    %p127 = scmp.ne.s32.totalorder %s122, %s124
    %p128 = scmp.eq.s32.totalorder %s20, 0
    %p129 = por %p127, %p128
    %p130 = scmp.ne.s32.totalorder %s122, %s124
    %p131 = scmp.eq.s32.totalorder %s25, 1
    %p132 = por %p130, %p131
    %p133 = scmp.ne.s32.totalorder %s124, %s125
    %p134 = scmp.eq.s32.totalorder %s25, 0
    %p135 = por %p133, %p134
    %p136 = scmp.ne.s32.totalorder %s124, %s125
    %p137 = scmp.eq.s32.totalorder %s26, 1
    %p138 = por %p136, %p137
    %p140 = scmp.ne.s32.totalorder %s125, %s139
    %p141 = scmp.eq.s32.totalorder %s26, 0
    %p142 = por %p140, %p141
    %s144 = sadd.s32 %s143, 1
    %p147 = scmp.eq.s32.totalorder %s20, 1
    %p148 = scmp.ne.s32.totalorder %s143, %s145
    %p149 = scmp.eq.s32.totalorder %s20, 0
    %p150 = por %p148, %p149
    %p151 = scmp.ne.s32.totalorder %s143, %s145
    %p152 = scmp.eq.s32.totalorder %s25, 1
    %p153 = por %p151, %p152
    %p154 = scmp.ne.s32.totalorder %s145, %s146
    %p155 = scmp.eq.s32.totalorder %s25, 0
    %p156 = por %p154, %p155
    %p157 = scmp.ne.s32.totalorder %s145, %s146
    %p158 = scmp.eq.s32.totalorder %s26, 1
    %p159 = por %p157, %p158
    %p161 = scmp.ne.s32.totalorder %s146, %s160
    %p162 = scmp.eq.s32.totalorder %s26, 0
    %p163 = por %p161, %p162
    %s165 = sadd.s32 %s164, 1
    %p168 = scmp.eq.s32.totalorder %s20, 1
    %p169 = scmp.ne.s32.totalorder %s164, %s166
    %p170 = scmp.eq.s32.totalorder %s20, 0
    %p171 = por %p169, %p170
    %p172 = scmp.ne.s32.totalorder %s164, %s166
    %p173 = scmp.eq.s32.totalorder %s25, 1
    %p174 = por %p172, %p173
    %p175 = scmp.ne.s32.totalorder %s166, %s167
    %p176 = scmp.eq.s32.totalorder %s25, 0
    %p177 = por %p175, %p176
    %p178 = scmp.ne.s32.totalorder %s166, %s167
    %p179 = scmp.eq.s32.totalorder %s26, 1
    %p180 = por %p178, %p179
    %p182 = scmp.ne.s32.totalorder %s167, %s181
    %p183 = scmp.eq.s32.totalorder %s26, 0
    %p184 = por %p182, %p183
    %s186 = sadd.s32 %s185, 1
    %p189 = scmp.eq.s32.totalorder %s20, 1
    %p190 = scmp.ne.s32.totalorder %s185, %s187
    %p191 = scmp.eq.s32.totalorder %s20, 0
    %p192 = por %p190, %p191
    %p193 = scmp.ne.s32.totalorder %s185, %s187
    %p194 = scmp.eq.s32.totalorder %s25, 1
    %p195 = por %p193, %p194
    %p196 = scmp.ne.s32.totalorder %s187, %s188
    %p197 = scmp.eq.s32.totalorder %s25, 0
    %p198 = por %p196, %p197
    %p199 = scmp.ne.s32.totalorder %s187, %s188
    %p200 = scmp.eq.s32.totalorder %s26, 1
    %p201 = por %p199, %p200
    %p203 = scmp.ne.s32.totalorder %s188, %s202
    %p204 = scmp.eq.s32.totalorder %s26, 0
    %p205 = por %p203, %p204
    %s207 = sadd.s32 %s206, 1
    %p210 = scmp.eq.s32.totalorder %s20, 1
    %p211 = scmp.ne.s32.totalorder %s206, %s208
    %p212 = scmp.eq.s32.totalorder %s20, 0
    %p213 = por %p211, %p212
    %p214 = scmp.ne.s32.totalorder %s206, %s208
    %p215 = scmp.eq.s32.totalorder %s25, 1
    %p216 = por %p214, %p215
    %p217 = scmp.ne.s32.totalorder %s208, %s209
    %p218 = scmp.eq.s32.totalorder %s25, 0
    %p219 = por %p217, %p218
    %p220 = scmp.ne.s32.totalorder %s208, %s209
    %p221 = scmp.eq.s32.totalorder %s26, 1
    %p222 = por %p220, %p221
    %p224 = scmp.ne.s32.totalorder %s209, %s223
    %p225 = scmp.eq.s32.totalorder %s26, 0
    %p226 = por %p224, %p225
    %s228 = sadd.s32 %s227, 1
    %p231 = scmp.eq.s32.totalorder %s20, 1
    %p232 = scmp.ne.s32.totalorder %s227, %s229
    %p233 = scmp.eq.s32.totalorder %s20, 0
    %p234 = por %p232, %p233
    %p235 = scmp.ne.s32.totalorder %s227, %s229
    %p236 = scmp.eq.s32.totalorder %s25, 1
    %p237 = por %p235, %p236
    %p238 = scmp.ne.s32.totalorder %s229, %s230
    %p239 = scmp.eq.s32.totalorder %s25, 0
    %p240 = por %p238, %p239
    %p241 = scmp.ne.s32.totalorder %s229, %s230
    %p242 = scmp.eq.s32.totalorder %s26, 1
    %p243 = por %p241, %p242
    %p245 = scmp.ne.s32.totalorder %s230, %s244
    %p246 = scmp.eq.s32.totalorder %s26, 0
    %p247 = por %p245, %p246
    %s249 = sadd.s32 %s248, 1
    %p252 = scmp.eq.s32.totalorder %s20, 1
    %p253 = scmp.ne.s32.totalorder %s248, %s250
    %p254 = scmp.eq.s32.totalorder %s20, 0
    %p255 = por %p253, %p254
    %p256 = scmp.ne.s32.totalorder %s248, %s250
    %p257 = scmp.eq.s32.totalorder %s25, 1
    %p258 = por %p256, %p257
    %p259 = scmp.ne.s32.totalorder %s250, %s251
    %p260 = scmp.eq.s32.totalorder %s25, 0
    %p261 = por %p259, %p260
    %p262 = scmp.ne.s32.totalorder %s250, %s251
    %p263 = scmp.eq.s32.totalorder %s26, 1
    %p264 = por %p262, %p263
    %p266 = scmp.ne.s32.totalorder %s251, %s265
    %p267 = scmp.eq.s32.totalorder %s26, 0
    %p268 = por %p266, %p267
    %s270 = sadd.s32 %s269, 1
    %p273 = scmp.eq.s32.totalorder %s20, 1
    %p274 = scmp.ne.s32.totalorder %s269, %s271
    %p275 = scmp.eq.s32.totalorder %s20, 0
    %p276 = por %p274, %p275
    %p277 = scmp.ne.s32.totalorder %s269, %s271
    %p278 = scmp.eq.s32.totalorder %s25, 1
    %p279 = por %p277, %p278
    %p280 = scmp.ne.s32.totalorder %s271, %s272
    %p281 = scmp.eq.s32.totalorder %s25, 0
    %p282 = por %p280, %p281
    %p283 = scmp.ne.s32.totalorder %s271, %s272
    %p284 = scmp.eq.s32.totalorder %s26, 1
    %p285 = por %p283, %p284
    %p287 = scmp.ne.s32.totalorder %s272, %s286
    %p288 = scmp.eq.s32.totalorder %s26, 0
    %p289 = por %p287, %p288
    %s291 = sadd.s32 %s290, 1
    %p294 = scmp.eq.s32.totalorder %s20, 1
    %p295 = scmp.ne.s32.totalorder %s290, %s292
    %p296 = scmp.eq.s32.totalorder %s20, 0
    %p297 = por %p295, %p296
    %p298 = scmp.ne.s32.totalorder %s290, %s292
    %p299 = scmp.eq.s32.totalorder %s25, 1
    %p300 = por %p298, %p299
    %p301 = scmp.ne.s32.totalorder %s292, %s293
    %p302 = scmp.eq.s32.totalorder %s25, 0
    %p303 = por %p301, %p302
    %p304 = scmp.ne.s32.totalorder %s292, %s293
    %p305 = scmp.eq.s32.totalorder %s26, 1
    %p306 = por %p304, %p305
    %p308 = scmp.ne.s32.totalorder %s293, %s307
    %p309 = scmp.eq.s32.totalorder %s26, 0
    %p310 = por %p308, %p309
    %s312 = sadd.s32 %s311, 1
    %p315 = scmp.eq.s32.totalorder %s20, 1
    %p316 = scmp.ne.s32.totalorder %s311, %s313
    %p317 = scmp.eq.s32.totalorder %s20, 0
    %p318 = por %p316, %p317
    %p319 = scmp.ne.s32.totalorder %s311, %s313
    %p320 = scmp.eq.s32.totalorder %s25, 1
    %p321 = por %p319, %p320
    %p322 = scmp.ne.s32.totalorder %s313, %s314
    %p323 = scmp.eq.s32.totalorder %s25, 0
    %p324 = por %p322, %p323
    %p325 = scmp.ne.s32.totalorder %s313, %s314
    %p326 = scmp.eq.s32.totalorder %s26, 1
    %p327 = por %p325, %p326
    %p329 = scmp.ne.s32.totalorder %s314, %s328
    %p330 = scmp.eq.s32.totalorder %s26, 0
    %p331 = por %p329, %p330
    %s332 = ssub.s32 %s20, %s27
    %p333 = scmp.eq.s32.totalorder %s332, 0
    %s335 = sadd.s32 %s334, 1
    %s336 = scalar_select %p333, %s334, %s335
    %p339 = pneg %p333
    %p340 = scmp.eq.s32.totalorder %s20, 1
    %p341 = por %p339, %p340
    %p342 = scmp.ne.s32.totalorder %s334, %s337
    %p343 = scmp.eq.s32.totalorder %s20, 0
    %p344 = por %p342, %p343
    %p345 = scmp.ne.s32.totalorder %s334, %s337
    %p346 = scmp.eq.s32.totalorder %s25, 1
    %p347 = por %p345, %p346
    %p348 = scmp.ne.s32.totalorder %s337, %s338
    %p349 = scmp.eq.s32.totalorder %s25, 0
    %p350 = por %p348, %p349
    %p351 = scmp.ne.s32.totalorder %s337, %s338
    %p352 = scmp.eq.s32.totalorder %s26, 1
    %p353 = por %p351, %p352
    %p355 = scmp.ne.s32.totalorder %s338, %s354
    %p356 = scmp.eq.s32.totalorder %s26, 0
    %p357 = por %p355, %p356
    %p358 = scmp.le.s32.totalorder 1, %s20
    %p359 = scmp.lt.s32.totalorder %s20, 3
    %p360 = pnand %p358, %p359
    %p361 = pneg %p360
    // Predicated region
    $region9: #{duygu_analizi_forward.6} parent=5 // pred_check
      _
    $region10: #{duygu_analizi_forward.6} parent=5 // pred_check_branch
      %363 = sbr.rel (%p360) target = $region12
    $region11: #{duygu_analizi_forward.6} parent=5 // pred_region
      %s364 = ssub.s32 %s20, 1
      // Predicated region
      $region13: #{duygu_analizi_forward.6} parent=11 // pred_check
        %p365 = pneg %p93
      $region14: #{duygu_analizi_forward.6} parent=11 // pred_check_branch
        %367 = sbr.rel (%p365) target = $region16
      $region15: #{duygu_analizi_forward.6} parent=11 // pred_region
        _
      $region16: #{duygu_analizi_forward.6} parent=11 // pred_fallthru
        _
      // Predicated region
      $region17: #{duygu_analizi_forward.6} parent=11 // pred_check
        %p368 = pneg %p114
      $region18: #{duygu_analizi_forward.6} parent=11 // pred_check_branch
        %370 = sbr.rel (%p368) target = $region20
      $region19: #{duygu_analizi_forward.6} parent=11 // pred_region
        _
      $region20: #{duygu_analizi_forward.6} parent=11 // pred_fallthru
        _
      // Predicated region
      $region21: #{duygu_analizi_forward.6} parent=11 // pred_check
        %p371 = pneg %p135
      $region22: #{duygu_analizi_forward.6} parent=11 // pred_check_branch
        %373 = sbr.rel (%p371) target = $region24
      $region23: #{duygu_analizi_forward.6} parent=11 // pred_region
        _
      $region24: #{duygu_analizi_forward.6} parent=11 // pred_fallthru
        _
      // Predicated region
      $region25: #{duygu_analizi_forward.6} parent=11 // pred_check
        %p374 = pneg %p156
      $region26: #{duygu_analizi_forward.6} parent=11 // pred_check_branch
        %376 = sbr.rel (%p374) target = $region28
      $region27: #{duygu_analizi_forward.6} parent=11 // pred_region
        _
      $region28: #{duygu_analizi_forward.6} parent=11 // pred_fallthru
        _
      // Predicated region
      $region29: #{duygu_analizi_forward.6} parent=11 // pred_check
        %p377 = pneg %p177
      $region30: #{duygu_analizi_forward.6} parent=11 // pred_check_branch
        %379 = sbr.rel (%p377) target = $region32
      $region31: #{duygu_analizi_forward.6} parent=11 // pred_region
        _
      $region32: #{duygu_analizi_forward.6} parent=11 // pred_fallthru
        _
      // Predicated region
      $region33: #{duygu_analizi_forward.6} parent=11 // pred_check
        %p380 = pneg %p198
      $region34: #{duygu_analizi_forward.6} parent=11 // pred_check_branch
        %382 = sbr.rel (%p380) target = $region36
      $region35: #{duygu_analizi_forward.6} parent=11 // pred_region
        _
      $region36: #{duygu_analizi_forward.6} parent=11 // pred_fallthru
        _
      // Predicated region
      $region37: #{duygu_analizi_forward.6} parent=11 // pred_check
        %p383 = pneg %p219
      $region38: #{duygu_analizi_forward.6} parent=11 // pred_check_branch
        %385 = sbr.rel (%p383) target = $region40
      $region39: #{duygu_analizi_forward.6} parent=11 // pred_region
        _
      $region40: #{duygu_analizi_forward.6} parent=11 // pred_fallthru
        _
      // Predicated region
      $region41: #{duygu_analizi_forward.6} parent=11 // pred_check
        %p386 = pneg %p240
      $region42: #{duygu_analizi_forward.6} parent=11 // pred_check_branch
        %388 = sbr.rel (%p386) target = $region44
      $region43: #{duygu_analizi_forward.6} parent=11 // pred_region
        _
      $region44: #{duygu_analizi_forward.6} parent=11 // pred_fallthru
        _
      // Predicated region
      $region45: #{duygu_analizi_forward.6} parent=11 // pred_check
        %p389 = pneg %p261
      $region46: #{duygu_analizi_forward.6} parent=11 // pred_check_branch
        %391 = sbr.rel (%p389) target = $region48
      $region47: #{duygu_analizi_forward.6} parent=11 // pred_region
        _
      $region48: #{duygu_analizi_forward.6} parent=11 // pred_fallthru
        _
      // Predicated region
      $region49: #{duygu_analizi_forward.6} parent=11 // pred_check
        %p392 = pneg %p282
      $region50: #{duygu_analizi_forward.6} parent=11 // pred_check_branch
        %394 = sbr.rel (%p392) target = $region52
      $region51: #{duygu_analizi_forward.6} parent=11 // pred_region
        _
      $region52: #{duygu_analizi_forward.6} parent=11 // pred_fallthru
        _
      // Predicated region
      $region53: #{duygu_analizi_forward.6} parent=11 // pred_check
        %p395 = pneg %p303
      $region54: #{duygu_analizi_forward.6} parent=11 // pred_check_branch
        %397 = sbr.rel (%p395) target = $region56
      $region55: #{duygu_analizi_forward.6} parent=11 // pred_region
        _
      $region56: #{duygu_analizi_forward.6} parent=11 // pred_fallthru
        _
      // Predicated region
      $region57: #{duygu_analizi_forward.6} parent=11 // pred_check
        %p398 = pneg %p324
      $region58: #{duygu_analizi_forward.6} parent=11 // pred_check_branch
        %400 = sbr.rel (%p398) target = $region60
      $region59: #{duygu_analizi_forward.6} parent=11 // pred_region
        _
      $region60: #{duygu_analizi_forward.6} parent=11 // pred_fallthru
        _
    $region12: #{duygu_analizi_forward.6} parent=5 // pred_fallthru
      _
    %p401 = scmp.lt.s32.totalorder %s20, 2
    // Predicated region
    $region61: #{duygu_analizi_forward.6} parent=5 // pred_check
      %p402 = pneg %p401
    $region62: #{duygu_analizi_forward.6} parent=5 // pred_check_branch
      %404 = sbr.rel (%p402) target = $region64
    $region63: #{duygu_analizi_forward.6} parent=5 // pred_region
      // Predicated region
      $region65: #{duygu_analizi_forward.6} parent=63 // pred_check
        %p405 = pneg %p40
      $region66: #{duygu_analizi_forward.6} parent=63 // pred_check_branch
        %407 = sbr.rel (%p405) target = $region68
      $region67: #{duygu_analizi_forward.6} parent=63 // pred_region
        %p408 = scmp.lt.s32.totalorder %s20, 1
        %s409 = scalar_select %p408, %s20, 1
        %s410 = smul.addr %s409, 8
        %s411 = scalar_lea.vmem %s0, %s410
      $region68: #{duygu_analizi_forward.6} parent=63 // pred_fallthru
        _
      // Predicated region
      $region69: #{duygu_analizi_forward.6} parent=63 // pred_check
        %p412 = pneg %p66
      $region70: #{duygu_analizi_forward.6} parent=63 // pred_check_branch
        %414 = sbr.rel (%p412) target = $region72
      $region71: #{duygu_analizi_forward.6} parent=63 // pred_region
        %p415 = scmp.lt.s32.totalorder %s20, 1
        %s416 = scalar_select %p415, %s20, 1
        %s417 = scalar_lea.vmem %s1, %s416
      $region72: #{duygu_analizi_forward.6} parent=63 // pred_fallthru
        _
    $region64: #{duygu_analizi_forward.6} parent=5 // pred_fallthru
      _
    %p418 = scmp.le.s32.totalorder 1, %s20
    %p419 = scmp.lt.s32.totalorder %s20, 3
    %p420 = pnand %p418, %p419
    %p421 = pneg %p420
    // Predicated region
    $region73: #{duygu_analizi_forward.6} parent=5 // pred_check
      _
    $region74: #{duygu_analizi_forward.6} parent=5 // pred_check_branch
      %423 = sbr.rel (%p420) target = $region76
    $region75: #{duygu_analizi_forward.6} parent=5 // pred_region
      %s424 = ssub.s32 %s20, 1
      %p425 = scmp.lt.s32.totalorder %s25, 1
      %s426 = scalar_select %p425, %s25, 1
      %s427 = smul.addr %s426, 8
      %s428 = scalar_lea.vmem %s0, %s427
      %p429 = pneg %p46
      %p430 = pneg %p43
      %p431 = scmp.lt.s32.totalorder %s25, 1
      %s432 = scalar_select %p431, %s25, 1
      %s433 = scalar_lea.vmem %s1, %s432
      %p434 = pneg %p72
      %p435 = pneg %p69
      %p436 = pneg %p93
      %p437 = pneg %p90
      %p438 = pneg %p114
      %p439 = pneg %p111
      %p440 = pneg %p135
      %p441 = pneg %p132
      %p442 = pneg %p156
      %p443 = pneg %p153
      %p444 = pneg %p177
      %p445 = pneg %p174
      %p446 = pneg %p198
      %p447 = pneg %p195
      %p448 = pneg %p219
      %p449 = pneg %p216
      %p450 = pneg %p240
      %p451 = pneg %p237
      %p452 = pneg %p261
      %p453 = pneg %p258
      %p454 = pneg %p282
      %p455 = pneg %p279
      %p456 = pneg %p303
      %p457 = pneg %p300
      %p458 = pneg %p324
      %p459 = pneg %p321
      %p460 = pneg %p350
      %p461 = pneg %p347
      %p462 = scmp.lt.s32.totalorder %s25, 1
      %s463 = scalar_select %p462, %s25, 1
      %s464 = smul.addr %s463, 8
      %s465 = scalar_lea.vmem %s14, %s464
      %p466 = scmp.lt.s32.totalorder %s25, 1
      %s467 = scalar_select %p466, %s25, 1
      %s468 = smul.addr %s467, 8
      %s469 = scalar_lea.vmem %s0, %s468
      %p470 = scmp.lt.s32.totalorder %s25, 1
      %s471 = scalar_select %p470, %s25, 1
      %s472 = scalar_lea.vmem %s1, %s471
      %p473 = scmp.lt.s32.totalorder %s25, 1
      %s474 = scalar_select %p473, %s25, 1
      %s475 = smul.addr %s474, 8
      %s476 = scalar_lea.vmem %s14, %s475
      %v477 = vld [vmem:[%s469] sm:$0xff]
      %v478 = vld [vmem:[%s2] sm:$0xff]
      %v479 = vld [vmem:[%s2 + $0x8] sm:$0xff]
      %v480 = vld [vmem:[%s2 + $0x10] sm:$0xff]
      %v481 = vld [vmem:[%s2 + $0x18] sm:$0xff]
      %v482 = vld [vmem:[%s2 + $0x20] sm:$0xff]
      %v483 = vld [vmem:[%s2 + $0x28] sm:$0xff]
      %v484 = vld [vmem:[%s2 + $0x30] sm:$0xff]
      %v485 = vld [vmem:[%s2 + $0x38] sm:$0xff]
      %v486 = vld [vmem:[%s2 + $0x40] sm:$0xff]
      %v487 = vld [vmem:[%s2 + $0x48] sm:$0xff]
      %v488 = vld [vmem:[%s2 + $0x50] sm:$0xff]
      %v489 = vld [vmem:[%s2 + $0x58] sm:$0xff]
      %v490 = vld [vmem:[%s2 + $0x60] sm:$0xff]
      %v491 = vld [vmem:[%s2 + $0x68] sm:$0xff]
      %v492 = vld [vmem:[%s2 + $0x70] sm:$0xff]
      %v493 = vld [vmem:[%s2 + $0x78] sm:$0xff]
      %v494 = vld [vmem:[%s2 + $0x80] sm:$0xff]
      %v495 = vld [vmem:[%s2 + $0x88] sm:$0xff]
      %v496 = vld [vmem:[%s2 + $0x90] sm:$0xff]
      %v497 = vld [vmem:[%s2 + $0x98] sm:$0xff]
      %v498 = vld [vmem:[%s2 + $0xa0] sm:$0xff]
      %v499 = vld [vmem:[%s2 + $0xa8] sm:$0xff]
      %v500 = vld [vmem:[%s2 + $0xb0] sm:$0xff]
      %v501 = vld [vmem:[%s2 + $0xb8] sm:$0xff]
      %v502 = vld [vmem:[%s2 + $0xc0] sm:$0xff]
      %v503 = vld [vmem:[%s2 + $0xc8] sm:$0xff]
      %v504 = vld [vmem:[%s2 + $0xd0] sm:$0xff]
      %v505 = vld [vmem:[%s2 + $0xd8] sm:$0xff]
      %v506 = vld [vmem:[%s2 + $0xe0] sm:$0xff]
      %v507 = vld [vmem:[%s2 + $0xe8] sm:$0xff]
      %v508 = vld [vmem:[%s2 + $0xf0] sm:$0xff]
      %v509 = vld [vmem:[%s2 + $0xf8] sm:$0xff]
      %v510 = vld [vmem:[%s2 + $0x100] sm:$0xff]
      %v511 = vld [vmem:[%s2 + $0x108] sm:$0xff]
      %v512 = vld [vmem:[%s2 + $0x110] sm:$0xff]
      %v513 = vld [vmem:[%s2 + $0x118] sm:$0xff]
      %v514 = vld [vmem:[%s2 + $0x120] sm:$0xff]
      %v515 = vld [vmem:[%s2 + $0x128] sm:$0xff]
      %v516 = vld [vmem:[%s2 + $0x130] sm:$0xff]
      %v517 = vld [vmem:[%s2 + $0x138] sm:$0xff]
      %v518 = vld [vmem:[%s2 + $0x140] sm:$0xff]
      %v519 = vld [vmem:[%s2 + $0x148] sm:$0xff]
      %v520 = vld [vmem:[%s2 + $0x150] sm:$0xff]
      %v521 = vld [vmem:[%s2 + $0x158] sm:$0xff]
      %v522 = vld [vmem:[%s2 + $0x160] sm:$0xff]
      %v523 = vld [vmem:[%s2 + $0x168] sm:$0xff]
      %v524 = vld [vmem:[%s2 + $0x170] sm:$0xff]
      %v525 = vld [vmem:[%s2 + $0x178] sm:$0xff]
      %v526 = vld [vmem:[%s3] sm:$0x7]
      %v528 = vlaneseq
      %v529 = vshrl.u32 %v528, 7
      %v530 = vsub.s32 0, %v529
      %v531 = vrot.slane %v526, %v530
      %v532 = vlaneseq
      %v533 = vshrl.u32 %v532, 7
      %v534 = vsub.s32 1, %v533
      %v535 = vrot.slane %v526, %v534
      %v536 = vlaneseq
      %v537 = vshrl.u32 %v536, 7
      %v538 = vsub.s32 2, %v537
      %v539 = vrot.slane %v526, %v538
      %543 = vmatprep.subr.mxu0 %v524
      %544 = vmatpush1.msra.mxu0 %v523
      %545 = vmatprep.subr.mxu0 %v521
      %546 = vmatpush1.msra.mxu0 %v520
      %547 = vmatprep.subr.mxu0 %v518
      %548 = vmatpush1.msra.mxu0 %v517
      %549 = vmatprep.subr.mxu0 %v515
      %550 = vmatpush1.msra.mxu0 %v514
      %551 = vmatprep.subr.mxu0 %v512
      %552 = vmatpush1.msra.mxu0 %v511
      %553 = vmatprep.subr.mxu0 %v509
      %554 = vmatpush1.msra.mxu0 %v508
      %555 = vmatprep.subr.mxu0 %v506
      %556 = vmatpush1.msra.mxu0 %v505
      %557 = vmatprep.subr.mxu0 %v503
      %558 = vmatpush1.msra.mxu0 %v502
      %559 = vmatprep.subr.mxu0 %v500
      %560 = vmatpush1.msra.mxu0 %v499
      %561 = vmatprep.subr.mxu0 %v497
      %562 = vmatpush1.msra.mxu0 %v496
      %563 = vmatprep.subr.mxu0 %v494
      %564 = vmatpush1.msra.mxu0 %v493
      %565 = vmatprep.subr.mxu0 %v491
      %566 = vmatpush1.msra.mxu0 %v490
      %567 = vmatprep.subr.mxu0 %v488
      %568 = vmatpush1.msra.mxu0 %v487
      %569 = vmatprep.subr.mxu0 %v485
      %570 = vmatpush1.msra.mxu0 %v484
      %571 = vmatprep.subr.mxu0 %v482
      %572 = vmatpush1.msra.mxu0 %v481
      %573 = vmatprep.subr.mxu0 %v479
      %574 = vmatpush1.msra.mxu0 %v478
      %575 = vmatprep.subr.mxu0 0.0
      %576 = vmatpush2.msra.mxu0 0.0
      %577 = vmatprep.subr.mxu0 0.0
      %578 = vmatpush2.msra.mxu0 0.0
      %579 = vmatprep.subr.mxu0 0.0
      %580 = vmatpush2.msra.mxu0 0.0
      %581 = vmatprep.subr.mxu0 0.0
      %582 = vmatpush2.msra.mxu0 0.0
      %583 = vmatprep.subr.mxu0 0.0
      %584 = vmatpush2.msra.mxu0 0.0
      %585 = vmatprep.subr.mxu0 0.0
      %586 = vmatpush2.msra.mxu0 0.0
      %587 = vmatprep.subr.mxu0 0.0
      %588 = vmatpush2.msra.mxu0 0.0
      %589 = vmatprep.subr.mxu0 0.0
      %590 = vmatpush2.msra.mxu0 0.0
      %591 = vmatprep.subr.mxu0 0.0
      %592 = vmatpush2.msra.mxu0 0.0
      %593 = vmatprep.subr.mxu0 0.0
      %594 = vmatpush2.msra.mxu0 0.0
      %595 = vmatprep.subr.mxu0 0.0
      %596 = vmatpush2.msra.mxu0 0.0
      %597 = vmatprep.subr.mxu0 0.0
      %598 = vmatpush2.msra.mxu0 0.0
      %599 = vmatprep.subr.mxu0 0.0
      %600 = vmatpush2.msra.mxu0 0.0
      %601 = vmatprep.subr.mxu0 0.0
      %602 = vmatpush2.msra.mxu0 0.0
      %603 = vmatprep.subr.mxu0 0.0
      %604 = vmatpush2.msra.mxu0 0.0
      %605 = vmatprep.subr.mxu0 0.0
      %606 = vmatpush2.msra.mxu0 0.0
      %607 = vmatprep.mubr.f32.mxu0 0.0
      %608 = vmatmul.mubr.f32.gmra.mxu0 %v477
      %v609 = vpop.f32.mrf.mxu0
      %v610 = vadd.f32 %v531, %v609
      %v611 = vpop.f32.mrf.mxu0
      %v612 = vadd.f32 %v535, %v611
      %613 = vdwg.mxu0
      %614 = vmatprep.subr.mxu0 0.0
      %615 = vmatpush1.msra.mxu0 %v525
      %616 = vmatprep.subr.mxu0 0.0
      %617 = vmatpush1.msra.mxu0 %v522
      %618 = vmatprep.subr.mxu0 0.0
      %619 = vmatpush1.msra.mxu0 %v519
      %620 = vmatprep.subr.mxu0 0.0
      %621 = vmatpush1.msra.mxu0 %v516
      %622 = vmatprep.subr.mxu0 0.0
      %623 = vmatpush1.msra.mxu0 %v513
      %624 = vmatprep.subr.mxu0 0.0
      %625 = vmatpush1.msra.mxu0 %v510
      %626 = vmatprep.subr.mxu0 0.0
      %627 = vmatpush1.msra.mxu0 %v507
      %628 = vmatprep.subr.mxu0 0.0
      %629 = vmatpush1.msra.mxu0 %v504
      %630 = vmatprep.subr.mxu0 0.0
      %631 = vmatpush1.msra.mxu0 %v501
      %632 = vmatprep.subr.mxu0 0.0
      %633 = vmatpush1.msra.mxu0 %v498
      %634 = vmatprep.subr.mxu0 0.0
      %635 = vmatpush1.msra.mxu0 %v495
      %636 = vmatprep.subr.mxu0 0.0
      %637 = vmatpush1.msra.mxu0 %v492
      %638 = vmatprep.subr.mxu0 0.0
      %639 = vmatpush1.msra.mxu0 %v489
      %640 = vmatprep.subr.mxu0 0.0
      %641 = vmatpush1.msra.mxu0 %v486
      %642 = vmatprep.subr.mxu0 0.0
      %643 = vmatpush1.msra.mxu0 %v483
      %644 = vmatprep.subr.mxu0 0.0
      %645 = vmatpush1.msra.mxu0 %v480
      %646 = vmatprep.subr.mxu0 0.0
      %647 = vmatpush2.msra.mxu0 0.0
      %648 = vmatprep.subr.mxu0 0.0
      %649 = vmatpush2.msra.mxu0 0.0
      %650 = vmatprep.subr.mxu0 0.0
      %651 = vmatpush2.msra.mxu0 0.0
      %652 = vmatprep.subr.mxu0 0.0
      %653 = vmatpush2.msra.mxu0 0.0
      %654 = vmatprep.subr.mxu0 0.0
      %655 = vmatpush2.msra.mxu0 0.0
      %656 = vmatprep.subr.mxu0 0.0
      %657 = vmatpush2.msra.mxu0 0.0
      %658 = vmatprep.subr.mxu0 0.0
      %659 = vmatpush2.msra.mxu0 0.0
      %660 = vmatprep.subr.mxu0 0.0
      %661 = vmatpush2.msra.mxu0 0.0
      %662 = vmatprep.subr.mxu0 0.0
      %663 = vmatpush2.msra.mxu0 0.0
      %664 = vmatprep.subr.mxu0 0.0
      %665 = vmatpush2.msra.mxu0 0.0
      %666 = vmatprep.subr.mxu0 0.0
      %667 = vmatpush2.msra.mxu0 0.0
      %668 = vmatprep.subr.mxu0 0.0
      %669 = vmatpush2.msra.mxu0 0.0
      %670 = vmatprep.subr.mxu0 0.0
      %671 = vmatpush2.msra.mxu0 0.0
      %672 = vmatprep.subr.mxu0 0.0
      %673 = vmatpush2.msra.mxu0 0.0
      %674 = vmatprep.subr.mxu0 0.0
      %675 = vmatpush2.msra.mxu0 0.0
      %676 = vmatprep.subr.mxu0 0.0
      %677 = vmatpush2.msra.mxu0 0.0
      %678 = vmatprep.mubr.f32.mxu0 0.0
      %679 = vmatmul.mubr.f32.gmra.mxu0 %v477
      %v680 = vpop.f32.mrf.mxu0
      %v681 = vadd.f32 %v539, %v680
      %v682 = vpop.f32.mrf.mxu0
      %683 = vdwg.mxu0
      %v684 = vld [vmem:[%s472] sm:$0x1]
      %vm685 = vcmask 261120
      %v687 = vsel %vm685, %v610, 0
      %v690 = vsel %vm685, %v612, 0
      %692 = vmatprep.subr.mxu0 0.0
      %693 = vmatpush1.xpose.msra.mxu0 0.0
      %694 = vmatprep.subr.mxu0 0.0
      %695 = vmatpush1.xpose.msra.mxu0 0.0
      %696 = vmatprep.subr.mxu0 0.0
      %697 = vmatpush1.xpose.msra.mxu0 0.0
      %698 = vmatprep.subr.mxu0 0.0
      %699 = vmatpush1.xpose.msra.mxu0 0.0
      %700 = vmatprep.subr.mxu0 0.0
      %701 = vmatpush1.xpose.msra.mxu0 0.0
      %702 = vmatprep.subr.mxu0 0.0
      %703 = vmatpush1.xpose.msra.mxu0 0.0
      %704 = vmatprep.subr.mxu0 0.0
      %705 = vmatpush1.xpose.msra.mxu0 0.0
      %706 = vmatprep.subr.mxu0 0.0
      %707 = vmatpush1.xpose.msra.mxu0 0.0
      %708 = vmatprep.subr.mxu0 0.0
      %709 = vmatpush1.xpose.msra.mxu0 0.0
      %710 = vmatprep.subr.mxu0 0.0
      %711 = vmatpush1.xpose.msra.mxu0 0.0
      %712 = vmatprep.subr.mxu0 0.0
      %713 = vmatpush1.xpose.msra.mxu0 0.0
      %714 = vmatprep.subr.mxu0 0.0
      %715 = vmatpush1.xpose.msra.mxu0 0.0
      %716 = vmatprep.subr.mxu0 0.0
      %717 = vmatpush1.xpose.msra.mxu0 0.0
      %718 = vmatprep.subr.mxu0 0.0
      %719 = vmatpush1.xpose.msra.mxu0 0.0
      %720 = vmatprep.subr.mxu0 0.0
      %721 = vmatpush1.xpose.msra.mxu0 0.0
      %722 = vmatprep.subr.mxu0 0.0
      %723 = vmatpush1.xpose.msra.mxu0 %v690
      %724 = vmatprep.subr.mxu0 0.0
      %725 = vmatpush2.xpose.msra.mxu0 0.0
      %726 = vmatprep.subr.mxu0 0.0
      %727 = vmatpush2.xpose.msra.mxu0 0.0
      %728 = vmatprep.subr.mxu0 0.0
      %729 = vmatpush2.xpose.msra.mxu0 0.0
      %730 = vmatprep.subr.mxu0 0.0
      %731 = vmatpush2.xpose.msra.mxu0 0.0
      %732 = vmatprep.subr.mxu0 0.0
      %733 = vmatpush2.xpose.msra.mxu0 0.0
      %734 = vmatprep.subr.mxu0 0.0
      %735 = vmatpush2.xpose.msra.mxu0 0.0
      %736 = vmatprep.subr.mxu0 0.0
      %737 = vmatpush2.xpose.msra.mxu0 0.0
      %738 = vmatprep.subr.mxu0 0.0
      %739 = vmatpush2.xpose.msra.mxu0 0.0
      %740 = vmatprep.subr.mxu0 0.0
      %741 = vmatpush2.xpose.msra.mxu0 0.0
      %742 = vmatprep.subr.mxu0 0.0
      %743 = vmatpush2.xpose.msra.mxu0 0.0
      %744 = vmatprep.subr.mxu0 0.0
      %745 = vmatpush2.xpose.msra.mxu0 0.0
      %746 = vmatprep.subr.mxu0 0.0
      %747 = vmatpush2.xpose.msra.mxu0 0.0
      %748 = vmatprep.subr.mxu0 0.0
      %749 = vmatpush2.xpose.msra.mxu0 0.0
      %750 = vmatprep.subr.mxu0 0.0
      %751 = vmatpush2.xpose.msra.mxu0 0.0
      %752 = vmatprep.subr.mxu0 0.0
      %753 = vmatpush2.xpose.msra.mxu0 0.0
      %754 = vmatprep.subr.mxu0 0.0
      %755 = vmatpush2.xpose.msra.mxu0 0.0
      %756 = vmatprep.mubr.f32.mxu0 0.0
      %757 = vmatmul.mubr.f32.gmra.mxu0 %v687
      %v758 = vpop.f32.mrf.mxu0
      %v759 = vadd.f32 0.0, %v758
      %v760 = vpop.f32.mrf.mxu0
      %761 = vdwg.mxu0
      %v762 = vmul.f32 %v759, 0.17677669
      %v764 = vlaneseq
      %v765 = vshrl.u32 %v764, 7
      %v766 = vsub.s32 0, %v765
      %v767 = vrot.slane %v684, %v766
      %v769 = vadd.f32 %v762, %v767
      %vm770 = vcmask 64512
      %v771 = vsel %vm770, %v769, -inf
      %772 = vmax.xlane.f32.xlu0 %v771
      %v773 = vpop.xlane.xlu0 %772
      %v774 = vsub.f32 %v769, %v773
      %v775 = vmul.f32 %v774, 1.442695
      %v776 = vpow.pop %v775
      %v777 = vsel %vm770, %v776, 0.0
      %778 = vadd.xlane.f32.xlu0 %v777
      %v779 = vpop.xlane.xlu0 %778
      %v780 = vrcp.pop %v779
      %v781 = vmul.f32 %v776, %v780
      %v783 = vsel %vm770, %v781, 0
      %785 = vmatprep.subr.mxu0 0.0
      %786 = vmatpush1.msra.mxu0 0.0
      %787 = vmatprep.subr.mxu0 0.0
      %788 = vmatpush1.msra.mxu0 0.0
      %789 = vmatprep.subr.mxu0 0.0
      %790 = vmatpush1.msra.mxu0 0.0
      %791 = vmatprep.subr.mxu0 0.0
      %792 = vmatpush1.msra.mxu0 0.0
      %793 = vmatprep.subr.mxu0 0.0
      %794 = vmatpush1.msra.mxu0 0.0
      %795 = vmatprep.subr.mxu0 0.0
      %796 = vmatpush1.msra.mxu0 0.0
      %797 = vmatprep.subr.mxu0 0.0
      %798 = vmatpush1.msra.mxu0 0.0
      %799 = vmatprep.subr.mxu0 0.0
      %800 = vmatpush1.msra.mxu0 0.0
      %801 = vmatprep.subr.mxu0 0.0
      %802 = vmatpush1.msra.mxu0 0.0
      %803 = vmatprep.subr.mxu0 0.0
      %804 = vmatpush1.msra.mxu0 0.0
      %805 = vmatprep.subr.mxu0 0.0
      %806 = vmatpush1.msra.mxu0 0.0
      %807 = vmatprep.subr.mxu0 0.0
      %808 = vmatpush1.msra.mxu0 0.0
      %809 = vmatprep.subr.mxu0 0.0
      %810 = vmatpush1.msra.mxu0 0.0
      %811 = vmatprep.subr.mxu0 0.0
      %812 = vmatpush1.msra.mxu0 0.0
      %813 = vmatprep.subr.mxu0 0.0
      %814 = vmatpush1.msra.mxu0 0.0
      %815 = vmatprep.subr.mxu0 0.0
      %816 = vmatpush1.msra.mxu0 %v681
      %817 = vmatprep.subr.mxu0 0.0
      %818 = vmatpush2.msra.mxu0 0.0
      %819 = vmatprep.subr.mxu0 0.0
      %820 = vmatpush2.msra.mxu0 0.0
      %821 = vmatprep.subr.mxu0 0.0
      %822 = vmatpush2.msra.mxu0 0.0
      %823 = vmatprep.subr.mxu0 0.0
      %824 = vmatpush2.msra.mxu0 0.0
      %825 = vmatprep.subr.mxu0 0.0
      %826 = vmatpush2.msra.mxu0 0.0
      %827 = vmatprep.subr.mxu0 0.0
      %828 = vmatpush2.msra.mxu0 0.0
      %829 = vmatprep.subr.mxu0 0.0
      %830 = vmatpush2.msra.mxu0 0.0
      %831 = vmatprep.subr.mxu0 0.0
      %832 = vmatpush2.msra.mxu0 0.0
      %833 = vmatprep.subr.mxu0 0.0
      %834 = vmatpush2.msra.mxu0 0.0
      %835 = vmatprep.subr.mxu0 0.0
      %836 = vmatpush2.msra.mxu0 0.0
      %837 = vmatprep.subr.mxu0 0.0
      %838 = vmatpush2.msra.mxu0 0.0
      %839 = vmatprep.subr.mxu0 0.0
      %840 = vmatpush2.msra.mxu0 0.0
      %841 = vmatprep.subr.mxu0 0.0
      %842 = vmatpush2.msra.mxu0 0.0
      %843 = vmatprep.subr.mxu0 0.0
      %844 = vmatpush2.msra.mxu0 0.0
      %845 = vmatprep.subr.mxu0 0.0
      %846 = vmatpush2.msra.mxu0 0.0
      %847 = vmatprep.subr.mxu0 0.0
      %848 = vmatpush2.msra.mxu0 0.0
      %849 = vmatprep.mubr.f32.mxu0 0.0
      %850 = vmatmul.mubr.f32.gmra.mxu0 %v783
      %v851 = vpop.f32.mrf.mxu0
      %v852 = vadd.f32 0.0, %v851
      %v853 = vpop.f32.mrf.mxu0
      %854 = vdwg.mxu0
      %855 = vst.msk [vmem:[#allocation2] sm:$0xff] %vm685, %v852
      %856 = vrot.lane.b32.xlu0 %v610, 96
      %v857 = vpop.permute.xlu0 %856
      %858 = vrot.lane.b32.xlu0 %v612, 96
      %v859 = vpop.permute.xlu0 %858
      %v860 = vsel %vm685, %v857, 0
      %v862 = vsel %vm685, %v859, 0
      %864 = vmatprep.subr.mxu0 0.0
      %865 = vmatpush1.xpose.msra.mxu0 0.0
      %866 = vmatprep.subr.mxu0 0.0
      %867 = vmatpush1.xpose.msra.mxu0 0.0
      %868 = vmatprep.subr.mxu0 0.0
      %869 = vmatpush1.xpose.msra.mxu0 0.0
      %870 = vmatprep.subr.mxu0 0.0
      %871 = vmatpush1.xpose.msra.mxu0 0.0
      %872 = vmatprep.subr.mxu0 0.0
      %873 = vmatpush1.xpose.msra.mxu0 0.0
      %874 = vmatprep.subr.mxu0 0.0
      %875 = vmatpush1.xpose.msra.mxu0 0.0
      %876 = vmatprep.subr.mxu0 0.0
      %877 = vmatpush1.xpose.msra.mxu0 0.0
      %878 = vmatprep.subr.mxu0 0.0
      %879 = vmatpush1.xpose.msra.mxu0 0.0
      %880 = vmatprep.subr.mxu0 0.0
      %881 = vmatpush1.xpose.msra.mxu0 0.0
      %882 = vmatprep.subr.mxu0 0.0
      %883 = vmatpush1.xpose.msra.mxu0 0.0
      %884 = vmatprep.subr.mxu0 0.0
      %885 = vmatpush1.xpose.msra.mxu0 0.0
      %886 = vmatprep.subr.mxu0 0.0
      %887 = vmatpush1.xpose.msra.mxu0 0.0
      %888 = vmatprep.subr.mxu0 0.0
      %889 = vmatpush1.xpose.msra.mxu0 0.0
      %890 = vmatprep.subr.mxu0 0.0
      %891 = vmatpush1.xpose.msra.mxu0 0.0
      %892 = vmatprep.subr.mxu0 0.0
      %893 = vmatpush1.xpose.msra.mxu0 0.0
      %894 = vmatprep.subr.mxu0 0.0
      %895 = vmatpush1.xpose.msra.mxu0 %v862
      %896 = vmatprep.subr.mxu0 0.0
      %897 = vmatpush2.xpose.msra.mxu0 0.0
      %898 = vmatprep.subr.mxu0 0.0
      %899 = vmatpush2.xpose.msra.mxu0 0.0
      %900 = vmatprep.subr.mxu0 0.0
      %901 = vmatpush2.xpose.msra.mxu0 0.0
      %902 = vmatprep.subr.mxu0 0.0
      %903 = vmatpush2.xpose.msra.mxu0 0.0
      %904 = vmatprep.subr.mxu0 0.0
      %905 = vmatpush2.xpose.msra.mxu0 0.0
      %906 = vmatprep.subr.mxu0 0.0
      %907 = vmatpush2.xpose.msra.mxu0 0.0
      %908 = vmatprep.subr.mxu0 0.0
      %909 = vmatpush2.xpose.msra.mxu0 0.0
      %910 = vmatprep.subr.mxu0 0.0
      %911 = vmatpush2.xpose.msra.mxu0 0.0
      %912 = vmatprep.subr.mxu0 0.0
      %913 = vmatpush2.xpose.msra.mxu0 0.0
      %914 = vmatprep.subr.mxu0 0.0
      %915 = vmatpush2.xpose.msra.mxu0 0.0
      %916 = vmatprep.subr.mxu0 0.0
      %917 = vmatpush2.xpose.msra.mxu0 0.0
      %918 = vmatprep.subr.mxu0 0.0
      %919 = vmatpush2.xpose.msra.mxu0 0.0
      %920 = vmatprep.subr.mxu0 0.0
      %921 = vmatpush2.xpose.msra.mxu0 0.0
      %922 = vmatprep.subr.mxu0 0.0
      %923 = vmatpush2.xpose.msra.mxu0 0.0
      %924 = vmatprep.subr.mxu0 0.0
      %925 = vmatpush2.xpose.msra.mxu0 0.0
      %926 = vmatprep.subr.mxu0 0.0
      %927 = vmatpush2.xpose.msra.mxu0 0.0
      %928 = vmatprep.mubr.f32.mxu0 0.0
      %929 = vmatmul.mubr.f32.gmra.mxu0 %v860
      %v930 = vpop.f32.mrf.mxu0
      %v931 = vadd.f32 0.0, %v930
      %v932 = vpop.f32.mrf.mxu0
      %933 = vdwg.mxu0
      %v934 = vmul.f32 %v931, 0.17677669
      %v935 = vadd.f32 %v934, %v767
      %v936 = vsel %vm770, %v935, -inf
      %937 = vmax.xlane.f32.xlu0 %v936
      %v938 = vpop.xlane.xlu0 %937
      %v939 = vsub.f32 %v935, %v938
      %v940 = vmul.f32 %v939, 1.442695
      %v941 = vpow.pop %v940
      %v942 = vsel %vm770, %v941, 0.0
      %943 = vadd.xlane.f32.xlu0 %v942
      %v944 = vpop.xlane.xlu0 %943
      %v945 = vrcp.pop %v944
      %v946 = vmul.f32 %v941, %v945
      %948 = vrot.lane.b32.xlu0 %v681, 96
      %v949 = vpop.permute.xlu0 %948
      %v952 = vsel %vm770, %v946, 0
      %954 = vmatprep.subr.mxu0 0.0
      %955 = vmatpush1.msra.mxu0 0.0
      %956 = vmatprep.subr.mxu0 0.0
      %957 = vmatpush1.msra.mxu0 0.0
      %958 = vmatprep.subr.mxu0 0.0
      %959 = vmatpush1.msra.mxu0 0.0
      %960 = vmatprep.subr.mxu0 0.0
      %961 = vmatpush1.msra.mxu0 0.0
      %962 = vmatprep.subr.mxu0 0.0
      %963 = vmatpush1.msra.mxu0 0.0
      %964 = vmatprep.subr.mxu0 0.0
      %965 = vmatpush1.msra.mxu0 0.0
      %966 = vmatprep.subr.mxu0 0.0
      %967 = vmatpush1.msra.mxu0 0.0
      %968 = vmatprep.subr.mxu0 0.0
      %969 = vmatpush1.msra.mxu0 0.0
      %970 = vmatprep.subr.mxu0 0.0
      %971 = vmatpush1.msra.mxu0 0.0
      %972 = vmatprep.subr.mxu0 0.0
      %973 = vmatpush1.msra.mxu0 0.0
      %974 = vmatprep.subr.mxu0 0.0
      %975 = vmatpush1.msra.mxu0 0.0
      %976 = vmatprep.subr.mxu0 0.0
      %977 = vmatpush1.msra.mxu0 0.0
      %978 = vmatprep.subr.mxu0 0.0
      %979 = vmatpush1.msra.mxu0 0.0
      %980 = vmatprep.subr.mxu0 0.0
      %981 = vmatpush1.msra.mxu0 0.0
      %982 = vmatprep.subr.mxu0 0.0
      %983 = vmatpush1.msra.mxu0 0.0
      %984 = vmatprep.subr.mxu0 0.0
      %985 = vmatpush1.msra.mxu0 %v949
      %986 = vmatprep.subr.mxu0 0.0
      %987 = vmatpush2.msra.mxu0 0.0
      %988 = vmatprep.subr.mxu0 0.0
      %989 = vmatpush2.msra.mxu0 0.0
      %990 = vmatprep.subr.mxu0 0.0
      %991 = vmatpush2.msra.mxu0 0.0
      %992 = vmatprep.subr.mxu0 0.0
      %993 = vmatpush2.msra.mxu0 0.0
      %994 = vmatprep.subr.mxu0 0.0
      %995 = vmatpush2.msra.mxu0 0.0
      %996 = vmatprep.subr.mxu0 0.0
      %997 = vmatpush2.msra.mxu0 0.0
      %998 = vmatprep.subr.mxu0 0.0
      %999 = vmatpush2.msra.mxu0 0.0
      %1000 = vmatprep.subr.mxu0 0.0
      %1001 = vmatpush2.msra.mxu0 0.0
      %1002 = vmatprep.subr.mxu0 0.0
      %1003 = vmatpush2.msra.mxu0 0.0
      %1004 = vmatprep.subr.mxu0 0.0
      %1005 = vmatpush2.msra.mxu0 0.0
      %1006 = vmatprep.subr.mxu0 0.0
      %1007 = vmatpush2.msra.mxu0 0.0
      %1008 = vmatprep.subr.mxu0 0.0
      %1009 = vmatpush2.msra.mxu0 0.0
      %1010 = vmatprep.subr.mxu0 0.0
      %1011 = vmatpush2.msra.mxu0 0.0
      %1012 = vmatprep.subr.mxu0 0.0
      %1013 = vmatpush2.msra.mxu0 0.0
      %1014 = vmatprep.subr.mxu0 0.0
      %1015 = vmatpush2.msra.mxu0 0.0
      %1016 = vmatprep.subr.mxu0 0.0
      %1017 = vmatpush2.msra.mxu0 0.0
      %1018 = vmatprep.mubr.f32.mxu0 0.0
      %1019 = vmatmul.mubr.f32.gmra.mxu0 %v952
      %v1020 = vpop.f32.mrf.mxu0
      %v1021 = vadd.f32 0.0, %v1020
      %v1022 = vpop.f32.mrf.mxu0
      %1023 = vdwg.mxu0
      %1025 = vrot.lane.b32.xlu0 %v1021, 32
      %v1026 = vpop.permute.xlu0 %1025
      %vm1028 = vcmask 523520
      %1029 = vst.msk [vmem:[#allocation2] sm:$0xff] %vm1028, %v1026
      %1030 = vrot.lane.b32.xlu0 %v610, 64
      %v1031 = vpop.permute.xlu0 %1030
      %1032 = vrot.lane.b32.xlu0 %v612, 64
      %v1033 = vpop.permute.xlu0 %1032
      %v1034 = vsel %vm685, %v1031, 0
      %v1036 = vsel %vm685, %v1033, 0
      %1038 = vmatprep.subr.mxu0 0.0
      %1039 = vmatpush1.xpose.msra.mxu0 0.0
      %1040 = vmatprep.subr.mxu0 0.0
      %1041 = vmatpush1.xpose.msra.mxu0 0.0
      %1042 = vmatprep.subr.mxu0 0.0
      %1043 = vmatpush1.xpose.msra.mxu0 0.0
      %1044 = vmatprep.subr.mxu0 0.0
      %1045 = vmatpush1.xpose.msra.mxu0 0.0
      %1046 = vmatprep.subr.mxu0 0.0
      %1047 = vmatpush1.xpose.msra.mxu0 0.0
      %1048 = vmatprep.subr.mxu0 0.0
      %1049 = vmatpush1.xpose.msra.mxu0 0.0
      %1050 = vmatprep.subr.mxu0 0.0
      %1051 = vmatpush1.xpose.msra.mxu0 0.0
      %1052 = vmatprep.subr.mxu0 0.0
      %1053 = vmatpush1.xpose.msra.mxu0 0.0
      %1054 = vmatprep.subr.mxu0 0.0
      %1055 = vmatpush1.xpose.msra.mxu0 0.0
      %1056 = vmatprep.subr.mxu0 0.0
      %1057 = vmatpush1.xpose.msra.mxu0 0.0
      %1058 = vmatprep.subr.mxu0 0.0
      %1059 = vmatpush1.xpose.msra.mxu0 0.0
      %1060 = vmatprep.subr.mxu0 0.0
      %1061 = vmatpush1.xpose.msra.mxu0 0.0
      %1062 = vmatprep.subr.mxu0 0.0
      %1063 = vmatpush1.xpose.msra.mxu0 0.0
      %1064 = vmatprep.subr.mxu0 0.0
      %1065 = vmatpush1.xpose.msra.mxu0 0.0
      %1066 = vmatprep.subr.mxu0 0.0
      %1067 = vmatpush1.xpose.msra.mxu0 0.0
      %1068 = vmatprep.subr.mxu0 0.0
      %1069 = vmatpush1.xpose.msra.mxu0 %v1036
      %1070 = vmatprep.subr.mxu0 0.0
      %1071 = vmatpush2.xpose.msra.mxu0 0.0
      %1072 = vmatprep.subr.mxu0 0.0
      %1073 = vmatpush2.xpose.msra.mxu0 0.0
      %1074 = vmatprep.subr.mxu0 0.0
      %1075 = vmatpush2.xpose.msra.mxu0 0.0
      %1076 = vmatprep.subr.mxu0 0.0
      %1077 = vmatpush2.xpose.msra.mxu0 0.0
      %1078 = vmatprep.subr.mxu0 0.0
      %1079 = vmatpush2.xpose.msra.mxu0 0.0
      %1080 = vmatprep.subr.mxu0 0.0
      %1081 = vmatpush2.xpose.msra.mxu0 0.0
      %1082 = vmatprep.subr.mxu0 0.0
      %1083 = vmatpush2.xpose.msra.mxu0 0.0
      %1084 = vmatprep.subr.mxu0 0.0
      %1085 = vmatpush2.xpose.msra.mxu0 0.0
      %1086 = vmatprep.subr.mxu0 0.0
      %1087 = vmatpush2.xpose.msra.mxu0 0.0
      %1088 = vmatprep.subr.mxu0 0.0
      %1089 = vmatpush2.xpose.msra.mxu0 0.0
      %1090 = vmatprep.subr.mxu0 0.0
      %1091 = vmatpush2.xpose.msra.mxu0 0.0
      %1092 = vmatprep.subr.mxu0 0.0
      %1093 = vmatpush2.xpose.msra.mxu0 0.0
      %1094 = vmatprep.subr.mxu0 0.0
      %1095 = vmatpush2.xpose.msra.mxu0 0.0
      %1096 = vmatprep.subr.mxu0 0.0
      %1097 = vmatpush2.xpose.msra.mxu0 0.0
      %1098 = vmatprep.subr.mxu0 0.0
      %1099 = vmatpush2.xpose.msra.mxu0 0.0
      %1100 = vmatprep.subr.mxu0 0.0
      %1101 = vmatpush2.xpose.msra.mxu0 0.0
      %1102 = vmatprep.mubr.f32.mxu0 0.0
      %1103 = vmatmul.mubr.f32.gmra.mxu0 %v1034
      %v1104 = vpop.f32.mrf.mxu0
      %v1105 = vadd.f32 0.0, %v1104
      %v1106 = vpop.f32.mrf.mxu0
      %1107 = vdwg.mxu0
      %v1108 = vmul.f32 %v1105, 0.17677669
      %v1109 = vadd.f32 %v1108, %v767
      %v1110 = vsel %vm770, %v1109, -inf
      %1111 = vmax.xlane.f32.xlu0 %v1110
      %v1112 = vpop.xlane.xlu0 %1111
      %v1113 = vsub.f32 %v1109, %v1112
      %v1114 = vmul.f32 %v1113, 1.442695
      %v1115 = vpow.pop %v1114
      %v1116 = vsel %vm770, %v1115, 0.0
      %1117 = vadd.xlane.f32.xlu0 %v1116
      %v1118 = vpop.xlane.xlu0 %1117
      %v1119 = vrcp.pop %v1118
      %v1120 = vmul.f32 %v1115, %v1119
      %1121 = vrot.lane.b32.xlu0 %v681, 64
      %v1122 = vpop.permute.xlu0 %1121
      %v1125 = vsel %vm770, %v1120, 0
      %1127 = vmatprep.subr.mxu0 0.0
      %1128 = vmatpush1.msra.mxu0 0.0
      %1129 = vmatprep.subr.mxu0 0.0
      %1130 = vmatpush1.msra.mxu0 0.0
      %1131 = vmatprep.subr.mxu0 0.0
      %1132 = vmatpush1.msra.mxu0 0.0
      %1133 = vmatprep.subr.mxu0 0.0
      %1134 = vmatpush1.msra.mxu0 0.0
      %1135 = vmatprep.subr.mxu0 0.0
      %1136 = vmatpush1.msra.mxu0 0.0
      %1137 = vmatprep.subr.mxu0 0.0
      %1138 = vmatpush1.msra.mxu0 0.0
      %1139 = vmatprep.subr.mxu0 0.0
      %1140 = vmatpush1.msra.mxu0 0.0
      %1141 = vmatprep.subr.mxu0 0.0
      %1142 = vmatpush1.msra.mxu0 0.0
      %1143 = vmatprep.subr.mxu0 0.0
      %1144 = vmatpush1.msra.mxu0 0.0
      %1145 = vmatprep.subr.mxu0 0.0
      %1146 = vmatpush1.msra.mxu0 0.0
      %1147 = vmatprep.subr.mxu0 0.0
      %1148 = vmatpush1.msra.mxu0 0.0
      %1149 = vmatprep.subr.mxu0 0.0
      %1150 = vmatpush1.msra.mxu0 0.0
      %1151 = vmatprep.subr.mxu0 0.0
      %1152 = vmatpush1.msra.mxu0 0.0
      %1153 = vmatprep.subr.mxu0 0.0
      %1154 = vmatpush1.msra.mxu0 0.0
      %1155 = vmatprep.subr.mxu0 0.0
      %1156 = vmatpush1.msra.mxu0 0.0
      %1157 = vmatprep.subr.mxu0 0.0
      %1158 = vmatpush1.msra.mxu0 %v1122
      %1159 = vmatprep.subr.mxu0 0.0
      %1160 = vmatpush2.msra.mxu0 0.0
      %1161 = vmatprep.subr.mxu0 0.0
      %1162 = vmatpush2.msra.mxu0 0.0
      %1163 = vmatprep.subr.mxu0 0.0
      %1164 = vmatpush2.msra.mxu0 0.0
      %1165 = vmatprep.subr.mxu0 0.0
      %1166 = vmatpush2.msra.mxu0 0.0
      %1167 = vmatprep.subr.mxu0 0.0
      %1168 = vmatpush2.msra.mxu0 0.0
      %1169 = vmatprep.subr.mxu0 0.0
      %1170 = vmatpush2.msra.mxu0 0.0
      %1171 = vmatprep.subr.mxu0 0.0
      %1172 = vmatpush2.msra.mxu0 0.0
      %1173 = vmatprep.subr.mxu0 0.0
      %1174 = vmatpush2.msra.mxu0 0.0
      %1175 = vmatprep.subr.mxu0 0.0
      %1176 = vmatpush2.msra.mxu0 0.0
      %1177 = vmatprep.subr.mxu0 0.0
      %1178 = vmatpush2.msra.mxu0 0.0
      %1179 = vmatprep.subr.mxu0 0.0
      %1180 = vmatpush2.msra.mxu0 0.0
      %1181 = vmatprep.subr.mxu0 0.0
      %1182 = vmatpush2.msra.mxu0 0.0
      %1183 = vmatprep.subr.mxu0 0.0
      %1184 = vmatpush2.msra.mxu0 0.0
      %1185 = vmatprep.subr.mxu0 0.0
      %1186 = vmatpush2.msra.mxu0 0.0
      %1187 = vmatprep.subr.mxu0 0.0
      %1188 = vmatpush2.msra.mxu0 0.0
      %1189 = vmatprep.subr.mxu0 0.0
      %1190 = vmatpush2.msra.mxu0 0.0
      %1191 = vmatprep.mubr.f32.mxu0 0.0
      %1192 = vmatmul.mubr.f32.gmra.mxu0 %v1125
      %v1193 = vpop.f32.mrf.mxu0
      %v1194 = vadd.f32 0.0, %v1193
      %v1195 = vpop.f32.mrf.mxu0
      %1196 = vdwg.mxu0
      %1198 = vrot.lane.b32.xlu0 %v1194, 64
      %v1199 = vpop.permute.xlu0 %1198
      %vm1201 = vcmask 785920
      %1202 = vst.msk [vmem:[#allocation2] sm:$0xff] %vm1201, %v1199
      %1203 = vrot.lane.b32.xlu0 %v610, 32
      %v1204 = vpop.permute.xlu0 %1203
      %1205 = vrot.lane.b32.xlu0 %v612, 32
      %v1206 = vpop.permute.xlu0 %1205
      %v1207 = vsel %vm685, %v1204, 0
      %v1209 = vsel %vm685, %v1206, 0
      %1211 = vmatprep.subr.mxu0 0.0
      %1212 = vmatpush1.xpose.msra.mxu0 0.0
      %1213 = vmatprep.subr.mxu0 0.0
      %1214 = vmatpush1.xpose.msra.mxu0 0.0
      %1215 = vmatprep.subr.mxu0 0.0
      %1216 = vmatpush1.xpose.msra.mxu0 0.0
      %1217 = vmatprep.subr.mxu0 0.0
      %1218 = vmatpush1.xpose.msra.mxu0 0.0
      %1219 = vmatprep.subr.mxu0 0.0
      %1220 = vmatpush1.xpose.msra.mxu0 0.0
      %1221 = vmatprep.subr.mxu0 0.0
      %1222 = vmatpush1.xpose.msra.mxu0 0.0
      %1223 = vmatprep.subr.mxu0 0.0
      %1224 = vmatpush1.xpose.msra.mxu0 0.0
      %1225 = vmatprep.subr.mxu0 0.0
      %1226 = vmatpush1.xpose.msra.mxu0 0.0
      %1227 = vmatprep.subr.mxu0 0.0
      %1228 = vmatpush1.xpose.msra.mxu0 0.0
      %1229 = vmatprep.subr.mxu0 0.0
      %1230 = vmatpush1.xpose.msra.mxu0 0.0
      %1231 = vmatprep.subr.mxu0 0.0
      %1232 = vmatpush1.xpose.msra.mxu0 0.0
      %1233 = vmatprep.subr.mxu0 0.0
      %1234 = vmatpush1.xpose.msra.mxu0 0.0
      %1235 = vmatprep.subr.mxu0 0.0
      %1236 = vmatpush1.xpose.msra.mxu0 0.0
      %1237 = vmatprep.subr.mxu0 0.0
      %1238 = vmatpush1.xpose.msra.mxu0 0.0
      %1239 = vmatprep.subr.mxu0 0.0
      %1240 = vmatpush1.xpose.msra.mxu0 0.0
      %1241 = vmatprep.subr.mxu0 0.0
      %1242 = vmatpush1.xpose.msra.mxu0 %v1209
      %1243 = vmatprep.subr.mxu0 0.0
      %1244 = vmatpush2.xpose.msra.mxu0 0.0
      %1245 = vmatprep.subr.mxu0 0.0
      %1246 = vmatpush2.xpose.msra.mxu0 0.0
      %1247 = vmatprep.subr.mxu0 0.0
      %1248 = vmatpush2.xpose.msra.mxu0 0.0
      %1249 = vmatprep.subr.mxu0 0.0
      %1250 = vmatpush2.xpose.msra.mxu0 0.0
      %1251 = vmatprep.subr.mxu0 0.0
      %1252 = vmatpush2.xpose.msra.mxu0 0.0
      %1253 = vmatprep.subr.mxu0 0.0
      %1254 = vmatpush2.xpose.msra.mxu0 0.0
      %1255 = vmatprep.subr.mxu0 0.0
      %1256 = vmatpush2.xpose.msra.mxu0 0.0
      %1257 = vmatprep.subr.mxu0 0.0
      %1258 = vmatpush2.xpose.msra.mxu0 0.0
      %1259 = vmatprep.subr.mxu0 0.0
      %1260 = vmatpush2.xpose.msra.mxu0 0.0
      %1261 = vmatprep.subr.mxu0 0.0
      %1262 = vmatpush2.xpose.msra.mxu0 0.0
      %1263 = vmatprep.subr.mxu0 0.0
      %1264 = vmatpush2.xpose.msra.mxu0 0.0
      %1265 = vmatprep.subr.mxu0 0.0
      %1266 = vmatpush2.xpose.msra.mxu0 0.0
      %1267 = vmatprep.subr.mxu0 0.0
      %1268 = vmatpush2.xpose.msra.mxu0 0.0
      %1269 = vmatprep.subr.mxu0 0.0
      %1270 = vmatpush2.xpose.msra.mxu0 0.0
      %1271 = vmatprep.subr.mxu0 0.0
      %1272 = vmatpush2.xpose.msra.mxu0 0.0
      %1273 = vmatprep.subr.mxu0 0.0
      %1274 = vmatpush2.xpose.msra.mxu0 0.0
      %1275 = vmatprep.mubr.f32.mxu0 0.0
      %1276 = vmatmul.mubr.f32.gmra.mxu0 %v1207
      %v1277 = vpop.f32.mrf.mxu0
      %v1278 = vadd.f32 0.0, %v1277
      %v1279 = vpop.f32.mrf.mxu0
      %1280 = vdwg.mxu0
      %v1281 = vmul.f32 %v1278, 0.17677669
      %v1282 = vadd.f32 %v1281, %v767
      %v1283 = vsel %vm770, %v1282, -inf
      %1284 = vmax.xlane.f32.xlu0 %v1283
      %v1285 = vpop.xlane.xlu0 %1284
      %v1286 = vsub.f32 %v1282, %v1285
      %v1287 = vmul.f32 %v1286, 1.442695
      %v1288 = vpow.pop %v1287
      %v1289 = vsel %vm770, %v1288, 0.0
      %1290 = vadd.xlane.f32.xlu0 %v1289
      %v1291 = vpop.xlane.xlu0 %1290
      %v1292 = vrcp.pop %v1291
      %v1293 = vmul.f32 %v1288, %v1292
      %1294 = vrot.lane.b32.xlu0 %v681, 32
      %v1295 = vpop.permute.xlu0 %1294
      %v1298 = vsel %vm770, %v1293, 0
      %1300 = vmatprep.subr.mxu0 0.0
      %1301 = vmatpush1.msra.mxu0 0.0
      %1302 = vmatprep.subr.mxu0 0.0
      %1303 = vmatpush1.msra.mxu0 0.0
      %1304 = vmatprep.subr.mxu0 0.0
      %1305 = vmatpush1.msra.mxu0 0.0
      %1306 = vmatprep.subr.mxu0 0.0
      %1307 = vmatpush1.msra.mxu0 0.0
      %1308 = vmatprep.subr.mxu0 0.0
      %1309 = vmatpush1.msra.mxu0 0.0
      %1310 = vmatprep.subr.mxu0 0.0
      %1311 = vmatpush1.msra.mxu0 0.0
      %1312 = vmatprep.subr.mxu0 0.0
      %1313 = vmatpush1.msra.mxu0 0.0
      %1314 = vmatprep.subr.mxu0 0.0
      %1315 = vmatpush1.msra.mxu0 0.0
      %1316 = vmatprep.subr.mxu0 0.0
      %1317 = vmatpush1.msra.mxu0 0.0
      %1318 = vmatprep.subr.mxu0 0.0
      %1319 = vmatpush1.msra.mxu0 0.0
      %1320 = vmatprep.subr.mxu0 0.0
      %1321 = vmatpush1.msra.mxu0 0.0
      %1322 = vmatprep.subr.mxu0 0.0
      %1323 = vmatpush1.msra.mxu0 0.0
      %1324 = vmatprep.subr.mxu0 0.0
      %1325 = vmatpush1.msra.mxu0 0.0
      %1326 = vmatprep.subr.mxu0 0.0
      %1327 = vmatpush1.msra.mxu0 0.0
      %1328 = vmatprep.subr.mxu0 0.0
      %1329 = vmatpush1.msra.mxu0 0.0
      %1330 = vmatprep.subr.mxu0 0.0
      %1331 = vmatpush1.msra.mxu0 %v1295
      %1332 = vmatprep.subr.mxu0 0.0
      %1333 = vmatpush2.msra.mxu0 0.0
      %1334 = vmatprep.subr.mxu0 0.0
      %1335 = vmatpush2.msra.mxu0 0.0
      %1336 = vmatprep.subr.mxu0 0.0
      %1337 = vmatpush2.msra.mxu0 0.0
      %1338 = vmatprep.subr.mxu0 0.0
      %1339 = vmatpush2.msra.mxu0 0.0
      %1340 = vmatprep.subr.mxu0 0.0
      %1341 = vmatpush2.msra.mxu0 0.0
      %1342 = vmatprep.subr.mxu0 0.0
      %1343 = vmatpush2.msra.mxu0 0.0
      %1344 = vmatprep.subr.mxu0 0.0
      %1345 = vmatpush2.msra.mxu0 0.0
      %1346 = vmatprep.subr.mxu0 0.0
      %1347 = vmatpush2.msra.mxu0 0.0
      %1348 = vmatprep.subr.mxu0 0.0
      %1349 = vmatpush2.msra.mxu0 0.0
      %1350 = vmatprep.subr.mxu0 0.0
      %1351 = vmatpush2.msra.mxu0 0.0
      %1352 = vmatprep.subr.mxu0 0.0
      %1353 = vmatpush2.msra.mxu0 0.0
      %1354 = vmatprep.subr.mxu0 0.0
      %1355 = vmatpush2.msra.mxu0 0.0
      %1356 = vmatprep.subr.mxu0 0.0
      %1357 = vmatpush2.msra.mxu0 0.0
      %1358 = vmatprep.subr.mxu0 0.0
      %1359 = vmatpush2.msra.mxu0 0.0
      %1360 = vmatprep.subr.mxu0 0.0
      %1361 = vmatpush2.msra.mxu0 0.0
      %1362 = vmatprep.subr.mxu0 0.0
      %1363 = vmatpush2.msra.mxu0 0.0
      %1364 = vmatprep.mubr.f32.mxu0 0.0
      %1365 = vmatmul.mubr.f32.gmra.mxu0 %v1298
      %v1366 = vpop.f32.mrf.mxu0
      %v1367 = vadd.f32 0.0, %v1366
      %v1368 = vpop.f32.mrf.mxu0
      %1369 = vdwg.mxu0
      %1371 = vrot.lane.b32.xlu0 %v1367, 96
      %v1372 = vpop.permute.xlu0 %1371
      %vm1374 = vcmask 1048320
      %1375 = vst.msk [vmem:[#allocation2] sm:$0xff] %vm1374, %v1372
      %v1376 = vld [vmem:[#allocation2] sm:$0xff]
      %v1377 = vld [vmem:[%s4] sm:$0xff]
      %v1378 = vld [vmem:[%s4 + $0x8] sm:$0xff]
      %v1379 = vld [vmem:[%s4 + $0x10] sm:$0xff]
      %v1380 = vld [vmem:[%s4 + $0x18] sm:$0xff]
      %v1381 = vld [vmem:[%s4 + $0x20] sm:$0xff]
      %v1382 = vld [vmem:[%s4 + $0x28] sm:$0xff]
      %v1383 = vld [vmem:[%s4 + $0x30] sm:$0xff]
      %v1384 = vld [vmem:[%s4 + $0x38] sm:$0xff]
      %v1385 = vld [vmem:[%s4 + $0x40] sm:$0xff]
      %v1386 = vld [vmem:[%s4 + $0x48] sm:$0xff]
      %v1387 = vld [vmem:[%s4 + $0x50] sm:$0xff]
      %v1388 = vld [vmem:[%s4 + $0x58] sm:$0xff]
      %v1389 = vld [vmem:[%s4 + $0x60] sm:$0xff]
      %v1390 = vld [vmem:[%s4 + $0x68] sm:$0xff]
      %v1391 = vld [vmem:[%s4 + $0x70] sm:$0xff]
      %v1392 = vld [vmem:[%s4 + $0x78] sm:$0xff]
      %v1393 = vld [vmem:[%s5] sm:$0x1]
      %v1395 = vlaneseq
      %v1396 = vshrl.u32 %v1395, 7
      %v1397 = vsub.s32 0, %v1396
      %v1398 = vrot.slane %v1393, %v1397
      %1400 = vmatprep.subr.mxu0 0.0
      %1401 = vmatpush1.msra.mxu0 %v1392
      %1402 = vmatprep.subr.mxu0 0.0
      %1403 = vmatpush1.msra.mxu0 %v1391
      %1404 = vmatprep.subr.mxu0 0.0
      %1405 = vmatpush1.msra.mxu0 %v1390
      %1406 = vmatprep.subr.mxu0 0.0
      %1407 = vmatpush1.msra.mxu0 %v1389
      %1408 = vmatprep.subr.mxu0 0.0
      %1409 = vmatpush1.msra.mxu0 %v1388
      %1410 = vmatprep.subr.mxu0 0.0
      %1411 = vmatpush1.msra.mxu0 %v1387
      %1412 = vmatprep.subr.mxu0 0.0
      %1413 = vmatpush1.msra.mxu0 %v1386
      %1414 = vmatprep.subr.mxu0 0.0
      %1415 = vmatpush1.msra.mxu0 %v1385
      %1416 = vmatprep.subr.mxu0 0.0
      %1417 = vmatpush1.msra.mxu0 %v1384
      %1418 = vmatprep.subr.mxu0 0.0
      %1419 = vmatpush1.msra.mxu0 %v1383
      %1420 = vmatprep.subr.mxu0 0.0
      %1421 = vmatpush1.msra.mxu0 %v1382
      %1422 = vmatprep.subr.mxu0 0.0
      %1423 = vmatpush1.msra.mxu0 %v1381
      %1424 = vmatprep.subr.mxu0 0.0
      %1425 = vmatpush1.msra.mxu0 %v1380
      %1426 = vmatprep.subr.mxu0 0.0
      %1427 = vmatpush1.msra.mxu0 %v1379
      %1428 = vmatprep.subr.mxu0 0.0
      %1429 = vmatpush1.msra.mxu0 %v1378
      %1430 = vmatprep.subr.mxu0 0.0
      %1431 = vmatpush1.msra.mxu0 %v1377
      %1432 = vmatprep.subr.mxu0 0.0
      %1433 = vmatpush2.msra.mxu0 0.0
      %1434 = vmatprep.subr.mxu0 0.0
      %1435 = vmatpush2.msra.mxu0 0.0
      %1436 = vmatprep.subr.mxu0 0.0
      %1437 = vmatpush2.msra.mxu0 0.0
      %1438 = vmatprep.subr.mxu0 0.0
      %1439 = vmatpush2.msra.mxu0 0.0
      %1440 = vmatprep.subr.mxu0 0.0
      %1441 = vmatpush2.msra.mxu0 0.0
      %1442 = vmatprep.subr.mxu0 0.0
      %1443 = vmatpush2.msra.mxu0 0.0
      %1444 = vmatprep.subr.mxu0 0.0
      %1445 = vmatpush2.msra.mxu0 0.0
      %1446 = vmatprep.subr.mxu0 0.0
      %1447 = vmatpush2.msra.mxu0 0.0
      %1448 = vmatprep.subr.mxu0 0.0
      %1449 = vmatpush2.msra.mxu0 0.0
      %1450 = vmatprep.subr.mxu0 0.0
      %1451 = vmatpush2.msra.mxu0 0.0
      %1452 = vmatprep.subr.mxu0 0.0
      %1453 = vmatpush2.msra.mxu0 0.0
      %1454 = vmatprep.subr.mxu0 0.0
      %1455 = vmatpush2.msra.mxu0 0.0
      %1456 = vmatprep.subr.mxu0 0.0
      %1457 = vmatpush2.msra.mxu0 0.0
      %1458 = vmatprep.subr.mxu0 0.0
      %1459 = vmatpush2.msra.mxu0 0.0
      %1460 = vmatprep.subr.mxu0 0.0
      %1461 = vmatpush2.msra.mxu0 0.0
      %1462 = vmatprep.subr.mxu0 0.0
      %1463 = vmatpush2.msra.mxu0 0.0
      %1464 = vmatprep.mubr.f32.mxu0 0.0
      %1465 = vmatmul.mubr.f32.gmra.mxu0 %v1376
      %v1466 = vpop.f32.mrf.mxu0
      %v1467 = vadd.f32 %v1398, %v1466
      %v1468 = vpop.f32.mrf.mxu0
      %1469 = vdwg.mxu0
      %v1470 = vadd.f32 %v1467, %v477
      %v1471 = vld [vmem:[%s6] sm:$0x1]
      %v1472 = vld [vmem:[%s7] sm:$0x1]
      %1473 = vadd.xlane.f32.xlu0 %v1470
      %v1474 = vpop.xlane.xlu0 %1473
      %v1475 = vrcp.pop 128.0
      %v1476 = vmul.f32 %v1474, %v1475
      %v1477 = vsub.f32 %v1470, %v1476
      %v1478 = vmul.f32 %v1477, %v1477
      %1479 = vadd.xlane.f32.xlu0 %v1478
      %v1480 = vpop.xlane.xlu0 %1479
      %v1481 = vmul.f32 %v1480, %v1475
      %v1482 = vadd.f32 %v1481, 1e-12
      %v1483 = vrsqrt.pop %v1482
      %v1484 = vmul.f32 %v1477, %v1483
      %v1486 = vlaneseq
      %v1487 = vshrl.u32 %v1486, 7
      %v1488 = vsub.s32 0, %v1487
      %v1489 = vrot.slane %v1471, %v1488
      %v1491 = vmul.f32 %v1484, %v1489
      %v1493 = vlaneseq
      %v1494 = vshrl.u32 %v1493, 7
      %v1495 = vsub.s32 0, %v1494
      %v1496 = vrot.slane %v1472, %v1495
      %v1498 = vadd.f32 %v1491, %v1496
      %v1499 = vld [vmem:[%s8] sm:$0xff]
      %v1500 = vld [vmem:[%s8 + $0x8] sm:$0xff]
      %v1501 = vld [vmem:[%s8 + $0x10] sm:$0xff]
      %v1502 = vld [vmem:[%s8 + $0x18] sm:$0xff]
      %v1503 = vld [vmem:[%s8 + $0x20] sm:$0xff]
      %v1504 = vld [vmem:[%s8 + $0x28] sm:$0xff]
      %v1505 = vld [vmem:[%s8 + $0x30] sm:$0xff]
      %v1506 = vld [vmem:[%s8 + $0x38] sm:$0xff]
      %v1507 = vld [vmem:[%s8 + $0x40] sm:$0xff]
      %v1508 = vld [vmem:[%s8 + $0x48] sm:$0xff]
      %v1509 = vld [vmem:[%s8 + $0x50] sm:$0xff]
      %v1510 = vld [vmem:[%s8 + $0x58] sm:$0xff]
      %v1511 = vld [vmem:[%s8 + $0x60] sm:$0xff]
      %v1512 = vld [vmem:[%s8 + $0x68] sm:$0xff]
      %v1513 = vld [vmem:[%s8 + $0x70] sm:$0xff]
      %v1514 = vld [vmem:[%s8 + $0x78] sm:$0xff]
      %v1515 = vld [vmem:[%s8 + $0x80] sm:$0xff]
      %v1516 = vld [vmem:[%s8 + $0x88] sm:$0xff]
      %v1517 = vld [vmem:[%s8 + $0x90] sm:$0xff]
      %v1518 = vld [vmem:[%s8 + $0x98] sm:$0xff]
      %v1519 = vld [vmem:[%s8 + $0xa0] sm:$0xff]
      %v1520 = vld [vmem:[%s8 + $0xa8] sm:$0xff]
      %v1521 = vld [vmem:[%s8 + $0xb0] sm:$0xff]
      %v1522 = vld [vmem:[%s8 + $0xb8] sm:$0xff]
      %v1523 = vld [vmem:[%s8 + $0xc0] sm:$0xff]
      %v1524 = vld [vmem:[%s8 + $0xc8] sm:$0xff]
      %v1525 = vld [vmem:[%s8 + $0xd0] sm:$0xff]
      %v1526 = vld [vmem:[%s8 + $0xd8] sm:$0xff]
      %v1527 = vld [vmem:[%s8 + $0xe0] sm:$0xff]
      %v1528 = vld [vmem:[%s8 + $0xe8] sm:$0xff]
      %v1529 = vld [vmem:[%s8 + $0xf0] sm:$0xff]
      %v1530 = vld [vmem:[%s8 + $0xf8] sm:$0xff]
      %v1531 = vld [vmem:[%s8 + $0x100] sm:$0xff]
      %v1532 = vld [vmem:[%s8 + $0x108] sm:$0xff]
      %v1533 = vld [vmem:[%s8 + $0x110] sm:$0xff]
      %v1534 = vld [vmem:[%s8 + $0x118] sm:$0xff]
      %v1535 = vld [vmem:[%s8 + $0x120] sm:$0xff]
      %v1536 = vld [vmem:[%s8 + $0x128] sm:$0xff]
      %v1537 = vld [vmem:[%s8 + $0x130] sm:$0xff]
      %v1538 = vld [vmem:[%s8 + $0x138] sm:$0xff]
      %v1539 = vld [vmem:[%s8 + $0x140] sm:$0xff]
      %v1540 = vld [vmem:[%s8 + $0x148] sm:$0xff]
      %v1541 = vld [vmem:[%s8 + $0x150] sm:$0xff]
      %v1542 = vld [vmem:[%s8 + $0x158] sm:$0xff]
      %v1543 = vld [vmem:[%s8 + $0x160] sm:$0xff]
      %v1544 = vld [vmem:[%s8 + $0x168] sm:$0xff]
      %v1545 = vld [vmem:[%s8 + $0x170] sm:$0xff]
      %v1546 = vld [vmem:[%s8 + $0x178] sm:$0xff]
      %v1547 = vld [vmem:[%s8 + $0x180] sm:$0xff]
      %v1548 = vld [vmem:[%s8 + $0x188] sm:$0xff]
      %v1549 = vld [vmem:[%s8 + $0x190] sm:$0xff]
      %v1550 = vld [vmem:[%s8 + $0x198] sm:$0xff]
      %v1551 = vld [vmem:[%s8 + $0x1a0] sm:$0xff]
      %v1552 = vld [vmem:[%s8 + $0x1a8] sm:$0xff]
      %v1553 = vld [vmem:[%s8 + $0x1b0] sm:$0xff]
      %v1554 = vld [vmem:[%s8 + $0x1b8] sm:$0xff]
      %v1555 = vld [vmem:[%s8 + $0x1c0] sm:$0xff]
      %v1556 = vld [vmem:[%s8 + $0x1c8] sm:$0xff]
      %v1557 = vld [vmem:[%s8 + $0x1d0] sm:$0xff]
      %v1558 = vld [vmem:[%s8 + $0x1d8] sm:$0xff]
      %v1559 = vld [vmem:[%s8 + $0x1e0] sm:$0xff]
      %v1560 = vld [vmem:[%s8 + $0x1e8] sm:$0xff]
      %v1561 = vld [vmem:[%s8 + $0x1f0] sm:$0xff]
      %v1562 = vld [vmem:[%s8 + $0x1f8] sm:$0xff]
      %v1563 = vld [vmem:[%s9] sm:$0xf]
      %v1565 = vlaneseq
      %v1566 = vshrl.u32 %v1565, 7
      %v1567 = vsub.s32 0, %v1566
      %v1568 = vrot.slane %v1563, %v1567
      %v1569 = vlaneseq
      %v1570 = vshrl.u32 %v1569, 7
      %v1571 = vsub.s32 1, %v1570
      %v1572 = vrot.slane %v1563, %v1571
      %v1573 = vlaneseq
      %v1574 = vshrl.u32 %v1573, 7
      %v1575 = vsub.s32 2, %v1574
      %v1576 = vrot.slane %v1563, %v1575
      %v1577 = vlaneseq
      %v1578 = vshrl.u32 %v1577, 7
      %v1579 = vsub.s32 3, %v1578
      %v1580 = vrot.slane %v1563, %v1579
      %1585 = vmatprep.subr.mxu0 %v1560
      %1586 = vmatpush1.msra.mxu0 %v1559
      %1587 = vmatprep.subr.mxu0 %v1556
      %1588 = vmatpush1.msra.mxu0 %v1555
      %1589 = vmatprep.subr.mxu0 %v1552
      %1590 = vmatpush1.msra.mxu0 %v1551
      %1591 = vmatprep.subr.mxu0 %v1548
      %1592 = vmatpush1.msra.mxu0 %v1547
      %1593 = vmatprep.subr.mxu0 %v1544
      %1594 = vmatpush1.msra.mxu0 %v1543
      %1595 = vmatprep.subr.mxu0 %v1540
      %1596 = vmatpush1.msra.mxu0 %v1539
      %1597 = vmatprep.subr.mxu0 %v1536
      %1598 = vmatpush1.msra.mxu0 %v1535
      %1599 = vmatprep.subr.mxu0 %v1532
      %1600 = vmatpush1.msra.mxu0 %v1531
      %1601 = vmatprep.subr.mxu0 %v1528
      %1602 = vmatpush1.msra.mxu0 %v1527
      %1603 = vmatprep.subr.mxu0 %v1524
      %1604 = vmatpush1.msra.mxu0 %v1523
      %1605 = vmatprep.subr.mxu0 %v1520
      %1606 = vmatpush1.msra.mxu0 %v1519
      %1607 = vmatprep.subr.mxu0 %v1516
      %1608 = vmatpush1.msra.mxu0 %v1515
      %1609 = vmatprep.subr.mxu0 %v1512
      %1610 = vmatpush1.msra.mxu0 %v1511
      %1611 = vmatprep.subr.mxu0 %v1508
      %1612 = vmatpush1.msra.mxu0 %v1507
      %1613 = vmatprep.subr.mxu0 %v1504
      %1614 = vmatpush1.msra.mxu0 %v1503
      %1615 = vmatprep.subr.mxu0 %v1500
      %1616 = vmatpush1.msra.mxu0 %v1499
      %1617 = vmatprep.subr.mxu0 0.0
      %1618 = vmatpush2.msra.mxu0 0.0
      %1619 = vmatprep.subr.mxu0 0.0
      %1620 = vmatpush2.msra.mxu0 0.0
      %1621 = vmatprep.subr.mxu0 0.0
      %1622 = vmatpush2.msra.mxu0 0.0
      %1623 = vmatprep.subr.mxu0 0.0
      %1624 = vmatpush2.msra.mxu0 0.0
      %1625 = vmatprep.subr.mxu0 0.0
      %1626 = vmatpush2.msra.mxu0 0.0
      %1627 = vmatprep.subr.mxu0 0.0
      %1628 = vmatpush2.msra.mxu0 0.0
      %1629 = vmatprep.subr.mxu0 0.0
      %1630 = vmatpush2.msra.mxu0 0.0
      %1631 = vmatprep.subr.mxu0 0.0
      %1632 = vmatpush2.msra.mxu0 0.0
      %1633 = vmatprep.subr.mxu0 0.0
      %1634 = vmatpush2.msra.mxu0 0.0
      %1635 = vmatprep.subr.mxu0 0.0
      %1636 = vmatpush2.msra.mxu0 0.0
      %1637 = vmatprep.subr.mxu0 0.0
      %1638 = vmatpush2.msra.mxu0 0.0
      %1639 = vmatprep.subr.mxu0 0.0
      %1640 = vmatpush2.msra.mxu0 0.0
      %1641 = vmatprep.subr.mxu0 0.0
      %1642 = vmatpush2.msra.mxu0 0.0
      %1643 = vmatprep.subr.mxu0 0.0
      %1644 = vmatpush2.msra.mxu0 0.0
      %1645 = vmatprep.subr.mxu0 0.0
      %1646 = vmatpush2.msra.mxu0 0.0
      %1647 = vmatprep.subr.mxu0 0.0
      %1648 = vmatpush2.msra.mxu0 0.0
      %1649 = vmatprep.mubr.f32.mxu0 0.0
      %1650 = vmatmul.mubr.f32.gmra.mxu0 %v1498
      %v1651 = vpop.f32.mrf.mxu0
      %v1652 = vadd.f32 %v1568, %v1651
      %v1653 = vpop.f32.mrf.mxu0
      %v1654 = vadd.f32 %v1572, %v1653
      %1655 = vdwg.mxu0
      %1656 = vmatprep.subr.mxu0 %v1562
      %1657 = vmatpush1.msra.mxu0 %v1561
      %1658 = vmatprep.subr.mxu0 %v1558
      %1659 = vmatpush1.msra.mxu0 %v1557
      %1660 = vmatprep.subr.mxu0 %v1554
      %1661 = vmatpush1.msra.mxu0 %v1553
      %1662 = vmatprep.subr.mxu0 %v1550
      %1663 = vmatpush1.msra.mxu0 %v1549
      %1664 = vmatprep.subr.mxu0 %v1546
      %1665 = vmatpush1.msra.mxu0 %v1545
      %1666 = vmatprep.subr.mxu0 %v1542
      %1667 = vmatpush1.msra.mxu0 %v1541
      %1668 = vmatprep.subr.mxu0 %v1538
      %1669 = vmatpush1.msra.mxu0 %v1537
      %1670 = vmatprep.subr.mxu0 %v1534
      %1671 = vmatpush1.msra.mxu0 %v1533
      %1672 = vmatprep.subr.mxu0 %v1530
      %1673 = vmatpush1.msra.mxu0 %v1529
      %1674 = vmatprep.subr.mxu0 %v1526
      %1675 = vmatpush1.msra.mxu0 %v1525
      %1676 = vmatprep.subr.mxu0 %v1522
      %1677 = vmatpush1.msra.mxu0 %v1521
      %1678 = vmatprep.subr.mxu0 %v1518
      %1679 = vmatpush1.msra.mxu0 %v1517
      %1680 = vmatprep.subr.mxu0 %v1514
      %1681 = vmatpush1.msra.mxu0 %v1513
      %1682 = vmatprep.subr.mxu0 %v1510
      %1683 = vmatpush1.msra.mxu0 %v1509
      %1684 = vmatprep.subr.mxu0 %v1506
      %1685 = vmatpush1.msra.mxu0 %v1505
      %1686 = vmatprep.subr.mxu0 %v1502
      %1687 = vmatpush1.msra.mxu0 %v1501
      %1688 = vmatprep.subr.mxu0 0.0
      %1689 = vmatpush2.msra.mxu0 0.0
      %1690 = vmatprep.subr.mxu0 0.0
      %1691 = vmatpush2.msra.mxu0 0.0
      %1692 = vmatprep.subr.mxu0 0.0
      %1693 = vmatpush2.msra.mxu0 0.0
      %1694 = vmatprep.subr.mxu0 0.0
      %1695 = vmatpush2.msra.mxu0 0.0
      %1696 = vmatprep.subr.mxu0 0.0
      %1697 = vmatpush2.msra.mxu0 0.0
      %1698 = vmatprep.subr.mxu0 0.0
      %1699 = vmatpush2.msra.mxu0 0.0
      %1700 = vmatprep.subr.mxu0 0.0
      %1701 = vmatpush2.msra.mxu0 0.0
      %1702 = vmatprep.subr.mxu0 0.0
      %1703 = vmatpush2.msra.mxu0 0.0
      %1704 = vmatprep.subr.mxu0 0.0
      %1705 = vmatpush2.msra.mxu0 0.0
      %1706 = vmatprep.subr.mxu0 0.0
      %1707 = vmatpush2.msra.mxu0 0.0
      %1708 = vmatprep.subr.mxu0 0.0
      %1709 = vmatpush2.msra.mxu0 0.0
      %1710 = vmatprep.subr.mxu0 0.0
      %1711 = vmatpush2.msra.mxu0 0.0
      %1712 = vmatprep.subr.mxu0 0.0
      %1713 = vmatpush2.msra.mxu0 0.0
      %1714 = vmatprep.subr.mxu0 0.0
      %1715 = vmatpush2.msra.mxu0 0.0
      %1716 = vmatprep.subr.mxu0 0.0
      %1717 = vmatpush2.msra.mxu0 0.0
      %1718 = vmatprep.subr.mxu0 0.0
      %1719 = vmatpush2.msra.mxu0 0.0
      %1720 = vmatprep.mubr.f32.mxu0 0.0
      %1721 = vmatmul.mubr.f32.gmra.mxu0 %v1498
      %v1722 = vpop.f32.mrf.mxu0
      %v1723 = vadd.f32 %v1576, %v1722
      %v1724 = vpop.f32.mrf.mxu0
      %v1725 = vadd.f32 %v1580, %v1724
      %1726 = vdwg.mxu0
      %v1727 = vmul.f32 %v1652, 0.5
      %v1728 = vmul.f32 %v1654, 0.5
      %v1729 = vmul.f32 %v1723, 0.5
      %v1730 = vmul.f32 %v1725, 0.5
      %v1731 = vmul.f32 %v1652, 0.044715
      %v1732 = vmul.f32 %v1654, 0.044715
      %v1733 = vmul.f32 %v1723, 0.044715
      %v1734 = vmul.f32 %v1725, 0.044715
      %v1735 = vmul.f32 %v1731, %v1652
      %v1736 = vmul.f32 %v1732, %v1654
      %v1737 = vmul.f32 %v1733, %v1723
      %v1738 = vmul.f32 %v1734, %v1725
      %v1739 = vmul.f32 %v1735, %v1652
      %v1740 = vmul.f32 %v1736, %v1654
      %v1741 = vmul.f32 %v1737, %v1723
      %v1742 = vmul.f32 %v1738, %v1725
      %v1743 = vadd.f32 %v1652, %v1739
      %v1744 = vadd.f32 %v1654, %v1740
      %v1745 = vadd.f32 %v1723, %v1741
      %v1746 = vadd.f32 %v1725, %v1742
      %v1747 = vmul.f32 %v1743, 0.7978846
      %v1748 = vmul.f32 %v1744, 0.7978846
      %v1749 = vmul.f32 %v1745, 0.7978846
      %v1750 = vmul.f32 %v1746, 0.7978846
      %v1751 = vtanh.pop %v1747
      %v1752 = vtanh.pop %v1748
      %v1753 = vtanh.pop %v1749
      %v1754 = vtanh.pop %v1750
      %v1755 = vadd.f32 %v1751, 1.0
      %v1756 = vadd.f32 %v1752, 1.0
      %v1757 = vadd.f32 %v1753, 1.0
      %v1758 = vadd.f32 %v1754, 1.0
      %v1759 = vmul.f32 %v1727, %v1755
      %v1760 = vmul.f32 %v1728, %v1756
      %v1761 = vmul.f32 %v1729, %v1757
      %v1762 = vmul.f32 %v1730, %v1758
      %v1763 = vld [vmem:[%s10] sm:$0xff]
      %v1764 = vld [vmem:[%s10 + $0x8] sm:$0xff]
      %v1765 = vld [vmem:[%s10 + $0x10] sm:$0xff]
      %v1766 = vld [vmem:[%s10 + $0x18] sm:$0xff]
      %v1767 = vld [vmem:[%s10 + $0x20] sm:$0xff]
      %v1768 = vld [vmem:[%s10 + $0x28] sm:$0xff]
      %v1769 = vld [vmem:[%s10 + $0x30] sm:$0xff]
      %v1770 = vld [vmem:[%s10 + $0x38] sm:$0xff]
      %v1771 = vld [vmem:[%s10 + $0x40] sm:$0xff]
      %v1772 = vld [vmem:[%s10 + $0x48] sm:$0xff]
      %v1773 = vld [vmem:[%s10 + $0x50] sm:$0xff]
      %v1774 = vld [vmem:[%s10 + $0x58] sm:$0xff]
      %v1775 = vld [vmem:[%s10 + $0x60] sm:$0xff]
      %v1776 = vld [vmem:[%s10 + $0x68] sm:$0xff]
      %v1777 = vld [vmem:[%s10 + $0x70] sm:$0xff]
      %v1778 = vld [vmem:[%s10 + $0x78] sm:$0xff]
      %v1779 = vld [vmem:[%s10 + $0x80] sm:$0xff]
      %v1780 = vld [vmem:[%s10 + $0x88] sm:$0xff]
      %v1781 = vld [vmem:[%s10 + $0x90] sm:$0xff]
      %v1782 = vld [vmem:[%s10 + $0x98] sm:$0xff]
      %v1783 = vld [vmem:[%s10 + $0xa0] sm:$0xff]
      %v1784 = vld [vmem:[%s10 + $0xa8] sm:$0xff]
      %v1785 = vld [vmem:[%s10 + $0xb0] sm:$0xff]
      %v1786 = vld [vmem:[%s10 + $0xb8] sm:$0xff]
      %v1787 = vld [vmem:[%s10 + $0xc0] sm:$0xff]
      %v1788 = vld [vmem:[%s10 + $0xc8] sm:$0xff]
      %v1789 = vld [vmem:[%s10 + $0xd0] sm:$0xff]
      %v1790 = vld [vmem:[%s10 + $0xd8] sm:$0xff]
      %v1791 = vld [vmem:[%s10 + $0xe0] sm:$0xff]
      %v1792 = vld [vmem:[%s10 + $0xe8] sm:$0xff]
      %v1793 = vld [vmem:[%s10 + $0xf0] sm:$0xff]
      %v1794 = vld [vmem:[%s10 + $0xf8] sm:$0xff]
      %v1795 = vld [vmem:[%s10 + $0x100] sm:$0xff]
      %v1796 = vld [vmem:[%s10 + $0x108] sm:$0xff]
      %v1797 = vld [vmem:[%s10 + $0x110] sm:$0xff]
      %v1798 = vld [vmem:[%s10 + $0x118] sm:$0xff]
      %v1799 = vld [vmem:[%s10 + $0x120] sm:$0xff]
      %v1800 = vld [vmem:[%s10 + $0x128] sm:$0xff]
      %v1801 = vld [vmem:[%s10 + $0x130] sm:$0xff]
      %v1802 = vld [vmem:[%s10 + $0x138] sm:$0xff]
      %v1803 = vld [vmem:[%s10 + $0x140] sm:$0xff]
      %v1804 = vld [vmem:[%s10 + $0x148] sm:$0xff]
      %v1805 = vld [vmem:[%s10 + $0x150] sm:$0xff]
      %v1806 = vld [vmem:[%s10 + $0x158] sm:$0xff]
      %v1807 = vld [vmem:[%s10 + $0x160] sm:$0xff]
      %v1808 = vld [vmem:[%s10 + $0x168] sm:$0xff]
      %v1809 = vld [vmem:[%s10 + $0x170] sm:$0xff]
      %v1810 = vld [vmem:[%s10 + $0x178] sm:$0xff]
      %v1811 = vld [vmem:[%s10 + $0x180] sm:$0xff]
      %v1812 = vld [vmem:[%s10 + $0x188] sm:$0xff]
      %v1813 = vld [vmem:[%s10 + $0x190] sm:$0xff]
      %v1814 = vld [vmem:[%s10 + $0x198] sm:$0xff]
      %v1815 = vld [vmem:[%s10 + $0x1a0] sm:$0xff]
      %v1816 = vld [vmem:[%s10 + $0x1a8] sm:$0xff]
      %v1817 = vld [vmem:[%s10 + $0x1b0] sm:$0xff]
      %v1818 = vld [vmem:[%s10 + $0x1b8] sm:$0xff]
      %v1819 = vld [vmem:[%s10 + $0x1c0] sm:$0xff]
      %v1820 = vld [vmem:[%s10 + $0x1c8] sm:$0xff]
      %v1821 = vld [vmem:[%s10 + $0x1d0] sm:$0xff]
      %v1822 = vld [vmem:[%s10 + $0x1d8] sm:$0xff]
      %v1823 = vld [vmem:[%s10 + $0x1e0] sm:$0xff]
      %v1824 = vld [vmem:[%s10 + $0x1e8] sm:$0xff]
      %v1825 = vld [vmem:[%s10 + $0x1f0] sm:$0xff]
      %v1826 = vld [vmem:[%s10 + $0x1f8] sm:$0xff]
      %v1827 = vld [vmem:[%s11] sm:$0x1]
      %v1829 = vlaneseq
      %v1830 = vshrl.u32 %v1829, 7
      %v1831 = vsub.s32 0, %v1830
      %v1832 = vrot.slane %v1827, %v1831
      %1834 = vmatprep.subr.mxu0 0.0
      %1835 = vmatpush1.msra.mxu0 %v1778
      %1836 = vmatprep.subr.mxu0 0.0
      %1837 = vmatpush1.msra.mxu0 %v1777
      %1838 = vmatprep.subr.mxu0 0.0
      %1839 = vmatpush1.msra.mxu0 %v1776
      %1840 = vmatprep.subr.mxu0 0.0
      %1841 = vmatpush1.msra.mxu0 %v1775
      %1842 = vmatprep.subr.mxu0 0.0
      %1843 = vmatpush1.msra.mxu0 %v1774
      %1844 = vmatprep.subr.mxu0 0.0
      %1845 = vmatpush1.msra.mxu0 %v1773
      %1846 = vmatprep.subr.mxu0 0.0
      %1847 = vmatpush1.msra.mxu0 %v1772
      %1848 = vmatprep.subr.mxu0 0.0
      %1849 = vmatpush1.msra.mxu0 %v1771
      %1850 = vmatprep.subr.mxu0 0.0
      %1851 = vmatpush1.msra.mxu0 %v1770
      %1852 = vmatprep.subr.mxu0 0.0
      %1853 = vmatpush1.msra.mxu0 %v1769
      %1854 = vmatprep.subr.mxu0 0.0
      %1855 = vmatpush1.msra.mxu0 %v1768
      %1856 = vmatprep.subr.mxu0 0.0
      %1857 = vmatpush1.msra.mxu0 %v1767
      %1858 = vmatprep.subr.mxu0 0.0
      %1859 = vmatpush1.msra.mxu0 %v1766
      %1860 = vmatprep.subr.mxu0 0.0
      %1861 = vmatpush1.msra.mxu0 %v1765
      %1862 = vmatprep.subr.mxu0 0.0
      %1863 = vmatpush1.msra.mxu0 %v1764
      %1864 = vmatprep.subr.mxu0 0.0
      %1865 = vmatpush1.msra.mxu0 %v1763
      %1866 = vmatprep.subr.mxu0 0.0
      %1867 = vmatpush2.msra.mxu0 %v1794
      %1868 = vmatprep.subr.mxu0 0.0
      %1869 = vmatpush2.msra.mxu0 %v1793
      %1870 = vmatprep.subr.mxu0 0.0
      %1871 = vmatpush2.msra.mxu0 %v1792
      %1872 = vmatprep.subr.mxu0 0.0
      %1873 = vmatpush2.msra.mxu0 %v1791
      %1874 = vmatprep.subr.mxu0 0.0
      %1875 = vmatpush2.msra.mxu0 %v1790
      %1876 = vmatprep.subr.mxu0 0.0
      %1877 = vmatpush2.msra.mxu0 %v1789
      %1878 = vmatprep.subr.mxu0 0.0
      %1879 = vmatpush2.msra.mxu0 %v1788
      %1880 = vmatprep.subr.mxu0 0.0
      %1881 = vmatpush2.msra.mxu0 %v1787
      %1882 = vmatprep.subr.mxu0 0.0
      %1883 = vmatpush2.msra.mxu0 %v1786
      %1884 = vmatprep.subr.mxu0 0.0
      %1885 = vmatpush2.msra.mxu0 %v1785
      %1886 = vmatprep.subr.mxu0 0.0
      %1887 = vmatpush2.msra.mxu0 %v1784
      %1888 = vmatprep.subr.mxu0 0.0
      %1889 = vmatpush2.msra.mxu0 %v1783
      %1890 = vmatprep.subr.mxu0 0.0
      %1891 = vmatpush2.msra.mxu0 %v1782
      %1892 = vmatprep.subr.mxu0 0.0
      %1893 = vmatpush2.msra.mxu0 %v1781
      %1894 = vmatprep.subr.mxu0 0.0
      %1895 = vmatpush2.msra.mxu0 %v1780
      %1896 = vmatprep.subr.mxu0 0.0
      %1897 = vmatpush2.msra.mxu0 %v1779
      %1898 = vmatprep.mubr.f32.mxu0 %v1760
      %1899 = vmatmul.mubr.f32.gmra.mxu0 %v1759
      %v1900 = vpop.f32.mrf.mxu0
      %v1901 = vadd.f32 %v1832, %v1900
      %v1902 = vpop.f32.mrf.mxu0
      %1903 = vdwg.mxu0
      %1904 = vmatprep.subr.mxu0 0.0
      %1905 = vmatpush1.msra.mxu0 %v1810
      %1906 = vmatprep.subr.mxu0 0.0
      %1907 = vmatpush1.msra.mxu0 %v1809
      %1908 = vmatprep.subr.mxu0 0.0
      %1909 = vmatpush1.msra.mxu0 %v1808
      %1910 = vmatprep.subr.mxu0 0.0
      %1911 = vmatpush1.msra.mxu0 %v1807
      %1912 = vmatprep.subr.mxu0 0.0
      %1913 = vmatpush1.msra.mxu0 %v1806
      %1914 = vmatprep.subr.mxu0 0.0
      %1915 = vmatpush1.msra.mxu0 %v1805
      %1916 = vmatprep.subr.mxu0 0.0
      %1917 = vmatpush1.msra.mxu0 %v1804
      %1918 = vmatprep.subr.mxu0 0.0
      %1919 = vmatpush1.msra.mxu0 %v1803
      %1920 = vmatprep.subr.mxu0 0.0
      %1921 = vmatpush1.msra.mxu0 %v1802
      %1922 = vmatprep.subr.mxu0 0.0
      %1923 = vmatpush1.msra.mxu0 %v1801
      %1924 = vmatprep.subr.mxu0 0.0
      %1925 = vmatpush1.msra.mxu0 %v1800
      %1926 = vmatprep.subr.mxu0 0.0
      %1927 = vmatpush1.msra.mxu0 %v1799
      %1928 = vmatprep.subr.mxu0 0.0
      %1929 = vmatpush1.msra.mxu0 %v1798
      %1930 = vmatprep.subr.mxu0 0.0
      %1931 = vmatpush1.msra.mxu0 %v1797
      %1932 = vmatprep.subr.mxu0 0.0
      %1933 = vmatpush1.msra.mxu0 %v1796
      %1934 = vmatprep.subr.mxu0 0.0
      %1935 = vmatpush1.msra.mxu0 %v1795
      %1936 = vmatprep.subr.mxu0 0.0
      %1937 = vmatpush2.msra.mxu0 %v1826
      %1938 = vmatprep.subr.mxu0 0.0
      %1939 = vmatpush2.msra.mxu0 %v1825
      %1940 = vmatprep.subr.mxu0 0.0
      %1941 = vmatpush2.msra.mxu0 %v1824
      %1942 = vmatprep.subr.mxu0 0.0
      %1943 = vmatpush2.msra.mxu0 %v1823
      %1944 = vmatprep.subr.mxu0 0.0
      %1945 = vmatpush2.msra.mxu0 %v1822
      %1946 = vmatprep.subr.mxu0 0.0
      %1947 = vmatpush2.msra.mxu0 %v1821
      %1948 = vmatprep.subr.mxu0 0.0
      %1949 = vmatpush2.msra.mxu0 %v1820
      %1950 = vmatprep.subr.mxu0 0.0
      %1951 = vmatpush2.msra.mxu0 %v1819
      %1952 = vmatprep.subr.mxu0 0.0
      %1953 = vmatpush2.msra.mxu0 %v1818
      %1954 = vmatprep.subr.mxu0 0.0
      %1955 = vmatpush2.msra.mxu0 %v1817
      %1956 = vmatprep.subr.mxu0 0.0
      %1957 = vmatpush2.msra.mxu0 %v1816
      %1958 = vmatprep.subr.mxu0 0.0
      %1959 = vmatpush2.msra.mxu0 %v1815
      %1960 = vmatprep.subr.mxu0 0.0
      %1961 = vmatpush2.msra.mxu0 %v1814
      %1962 = vmatprep.subr.mxu0 0.0
      %1963 = vmatpush2.msra.mxu0 %v1813
      %1964 = vmatprep.subr.mxu0 0.0
      %1965 = vmatpush2.msra.mxu0 %v1812
      %1966 = vmatprep.subr.mxu0 0.0
      %1967 = vmatpush2.msra.mxu0 %v1811
      %1968 = vmatprep.mubr.f32.mxu0 %v1762
      %1969 = vmatmul.mubr.f32.gmra.mxu0 %v1761
      %v1970 = vpop.f32.mrf.mxu0
      %v1971 = vadd.f32 %v1901, %v1970
      %v1972 = vpop.f32.mrf.mxu0
      %1973 = vdwg.mxu0
      %v1974 = vadd.f32 %v1971, %v1498
      %v1975 = vld [vmem:[%s12] sm:$0x1]
      %v1976 = vld [vmem:[%s13] sm:$0x1]
      %1977 = vadd.xlane.f32.xlu0 %v1974
      %v1978 = vpop.xlane.xlu0 %1977
      %v1979 = vmul.f32 %v1978, %v1475
      %v1980 = vsub.f32 %v1974, %v1979
      %v1981 = vmul.f32 %v1980, %v1980
      %1982 = vadd.xlane.f32.xlu0 %v1981
      %v1983 = vpop.xlane.xlu0 %1982
      %v1984 = vmul.f32 %v1983, %v1475
      %v1985 = vadd.f32 %v1984, 1e-12
      %v1986 = vrsqrt.pop %v1985
      %v1987 = vmul.f32 %v1980, %v1986
      %v1989 = vlaneseq
      %v1990 = vshrl.u32 %v1989, 7
      %v1991 = vsub.s32 0, %v1990
      %v1992 = vrot.slane %v1975, %v1991
      %v1994 = vmul.f32 %v1987, %v1992
      %v1996 = vlaneseq
      %v1997 = vshrl.u32 %v1996, 7
      %v1998 = vsub.s32 0, %v1997
      %v1999 = vrot.slane %v1976, %v1998
      %v2001 = vadd.f32 %v1994, %v1999
      %2002 = vst [vmem:[%s476] sm:$0xff] %v2001
      %p2003 = scmp.lt.s32.totalorder %s25, 1
      %s2004 = scalar_select %p2003, %s25, 1
      %s2005 = smul.addr %s2004, 8
      %s2006 = scalar_lea.vmem %s14, %s2005
      // Predicated region
      $region77: #{duygu_analizi_forward.6} parent=75 // pred_check
        %p2007 = pneg %p347
      $region78: #{duygu_analizi_forward.6} parent=75 // pred_check_branch
        %2009 = sbr.rel (%p2007) target = $region80
      $region79: #{duygu_analizi_forward.6} parent=75 // pred_region
        _
      $region80: #{duygu_analizi_forward.6} parent=75 // pred_fallthru
        _
    $region76: #{duygu_analizi_forward.6} parent=5 // pred_fallthru
      _
    %p2010 = scmp.le.s32.totalorder 2, %s20
    // Predicated region
    $region81: #{duygu_analizi_forward.6} parent=5 // pred_check
      %p2011 = pneg %p2010
    $region82: #{duygu_analizi_forward.6} parent=5 // pred_check_branch
      %2013 = sbr.rel (%p2011) target = $region84
    $region83: #{duygu_analizi_forward.6} parent=5 // pred_region
      %s2014 = ssub.s32 %s20, 2
      // Predicated region
      $region85: #{duygu_analizi_forward.6} parent=83 // pred_check
        %p2015 = pneg %p353
      $region86: #{duygu_analizi_forward.6} parent=83 // pred_check_branch
        %2017 = sbr.rel (%p2015) target = $region88
      $region87: #{duygu_analizi_forward.6} parent=83 // pred_region
        %p2018 = scmp.lt.s32.totalorder %s26, 1
        %s2019 = scalar_select %p2018, %s26, 1
        %s2020 = smul.addr %s2019, 8
        %s2021 = scalar_lea.vmem %s14, %s2020
      $region88: #{duygu_analizi_forward.6} parent=83 // pred_fallthru
        _
    $region84: #{duygu_analizi_forward.6} parent=5 // pred_fallthru
      _
  $region6: #{duygu_analizi_forward.6} parent=0 // loop_footer
    %s24 = sadd.s32 1, %s20
  $region7: #{duygu_analizi_forward.6} parent=0 // loop_footer_branch
    %19 = sbr.rel target = $region3
  $region8: #{duygu_analizi_forward.6} parent=0 // loop_exit
    _

</llo_original>
